<compile_context>
chip_gen: v6e
topology: v6e:2x2x1
jax: 0.10.0
libtpu: 0.0.40
codegen_flags: <defaults>
</compile_context>

<pallas_src>
import functools
import math

import jax
import jax.numpy as jnp
from jax import lax
from jax.experimental import pallas as pl
from jax.experimental.pallas import tpu as pltpu


def _layer_norm(y, gamma, beta, eps=1e-5):
    mu = jnp.mean(y, axis=-1, keepdims=True)
    var = jnp.mean((y - mu) ** 2, axis=-1, keepdims=True)
    return (y - mu) * lax.rsqrt(var + eps) * gamma + beta


def encoder_layer_kernel(
    x_full_ref, x_q_ref,
    wq_ref, bq_ref, wk_ref, bk_ref, wv_ref, bv_ref, wo_ref, bo_ref,
    w1_ref, b1_ref, w2_ref, b2_ref,
    g1_ref, be1_ref, g2_ref, be2_ref,
    o_ref,
    k_scr, v_scr,
    *, n_head,
):
    qi = pl.program_id(1)
    S, D = k_scr.shape
    tq = x_q_ref.shape[1]
    dk = D // n_head
    scale = 1.0 / math.sqrt(dk)

    # ---- K / V for the full sequence of this batch element: computed once per
    #      batch (first query block), kept resident in bf16 VMEM scratch.
    @pl.when(qi == 0)
    def _():
        xf = x_full_ref[0].astype(jnp.bfloat16)                            # (S, D)
        k = jnp.dot(xf, wk_ref[...], preferred_element_type=jnp.float32) + bk_ref[...]
        v = jnp.dot(xf, wv_ref[...], preferred_element_type=jnp.float32) + bv_ref[...]
        k_scr[...] = k.astype(jnp.bfloat16)
        v_scr[...] = v.astype(jnp.bfloat16)

    xq = x_q_ref[0]                                                        # (tq, D) f32
    xq_b = xq.astype(jnp.bfloat16)

    # Q projection; fold 1/sqrt(dk) into Q once (single vmul on the small tensor).
    q = jnp.dot(xq_b, wq_ref[...], preferred_element_type=jnp.float32) + bq_ref[...]
    q = (q * scale).astype(jnp.bfloat16)                                   # (tq, D) bf16

    k = k_scr[...]                                                         # (S, D) bf16
    v = v_scr[...]                                                         # (S, D) bf16

    # ---- per-head scaled-dot-product attention, fused into the Wo projection.
    attn = jnp.zeros((tq, D), jnp.float32)
    for h in range(n_head):
        lo, hi = h * dk, (h + 1) * dk
        qh, kh, vh = q[:, lo:hi], k[:, lo:hi], v[:, lo:hi]
        # contract on the last dim of both operands -> no explicit K transpose
        s = lax.dot_general(qh, kh, (((1,), (1,)), ((), ())),
                            preferred_element_type=jnp.float32)            # (tq, S)
        s = s - jnp.max(s, axis=-1, keepdims=True)
        p = jnp.exp(s)                                                     # f32, VPU/EUP
        p = p * pl.reciprocal(jnp.sum(p, axis=-1, keepdims=True), approx=True)
        oh = jnp.dot(p.astype(jnp.bfloat16), vh,
                     preferred_element_type=jnp.float32)                   # (tq, dk)
        attn = attn + jnp.dot(oh.astype(jnp.bfloat16), wo_ref[lo:hi, :],
                              preferred_element_type=jnp.float32)          # (tq, D)
    attn_out = attn + bo_ref[...]

    # ---- residual + LayerNorm 1 (f32 element-wise)
    h1 = _layer_norm(xq + attn_out, g1_ref[...], be1_ref[...])

    # ---- position-wise FFN (dropout = identity in eval)
    ff = jnp.maximum(
        jnp.dot(h1.astype(jnp.bfloat16), w1_ref[...],
                preferred_element_type=jnp.float32) + b1_ref[...], 0.0)
    ffn_out = jnp.dot(ff.astype(jnp.bfloat16), w2_ref[...],
                      preferred_element_type=jnp.float32) + b2_ref[...]

    # ---- residual + LayerNorm 2
    o_ref[0] = _layer_norm(h1 + ffn_out, g2_ref[...], be2_ref[...]).astype(o_ref.dtype)


def transformer_encoder_layer(x, params, n_head, tq=None):
    B, S, D = x.shape
    d_ff = params["w1"].shape[1]

    # ---- query-block tiling of the sequence axis.
    if tq is None:
        tq = min(S, 256)
    if S % tq != 0 or (tq % 8 != 0 and tq != S):
        tq = S                                    # single query block fallback
    n_q = S // tq

    # ---- explicit VMEM budget (bf16 weights, single-buffered) with headroom.
    wbytes = (4 * D * D + 2 * D * d_ff) * 2                       # bf16 weights
    bbytes = (8 * D + d_ff) * 4                                   # biases + LN params
    act = (2 * S * D) * 2                                         # K/V scratch (bf16)
    act += (S * D + 4 * tq * D) * 4                               # x_full + x_q/out x2 bufs
    act += (tq * S + tq * d_ff + 6 * tq * D) * 4                  # per-step intermediates
    vmem_limit = min(max(2 * (wbytes + bbytes + act), 32 << 20), 64 << 20)

    def build(single_buffer_weights):
        wkw = {}
        if single_buffer_weights:
            # Constant blocks (index_map independent of grid) need only 1 buffer.
            wkw["pipeline_mode"] = pl.Buffered(buffer_count=1)

        def const(shape):
            return pl.BlockSpec(shape, lambda b, qi: (0,) * len(shape), **wkw)

        in_specs = [
            pl.BlockSpec((1, S, D), lambda b, qi: (b, 0, 0)),     # x (full seq, for K/V)
            pl.BlockSpec((1, tq, D), lambda b, qi: (b, qi, 0)),   # x (query block)
            const((D, D)), const((1, D)),                         # wq, bq
            const((D, D)), const((1, D)),                         # wk, bk
            const((D, D)), const((1, D)),                         # wv, bv
            const((D, D)), const((1, D)),                         # wo, bo
            const((D, d_ff)), const((1, d_ff)),                   # w1, b1
            const((d_ff, D)), const((1, D)),                      # w2, b2
            const((1, D)), const((1, D)),                         # norm1 gamma, beta
            const((1, D)), const((1, D)),                         # norm2 gamma, beta
        ]

        return pl.pallas_call(
            functools.partial(encoder_layer_kernel, n_head=n_head),
            out_shape=jax.ShapeDtypeStruct((B, S, D), jnp.float32),
            grid_spec=pltpu.PrefetchScalarGridSpec(
                num_scalar_prefetch=0,
                grid=(B, n_q),
                in_specs=in_specs,
                out_specs=pl.BlockSpec((1, tq, D), lambda b, qi: (b, qi, 0)),
                scratch_shapes=[
                    pltpu.VMEM((S, D), jnp.bfloat16),             # K scratch
                    pltpu.VMEM((S, D), jnp.bfloat16),             # V scratch
                ],
            ),
            compiler_params=pltpu.CompilerParams(
                dimension_semantics=("parallel", "arbitrary"),
                vmem_limit_bytes=vmem_limit,
            ),
        )

    args = (
        x, x,
        params["wq"], params["bq"], params["wk"], params["bk"],
        params["wv"], params["bv"], params["wo"], params["bo"],
        params["w1"], params["b1"], params["w2"], params["b2"],
        params["g1"], params["be1"], params["g2"], params["be2"],
    )

    try:
        return build(single_buffer_weights=True)(*args)
    except Exception:
        # Fallback if this jax build rejects single-buffered pipeline_mode.
        return build(single_buffer_weights=False)(*args)


# ------------------------- pure-JAX reference -------------------------
def reference(x, params, n_head, matmul_dtype=jnp.float32):
    """PyTorch-style reference; matmul inputs cast to `matmul_dtype`."""
    B, S, D = x.shape
    dk = D // n_head
    scale = 1.0 / math.sqrt(dk)
    c = lambda t: t.astype(matmul_dtype)

    def lin(y, wname, bname):
        w = params[wname].astype(jnp.float32)
        return (jnp.dot(c(y), c(w), preferred_element_type=jnp.float32)
                + params[bname][0])

    q = lin(x, "wq", "bq") * scale
    k = lin(x, "wk", "bk")
    v = lin(x, "wv", "bv")

    split = lambda t: t.reshape(B, S, n_head, dk).transpose(0, 2, 1, 3)
    qh, kh, vh = split(q), split(k), split(v)
    scores = jnp.einsum("bhqd,bhkd->bhqk", c(qh), c(kh),
                        preferred_element_type=jnp.float32)
    attn = jax.nn.softmax(scores, axis=-1)
    out = jnp.einsum("bhqk,bhkd->bhqd", c(attn), c(vh),
                     preferred_element_type=jnp.float32)
    out = out.transpose(0, 2, 1, 3).reshape(B, S, D)
    attn_out = lin(out, "wo", "bo")

    def ln(y, g, b):
        mu = jnp.mean(y, axis=-1, keepdims=True)
        var = jnp.mean((y - mu) ** 2, axis=-1, keepdims=True)
        return (y - mu) / jnp.sqrt(var + 1e-5) * g[0] + b[0]

    h1 = ln(x + attn_out, params["g1"], params["be1"])
    ff = jnp.maximum(lin(h1, "w1", "b1"), 0.0)
    ffn_out = lin(ff, "w2", "b2")
    return ln(h1 + ffn_out, params["g2"], params["be2"])


def init_params(key, d_model, d_ff):
    ks = jax.random.split(key, 12)
    u = lambda k, shape, fan_in: jax.random.uniform(
        k, shape, jnp.float32, -1.0 / math.sqrt(fan_in), 1.0 / math.sqrt(fan_in))
    bf = lambda t: t.astype(jnp.bfloat16)      # weights live in HBM as bf16
    return {
        # Linear weights stored pre-transposed as (in, out), bf16.
        "wq": bf(u(ks[0], (d_model, d_model), d_model)),
        "bq": u(ks[1], (1, d_model), d_model),
        "wk": bf(u(ks[2], (d_model, d_model), d_model)),
        "bk": u(ks[3], (1, d_model), d_model),
        "wv": bf(u(ks[4], (d_model, d_model), d_model)),
        "bv": u(ks[5], (1, d_model), d_model),
        "wo": bf(u(ks[6], (d_model, d_model), d_model)),
        "bo": u(ks[7], (1, d_model), d_model),
        "w1": bf(u(ks[8], (d_model, d_ff), d_model)),
        "b1": u(ks[9], (1, d_ff), d_model),
        "w2": bf(u(ks[10], (d_ff, d_model), d_ff)),
        "b2": u(ks[11], (1, d_model), d_ff),
        "g1": jnp.ones((1, d_model), jnp.float32),
        "be1": jnp.zeros((1, d_model), jnp.float32),
        "g2": jnp.ones((1, d_model), jnp.float32),
        "be2": jnp.zeros((1, d_model), jnp.float32),
    }


if __name__ == "__main__":
    B, S, D, H, FF = 2, 8, 32, 4, 64
    key = jax.random.PRNGKey(0)
    kx, kp = jax.random.split(key)
    x = jax.random.normal(kx, (B, S, D), jnp.float32)
    params = init_params(kp, D, FF)

    out = transformer_encoder_layer(x, params, n_head=H)
    out = jax.block_until_ready(out)
    assert out.shape == (B, S, D)

    # Tight check vs a reference that uses the same bf16 matmul inputs.
    ref_mixed = reference(x, params, n_head=H, matmul_dtype=jnp.bfloat16)
    err_m = float(jnp.max(jnp.abs(out - ref_mixed)))
    assert jnp.allclose(out, ref_mixed, atol=2e-2, rtol=2e-2), err_m

    # Loose check vs the full-f32 PyTorch-semantics reference.
    ref_f32 = reference(x, params, n_head=H, matmul_dtype=jnp.float32)
    err_f = float(jnp.max(jnp.abs(out - ref_f32)))
    assert jnp.allclose(out, ref_f32, atol=1e-1, rtol=1e-1), err_f

    print("KERNEL_OK")
</pallas_src>

<mosaic_0001>
module attributes {stable_mosaic.version = 11 : i64} {
  func.func @encoder_layer_kernel(%arg0: i32, %arg1: i32, %arg2: memref<1x8x32xf32, #tpu.memory_space<vmem>>, %arg3: memref<1x8x32xf32, #tpu.memory_space<vmem>>, %arg4: memref<32x32xbf16, #tpu.memory_space<vmem>>, %arg5: memref<1x32xf32, #tpu.memory_space<vmem>>, %arg6: memref<32x32xbf16, #tpu.memory_space<vmem>>, %arg7: memref<1x32xf32, #tpu.memory_space<vmem>>, %arg8: memref<32x32xbf16, #tpu.memory_space<vmem>>, %arg9: memref<1x32xf32, #tpu.memory_space<vmem>>, %arg10: memref<32x32xbf16, #tpu.memory_space<vmem>>, %arg11: memref<1x32xf32, #tpu.memory_space<vmem>>, %arg12: memref<32x64xbf16, #tpu.memory_space<vmem>>, %arg13: memref<1x64xf32, #tpu.memory_space<vmem>>, %arg14: memref<64x32xbf16, #tpu.memory_space<vmem>>, %arg15: memref<1x32xf32, #tpu.memory_space<vmem>>, %arg16: memref<1x32xf32, #tpu.memory_space<vmem>>, %arg17: memref<1x32xf32, #tpu.memory_space<vmem>>, %arg18: memref<1x32xf32, #tpu.memory_space<vmem>>, %arg19: memref<1x32xf32, #tpu.memory_space<vmem>>, %arg20: memref<1x8x32xf32, #tpu.memory_space<vmem>>, %arg21: memref<8x32xbf16, #tpu.memory_space<vmem>>, %arg22: memref<8x32xbf16, #tpu.memory_space<vmem>>) attributes {dimension_semantics = [#tpu.dimension_semantics<parallel>, #tpu.dimension_semantics<arbitrary>], iteration_bounds = array<i64: 2, 1>, scalar_prefetch = 0 : i64, scratch_operands = 2 : i64, tpu.core_type = #tpu.core_type<tc>, window_params = [{transform_indices = @transform_0, window_bounds = array<i64: 1, 8, 32>}, {transform_indices = @transform_1, window_bounds = array<i64: 1, 8, 32>}, {pipeline_mode = #tpu.pipeline_mode<synchronous>, transform_indices = @transform_2, window_bounds = array<i64: 32, 32>}, {pipeline_mode = #tpu.pipeline_mode<synchronous>, transform_indices = @transform_3, window_bounds = array<i64: 1, 32>}, {pipeline_mode = #tpu.pipeline_mode<synchronous>, transform_indices = @transform_4, window_bounds = array<i64: 32, 32>}, {pipeline_mode = #tpu.pipeline_mode<synchronous>, transform_indices = @transform_5, window_bounds = array<i64: 1, 32>}, {pipeline_mode = #tpu.pipeline_mode<synchronous>, transform_indices = @transform_6, window_bounds = array<i64: 32, 32>}, {pipeline_mode = #tpu.pipeline_mode<synchronous>, transform_indices = @transform_7, window_bounds = array<i64: 1, 32>}, {pipeline_mode = #tpu.pipeline_mode<synchronous>, transform_indices = @transform_8, window_bounds = array<i64: 32, 32>}, {pipeline_mode = #tpu.pipeline_mode<synchronous>, transform_indices = @transform_9, window_bounds = array<i64: 1, 32>}, {pipeline_mode = #tpu.pipeline_mode<synchronous>, transform_indices = @transform_10, window_bounds = array<i64: 32, 64>}, {pipeline_mode = #tpu.pipeline_mode<synchronous>, transform_indices = @transform_11, window_bounds = array<i64: 1, 64>}, {pipeline_mode = #tpu.pipeline_mode<synchronous>, transform_indices = @transform_12, window_bounds = array<i64: 64, 32>}, {pipeline_mode = #tpu.pipeline_mode<synchronous>, transform_indices = @transform_13, window_bounds = array<i64: 1, 32>}, {pipeline_mode = #tpu.pipeline_mode<synchronous>, transform_indices = @transform_14, window_bounds = array<i64: 1, 32>}, {pipeline_mode = #tpu.pipeline_mode<synchronous>, transform_indices = @transform_15, window_bounds = array<i64: 1, 32>}, {pipeline_mode = #tpu.pipeline_mode<synchronous>, transform_indices = @transform_16, window_bounds = array<i64: 1, 32>}, {pipeline_mode = #tpu.pipeline_mode<synchronous>, transform_indices = @transform_17, window_bounds = array<i64: 1, 32>}, {transform_indices = @transform_18, window_bounds = array<i64: 1, 8, 32>}]} {
    %c0_i32 = arith.constant 0 : i32
    %0 = arith.cmpi eq, %arg1, %c0_i32 : i32
    %1 = arith.extui %0 : i1 to i32
    %c0_i32_0 = arith.constant 0 : i32
    %2 = arith.cmpi ne, %1, %c0_i32_0 : i32
    scf.if %2 {
      %c0_72 = arith.constant 0 : index
      %c0_73 = arith.constant 0 : index
      %c0_74 = arith.constant 0 : index
      %167 = vector.load %arg2[%c0_72, %c0_73, %c0_74] : memref<1x8x32xf32, #tpu.memory_space<vmem>>, vector<1x8x32xf32>
      %168 = vector.shape_cast %167 : vector<1x8x32xf32> to vector<8x32xf32>
      %169 = arith.truncf %168 : vector<8x32xf32> to vector<8x32xbf16>
      %c0_75 = arith.constant 0 : index
      %c0_76 = arith.constant 0 : index
      %170 = vector.load %arg6[%c0_75, %c0_76] : memref<32x32xbf16, #tpu.memory_space<vmem>>, vector<32x32xbf16>
      %cst_77 = arith.constant dense<0.000000e+00> : vector<8x32xf32>
      %171 = tpu.matmul %169, %170, %cst_77 {dimension_numbers = #tpu.dot_dimension_numbers<[1], [0], [0], [1], [0, 0, 1, 1], [], []>} : vector<8x32xbf16>, vector<32x32xbf16>, vector<8x32xf32> -> vector<8x32xf32>
      %c0_78 = arith.constant 0 : index
      %c0_79 = arith.constant 0 : index
      %172 = vector.load %arg7[%c0_78, %c0_79] : memref<1x32xf32, #tpu.memory_space<vmem>>, vector<1x32xf32>
      %173 = vector.broadcast %172 : vector<1x32xf32> to vector<8x32xf32>
      %174 = arith.addf %171, %173 : vector<8x32xf32>
      %c0_80 = arith.constant 0 : index
      %c0_81 = arith.constant 0 : index
      %175 = vector.load %arg8[%c0_80, %c0_81] : memref<32x32xbf16, #tpu.memory_space<vmem>>, vector<32x32xbf16>
      %cst_82 = arith.constant dense<0.000000e+00> : vector<8x32xf32>
      %176 = tpu.matmul %169, %175, %cst_82 {dimension_numbers = #tpu.dot_dimension_numbers<[1], [0], [0], [1], [0, 0, 1, 1], [], []>} : vector<8x32xbf16>, vector<32x32xbf16>, vector<8x32xf32> -> vector<8x32xf32>
      %c0_83 = arith.constant 0 : index
      %c0_84 = arith.constant 0 : index
      %177 = vector.load %arg9[%c0_83, %c0_84] : memref<1x32xf32, #tpu.memory_space<vmem>>, vector<1x32xf32>
      %178 = vector.broadcast %177 : vector<1x32xf32> to vector<8x32xf32>
      %179 = arith.addf %176, %178 : vector<8x32xf32>
      %180 = arith.truncf %174 : vector<8x32xf32> to vector<8x32xbf16>
      %c0_85 = arith.constant 0 : index
      %c0_86 = arith.constant 0 : index
      %181 = vector.load %arg21[%c0_85, %c0_86] : memref<8x32xbf16, #tpu.memory_space<vmem>>, vector<8x32xbf16>
      tpu.vector_store %arg21[%c0_85, %c0_86], %180 {strides = array<i32>} : memref<8x32xbf16, #tpu.memory_space<vmem>>, vector<8x32xbf16>,
      %182 = arith.truncf %179 : vector<8x32xf32> to vector<8x32xbf16>
      %c0_87 = arith.constant 0 : index
      %c0_88 = arith.constant 0 : index
      %183 = vector.load %arg22[%c0_87, %c0_88] : memref<8x32xbf16, #tpu.memory_space<vmem>>, vector<8x32xbf16>
      tpu.vector_store %arg22[%c0_87, %c0_88], %182 {strides = array<i32>} : memref<8x32xbf16, #tpu.memory_space<vmem>>, vector<8x32xbf16>,
    } else {
    }
    %c0 = arith.constant 0 : index
    %c0_1 = arith.constant 0 : index
    %c0_2 = arith.constant 0 : index
    %3 = vector.load %arg3[%c0, %c0_1, %c0_2] : memref<1x8x32xf32, #tpu.memory_space<vmem>>, vector<1x8x32xf32>
    %4 = vector.shape_cast %3 : vector<1x8x32xf32> to vector<8x32xf32>
    %5 = arith.truncf %4 : vector<8x32xf32> to vector<8x32xbf16>
    %c0_3 = arith.constant 0 : index
    %c0_4 = arith.constant 0 : index
    %6 = vector.load %arg4[%c0_3, %c0_4] : memref<32x32xbf16, #tpu.memory_space<vmem>>, vector<32x32xbf16>
    %cst = arith.constant dense<0.000000e+00> : vector<8x32xf32>
    %7 = tpu.matmul %5, %6, %cst {dimension_numbers = #tpu.dot_dimension_numbers<[1], [0], [0], [1], [0, 0, 1, 1], [], []>} : vector<8x32xbf16>, vector<32x32xbf16>, vector<8x32xf32> -> vector<8x32xf32>
    %c0_5 = arith.constant 0 : index
    %c0_6 = arith.constant 0 : index
    %8 = vector.load %arg5[%c0_5, %c0_6] : memref<1x32xf32, #tpu.memory_space<vmem>>, vector<1x32xf32>
    %9 = vector.broadcast %8 : vector<1x32xf32> to vector<8x32xf32>
    %10 = arith.addf %7, %9 : vector<8x32xf32>
    %cst_7 = arith.constant 0.353553385 : f32
    %11 = vector.broadcast %cst_7 : f32 to vector<8x32xf32>
    %12 = arith.mulf %10, %11 : vector<8x32xf32>
    %13 = arith.truncf %12 : vector<8x32xf32> to vector<8x32xbf16>
    %c0_8 = arith.constant 0 : index
    %c0_9 = arith.constant 0 : index
    %14 = vector.load %arg21[%c0_8, %c0_9] : memref<8x32xbf16, #tpu.memory_space<vmem>>, vector<8x32xbf16>
    %c0_10 = arith.constant 0 : index
    %c0_11 = arith.constant 0 : index
    %15 = vector.load %arg22[%c0_10, %c0_11] : memref<8x32xbf16, #tpu.memory_space<vmem>>, vector<8x32xbf16>
    %cst_12 = arith.constant 0.000000e+00 : f32
    %16 = vector.broadcast %cst_12 : f32 to vector<8x32xf32>
    %17 = vector.extract_strided_slice %13 {offsets = [0, 0], sizes = [8, 8], strides = [1, 1]} : vector<8x32xbf16> to vector<8x8xbf16>
    %18 = vector.extract_strided_slice %14 {offsets = [0, 0], sizes = [8, 8], strides = [1, 1]} : vector<8x32xbf16> to vector<8x8xbf16>
    %19 = vector.extract_strided_slice %15 {offsets = [0, 0], sizes = [8, 8], strides = [1, 1]} : vector<8x32xbf16> to vector<8x8xbf16>
    %cst_13 = arith.constant dense<0.000000e+00> : vector<8x8xf32>
    %20 = tpu.matmul %17, %18, %cst_13 {dimension_numbers = #tpu.dot_dimension_numbers<[1], [1], [0], [0], [0, 0, 1, 0], [], []>} : vector<8x8xbf16>, vector<8x8xbf16>, vector<8x8xf32> -> vector<8x8xf32>
    %cst_14 = arith.constant dense<0xFF800000> : vector<8xf32>
    %21 = vector.multi_reduction <maximumf>, %20, %cst_14 [1] : vector<8x8xf32> to vector<8xf32>
    %22 = vector.shape_cast %21 : vector<8xf32> to vector<8x1xf32>
    %23 = vector.broadcast %22 : vector<8x1xf32> to vector<8x8xf32>
    %24 = arith.subf %20, %23 : vector<8x8xf32>
    %25 = math.exp %24 : vector<8x8xf32>
    %cst_15 = arith.constant dense<0.000000e+00> : vector<8xf32>
    %26 = vector.multi_reduction <add>, %25, %cst_15 [1] : vector<8x8xf32> to vector<8xf32>
    %27 = vector.shape_cast %26 : vector<8xf32> to vector<8x1xf32>
    %28 = tpu.reciprocal %27 {approx = true} : vector<8x1xf32> -> vector<8x1xf32>
    %29 = vector.broadcast %28 : vector<8x1xf32> to vector<8x8xf32>
    %30 = arith.mulf %25, %29 : vector<8x8xf32>
    %31 = arith.truncf %30 : vector<8x8xf32> to vector<8x8xbf16>
    %cst_16 = arith.constant dense<0.000000e+00> : vector<8x8xf32>
    %32 = tpu.matmul %31, %19, %cst_16 {dimension_numbers = #tpu.dot_dimension_numbers<[1], [0], [0], [1], [0, 0, 1, 1], [], []>} : vector<8x8xbf16>, vector<8x8xbf16>, vector<8x8xf32> -> vector<8x8xf32>
    %33 = arith.truncf %32 : vector<8x8xf32> to vector<8x8xbf16>
    %c0_17 = arith.constant 0 : index
    %c0_18 = arith.constant 0 : index
    %34 = vector.load %arg10[%c0_17, %c0_18] : memref<32x32xbf16, #tpu.memory_space<vmem>>, vector<8x32xbf16>
    %cst_19 = arith.constant dense<0.000000e+00> : vector<8x32xf32>
    %35 = tpu.matmul %33, %34, %cst_19 {dimension_numbers = #tpu.dot_dimension_numbers<[1], [0], [0], [1], [0, 0, 1, 1], [], []>} : vector<8x8xbf16>, vector<8x32xbf16>, vector<8x32xf32> -> vector<8x32xf32>
    %36 = arith.addf %16, %35 : vector<8x32xf32>
    %37 = vector.extract_strided_slice %13 {offsets = [0, 8], sizes = [8, 8], strides = [1, 1]} : vector<8x32xbf16> to vector<8x8xbf16>
    %38 = vector.extract_strided_slice %14 {offsets = [0, 8], sizes = [8, 8], strides = [1, 1]} : vector<8x32xbf16> to vector<8x8xbf16>
    %39 = vector.extract_strided_slice %15 {offsets = [0, 8], sizes = [8, 8], strides = [1, 1]} : vector<8x32xbf16> to vector<8x8xbf16>
    %cst_20 = arith.constant dense<0.000000e+00> : vector<8x8xf32>
    %40 = tpu.matmul %37, %38, %cst_20 {dimension_numbers = #tpu.dot_dimension_numbers<[1], [1], [0], [0], [0, 0, 1, 0], [], []>} : vector<8x8xbf16>, vector<8x8xbf16>, vector<8x8xf32> -> vector<8x8xf32>
    %cst_21 = arith.constant dense<0xFF800000> : vector<8xf32>
    %41 = vector.multi_reduction <maximumf>, %40, %cst_21 [1] : vector<8x8xf32> to vector<8xf32>
    %42 = vector.shape_cast %41 : vector<8xf32> to vector<8x1xf32>
    %43 = vector.broadcast %42 : vector<8x1xf32> to vector<8x8xf32>
    %44 = arith.subf %40, %43 : vector<8x8xf32>
    %45 = math.exp %44 : vector<8x8xf32>
    %cst_22 = arith.constant dense<0.000000e+00> : vector<8xf32>
    %46 = vector.multi_reduction <add>, %45, %cst_22 [1] : vector<8x8xf32> to vector<8xf32>
    %47 = vector.shape_cast %46 : vector<8xf32> to vector<8x1xf32>
    %48 = tpu.reciprocal %47 {approx = true} : vector<8x1xf32> -> vector<8x1xf32>
    %49 = vector.broadcast %48 : vector<8x1xf32> to vector<8x8xf32>
    %50 = arith.mulf %45, %49 : vector<8x8xf32>
    %51 = arith.truncf %50 : vector<8x8xf32> to vector<8x8xbf16>
    %cst_23 = arith.constant dense<0.000000e+00> : vector<8x8xf32>
    %52 = tpu.matmul %51, %39, %cst_23 {dimension_numbers = #tpu.dot_dimension_numbers<[1], [0], [0], [1], [0, 0, 1, 1], [], []>} : vector<8x8xbf16>, vector<8x8xbf16>, vector<8x8xf32> -> vector<8x8xf32>
    %53 = arith.truncf %52 : vector<8x8xf32> to vector<8x8xbf16>
    %c8 = arith.constant 8 : index
    %c0_24 = arith.constant 0 : index
    %54 = vector.load %arg10[%c8, %c0_24] : memref<32x32xbf16, #tpu.memory_space<vmem>>, vector<8x32xbf16>
    %cst_25 = arith.constant dense<0.000000e+00> : vector<8x32xf32>
    %55 = tpu.matmul %53, %54, %cst_25 {dimension_numbers = #tpu.dot_dimension_numbers<[1], [0], [0], [1], [0, 0, 1, 1], [], []>} : vector<8x8xbf16>, vector<8x32xbf16>, vector<8x32xf32> -> vector<8x32xf32>
    %56 = arith.addf %36, %55 : vector<8x32xf32>
    %57 = vector.extract_strided_slice %13 {offsets = [0, 16], sizes = [8, 8], strides = [1, 1]} : vector<8x32xbf16> to vector<8x8xbf16>
    %58 = vector.extract_strided_slice %14 {offsets = [0, 16], sizes = [8, 8], strides = [1, 1]} : vector<8x32xbf16> to vector<8x8xbf16>
    %59 = vector.extract_strided_slice %15 {offsets = [0, 16], sizes = [8, 8], strides = [1, 1]} : vector<8x32xbf16> to vector<8x8xbf16>
    %cst_26 = arith.constant dense<0.000000e+00> : vector<8x8xf32>
    %60 = tpu.matmul %57, %58, %cst_26 {dimension_numbers = #tpu.dot_dimension_numbers<[1], [1], [0], [0], [0, 0, 1, 0], [], []>} : vector<8x8xbf16>, vector<8x8xbf16>, vector<8x8xf32> -> vector<8x8xf32>
    %cst_27 = arith.constant dense<0xFF800000> : vector<8xf32>
    %61 = vector.multi_reduction <maximumf>, %60, %cst_27 [1] : vector<8x8xf32> to vector<8xf32>
    %62 = vector.shape_cast %61 : vector<8xf32> to vector<8x1xf32>
    %63 = vector.broadcast %62 : vector<8x1xf32> to vector<8x8xf32>
    %64 = arith.subf %60, %63 : vector<8x8xf32>
    %65 = math.exp %64 : vector<8x8xf32>
    %cst_28 = arith.constant dense<0.000000e+00> : vector<8xf32>
    %66 = vector.multi_reduction <add>, %65, %cst_28 [1] : vector<8x8xf32> to vector<8xf32>
    %67 = vector.shape_cast %66 : vector<8xf32> to vector<8x1xf32>
    %68 = tpu.reciprocal %67 {approx = true} : vector<8x1xf32> -> vector<8x1xf32>
    %69 = vector.broadcast %68 : vector<8x1xf32> to vector<8x8xf32>
    %70 = arith.mulf %65, %69 : vector<8x8xf32>
    %71 = arith.truncf %70 : vector<8x8xf32> to vector<8x8xbf16>
    %cst_29 = arith.constant dense<0.000000e+00> : vector<8x8xf32>
    %72 = tpu.matmul %71, %59, %cst_29 {dimension_numbers = #tpu.dot_dimension_numbers<[1], [0], [0], [1], [0, 0, 1, 1], [], []>} : vector<8x8xbf16>, vector<8x8xbf16>, vector<8x8xf32> -> vector<8x8xf32>
    %73 = arith.truncf %72 : vector<8x8xf32> to vector<8x8xbf16>
    %c16 = arith.constant 16 : index
    %c0_30 = arith.constant 0 : index
    %74 = vector.load %arg10[%c16, %c0_30] : memref<32x32xbf16, #tpu.memory_space<vmem>>, vector<8x32xbf16>
    %cst_31 = arith.constant dense<0.000000e+00> : vector<8x32xf32>
    %75 = tpu.matmul %73, %74, %cst_31 {dimension_numbers = #tpu.dot_dimension_numbers<[1], [0], [0], [1], [0, 0, 1, 1], [], []>} : vector<8x8xbf16>, vector<8x32xbf16>, vector<8x32xf32> -> vector<8x32xf32>
    %76 = arith.addf %56, %75 : vector<8x32xf32>
    %77 = vector.extract_strided_slice %13 {offsets = [0, 24], sizes = [8, 8], strides = [1, 1]} : vector<8x32xbf16> to vector<8x8xbf16>
    %78 = vector.extract_strided_slice %14 {offsets = [0, 24], sizes = [8, 8], strides = [1, 1]} : vector<8x32xbf16> to vector<8x8xbf16>
    %79 = vector.extract_strided_slice %15 {offsets = [0, 24], sizes = [8, 8], strides = [1, 1]} : vector<8x32xbf16> to vector<8x8xbf16>
    %cst_32 = arith.constant dense<0.000000e+00> : vector<8x8xf32>
    %80 = tpu.matmul %77, %78, %cst_32 {dimension_numbers = #tpu.dot_dimension_numbers<[1], [1], [0], [0], [0, 0, 1, 0], [], []>} : vector<8x8xbf16>, vector<8x8xbf16>, vector<8x8xf32> -> vector<8x8xf32>
    %cst_33 = arith.constant dense<0xFF800000> : vector<8xf32>
    %81 = vector.multi_reduction <maximumf>, %80, %cst_33 [1] : vector<8x8xf32> to vector<8xf32>
    %82 = vector.shape_cast %81 : vector<8xf32> to vector<8x1xf32>
    %83 = vector.broadcast %82 : vector<8x1xf32> to vector<8x8xf32>
    %84 = arith.subf %80, %83 : vector<8x8xf32>
    %85 = math.exp %84 : vector<8x8xf32>
    %cst_34 = arith.constant dense<0.000000e+00> : vector<8xf32>
    %86 = vector.multi_reduction <add>, %85, %cst_34 [1] : vector<8x8xf32> to vector<8xf32>
    %87 = vector.shape_cast %86 : vector<8xf32> to vector<8x1xf32>
    %88 = tpu.reciprocal %87 {approx = true} : vector<8x1xf32> -> vector<8x1xf32>
    %89 = vector.broadcast %88 : vector<8x1xf32> to vector<8x8xf32>
    %90 = arith.mulf %85, %89 : vector<8x8xf32>
    %91 = arith.truncf %90 : vector<8x8xf32> to vector<8x8xbf16>
    %cst_35 = arith.constant dense<0.000000e+00> : vector<8x8xf32>
    %92 = tpu.matmul %91, %79, %cst_35 {dimension_numbers = #tpu.dot_dimension_numbers<[1], [0], [0], [1], [0, 0, 1, 1], [], []>} : vector<8x8xbf16>, vector<8x8xbf16>, vector<8x8xf32> -> vector<8x8xf32>
    %93 = arith.truncf %92 : vector<8x8xf32> to vector<8x8xbf16>
    %c24 = arith.constant 24 : index
    %c0_36 = arith.constant 0 : index
    %94 = vector.load %arg10[%c24, %c0_36] : memref<32x32xbf16, #tpu.memory_space<vmem>>, vector<8x32xbf16>
    %cst_37 = arith.constant dense<0.000000e+00> : vector<8x32xf32>
    %95 = tpu.matmul %93, %94, %cst_37 {dimension_numbers = #tpu.dot_dimension_numbers<[1], [0], [0], [1], [0, 0, 1, 1], [], []>} : vector<8x8xbf16>, vector<8x32xbf16>, vector<8x32xf32> -> vector<8x32xf32>
    %96 = arith.addf %76, %95 : vector<8x32xf32>
    %c0_38 = arith.constant 0 : index
    %c0_39 = arith.constant 0 : index
    %97 = vector.load %arg11[%c0_38, %c0_39] : memref<1x32xf32, #tpu.memory_space<vmem>>, vector<1x32xf32>
    %98 = vector.broadcast %97 : vector<1x32xf32> to vector<8x32xf32>
    %99 = arith.addf %96, %98 : vector<8x32xf32>
    %100 = arith.addf %4, %99 : vector<8x32xf32>
    %c0_40 = arith.constant 0 : index
    %c0_41 = arith.constant 0 : index
    %101 = vector.load %arg16[%c0_40, %c0_41] : memref<1x32xf32, #tpu.memory_space<vmem>>, vector<1x32xf32>
    %c0_42 = arith.constant 0 : index
    %c0_43 = arith.constant 0 : index
    %102 = vector.load %arg17[%c0_42, %c0_43] : memref<1x32xf32, #tpu.memory_space<vmem>>, vector<1x32xf32>
    %cst_44 = arith.constant dense<0.000000e+00> : vector<8xf32>
    %103 = vector.multi_reduction <add>, %100, %cst_44 [1] : vector<8x32xf32> to vector<8xf32>
    %104 = vector.shape_cast %103 : vector<8xf32> to vector<8x1xf32>
    %cst_45 = arith.constant 3.200000e+01 : f32
    %105 = vector.broadcast %cst_45 : f32 to vector<8x1xf32>
    %106 = arith.divf %104, %105 : vector<8x1xf32>
    %107 = vector.broadcast %106 : vector<8x1xf32> to vector<8x32xf32>
    %108 = arith.subf %100, %107 : vector<8x32xf32>
    %109 = arith.mulf %108, %108 : vector<8x32xf32>
    %cst_46 = arith.constant dense<0.000000e+00> : vector<8xf32>
    %110 = vector.multi_reduction <add>, %109, %cst_46 [1] : vector<8x32xf32> to vector<8xf32>
    %111 = vector.shape_cast %110 : vector<8xf32> to vector<8x1xf32>
    %cst_47 = arith.constant 3.200000e+01 : f32
    %112 = vector.broadcast %cst_47 : f32 to vector<8x1xf32>
    %113 = arith.divf %111, %112 : vector<8x1xf32>
    %114 = vector.broadcast %106 : vector<8x1xf32> to vector<8x32xf32>
    %115 = arith.subf %100, %114 : vector<8x32xf32>
    %cst_48 = arith.constant 9.99999974E-6 : f32
    %116 = vector.broadcast %cst_48 : f32 to vector<8x1xf32>
    %117 = arith.addf %113, %116 : vector<8x1xf32>
    %118 = math.rsqrt %117 : vector<8x1xf32>
    %119 = vector.broadcast %118 : vector<8x1xf32> to vector<8x32xf32>
    %120 = arith.mulf %115, %119 : vector<8x32xf32>
    %121 = vector.broadcast %101 : vector<1x32xf32> to vector<8x32xf32>
    %122 = arith.mulf %120, %121 : vector<8x32xf32>
    %123 = vector.broadcast %102 : vector<1x32xf32> to vector<8x32xf32>
    %124 = arith.addf %122, %123 : vector<8x32xf32>
    %125 = arith.truncf %124 : vector<8x32xf32> to vector<8x32xbf16>
    %c0_49 = arith.constant 0 : index
    %c0_50 = arith.constant 0 : index
    %126 = vector.load %arg12[%c0_49, %c0_50] : memref<32x64xbf16, #tpu.memory_space<vmem>>, vector<32x64xbf16>
    %cst_51 = arith.constant dense<0.000000e+00> : vector<8x64xf32>
    %127 = tpu.matmul %125, %126, %cst_51 {dimension_numbers = #tpu.dot_dimension_numbers<[1], [0], [0], [1], [0, 0, 1, 1], [], []>} : vector<8x32xbf16>, vector<32x64xbf16>, vector<8x64xf32> -> vector<8x64xf32>
    %c0_52 = arith.constant 0 : index
    %c0_53 = arith.constant 0 : index
    %128 = vector.load %arg13[%c0_52, %c0_53] : memref<1x64xf32, #tpu.memory_space<vmem>>, vector<1x64xf32>
    %129 = vector.broadcast %128 : vector<1x64xf32> to vector<8x64xf32>
    %130 = arith.addf %127, %129 : vector<8x64xf32>
    %cst_54 = arith.constant 0.000000e+00 : f32
    %131 = vector.broadcast %cst_54 : f32 to vector<8x64xf32>
    %132 = arith.maximumf %130, %131 : vector<8x64xf32>
    %133 = arith.truncf %132 : vector<8x64xf32> to vector<8x64xbf16>
    %c0_55 = arith.constant 0 : index
    %c0_56 = arith.constant 0 : index
    %134 = vector.load %arg14[%c0_55, %c0_56] : memref<64x32xbf16, #tpu.memory_space<vmem>>, vector<64x32xbf16>
    %cst_57 = arith.constant dense<0.000000e+00> : vector<8x32xf32>
    %135 = tpu.matmul %133, %134, %cst_57 {dimension_numbers = #tpu.dot_dimension_numbers<[1], [0], [0], [1], [0, 0, 1, 1], [], []>} : vector<8x64xbf16>, vector<64x32xbf16>, vector<8x32xf32> -> vector<8x32xf32>
    %c0_58 = arith.constant 0 : index
    %c0_59 = arith.constant 0 : index
    %136 = vector.load %arg15[%c0_58, %c0_59] : memref<1x32xf32, #tpu.memory_space<vmem>>, vector<1x32xf32>
    %137 = vector.broadcast %136 : vector<1x32xf32> to vector<8x32xf32>
    %138 = arith.addf %135, %137 : vector<8x32xf32>
    %139 = arith.addf %124, %138 : vector<8x32xf32>
    %c0_60 = arith.constant 0 : index
    %c0_61 = arith.constant 0 : index
    %140 = vector.load %arg18[%c0_60, %c0_61] : memref<1x32xf32, #tpu.memory_space<vmem>>, vector<1x32xf32>
    %c0_62 = arith.constant 0 : index
    %c0_63 = arith.constant 0 : index
    %141 = vector.load %arg19[%c0_62, %c0_63] : memref<1x32xf32, #tpu.memory_space<vmem>>, vector<1x32xf32>
    %cst_64 = arith.constant dense<0.000000e+00> : vector<8xf32>
    %142 = vector.multi_reduction <add>, %139, %cst_64 [1] : vector<8x32xf32> to vector<8xf32>
    %143 = vector.shape_cast %142 : vector<8xf32> to vector<8x1xf32>
    %cst_65 = arith.constant 3.200000e+01 : f32
    %144 = vector.broadcast %cst_65 : f32 to vector<8x1xf32>
    %145 = arith.divf %143, %144 : vector<8x1xf32>
    %146 = vector.broadcast %145 : vector<8x1xf32> to vector<8x32xf32>
    %147 = arith.subf %139, %146 : vector<8x32xf32>
    %148 = arith.mulf %147, %147 : vector<8x32xf32>
    %cst_66 = arith.constant dense<0.000000e+00> : vector<8xf32>
    %149 = vector.multi_reduction <add>, %148, %cst_66 [1] : vector<8x32xf32> to vector<8xf32>
    %150 = vector.shape_cast %149 : vector<8xf32> to vector<8x1xf32>
    %cst_67 = arith.constant 3.200000e+01 : f32
    %151 = vector.broadcast %cst_67 : f32 to vector<8x1xf32>
    %152 = arith.divf %150, %151 : vector<8x1xf32>
    %153 = vector.broadcast %145 : vector<8x1xf32> to vector<8x32xf32>
    %154 = arith.subf %139, %153 : vector<8x32xf32>
    %cst_68 = arith.constant 9.99999974E-6 : f32
    %155 = vector.broadcast %cst_68 : f32 to vector<8x1xf32>
    %156 = arith.addf %152, %155 : vector<8x1xf32>
    %157 = math.rsqrt %156 : vector<8x1xf32>
    %158 = vector.broadcast %157 : vector<8x1xf32> to vector<8x32xf32>
    %159 = arith.mulf %154, %158 : vector<8x32xf32>
    %160 = vector.broadcast %140 : vector<1x32xf32> to vector<8x32xf32>
    %161 = arith.mulf %159, %160 : vector<8x32xf32>
    %162 = vector.broadcast %141 : vector<1x32xf32> to vector<8x32xf32>
    %163 = arith.addf %161, %162 : vector<8x32xf32>
    %c0_69 = arith.constant 0 : index
    %c0_70 = arith.constant 0 : index
    %c0_71 = arith.constant 0 : index
    %164 = vector.load %arg20[%c0_69, %c0_70, %c0_71] : memref<1x8x32xf32, #tpu.memory_space<vmem>>, vector<1x8x32xf32>
    %165 = vector.shape_cast %164 : vector<1x8x32xf32> to vector<8x32xf32>
    %166 = vector.shape_cast %163 : vector<8x32xf32> to vector<1x8x32xf32>
    tpu.vector_store %arg20[%c0_69, %c0_70, %c0_71], %166 {strides = array<i32>} : memref<1x8x32xf32, #tpu.memory_space<vmem>>, vector<1x8x32xf32>,
    return
  }
  func.func @transform_0(%arg0: i32, %arg1: i32) -> (i32, i32, i32) {
    %c0_i32 = arith.constant 0 : i32
    %c0_i32_0 = arith.constant 0 : i32
    %c0_i32_1 = arith.constant 0 : i32
    return %arg0, %c0_i32, %c0_i32_0 : i32, i32, i32
  }
  func.func @transform_1(%arg0: i32, %arg1: i32) -> (i32, i32, i32) {
    %c0_i32 = arith.constant 0 : i32
    %c0_i32_0 = arith.constant 0 : i32
    return %arg0, %arg1, %c0_i32 : i32, i32, i32
  }
  func.func @transform_2(%arg0: i32, %arg1: i32) -> (i32, i32) {
    %c0_i32 = arith.constant 0 : i32
    %c0_i32_0 = arith.constant 0 : i32
    %c0_i32_1 = arith.constant 0 : i32
    return %c0_i32, %c0_i32_0 : i32, i32
  }
  func.func @transform_3(%arg0: i32, %arg1: i32) -> (i32, i32) {
    %c0_i32 = arith.constant 0 : i32
    %c0_i32_0 = arith.constant 0 : i32
    %c0_i32_1 = arith.constant 0 : i32
    return %c0_i32, %c0_i32_0 : i32, i32
  }
  func.func @transform_4(%arg0: i32, %arg1: i32) -> (i32, i32) {
    %c0_i32 = arith.constant 0 : i32
    %c0_i32_0 = arith.constant 0 : i32
    %c0_i32_1 = arith.constant 0 : i32
    return %c0_i32, %c0_i32_0 : i32, i32
  }
  func.func @transform_5(%arg0: i32, %arg1: i32) -> (i32, i32) {
    %c0_i32 = arith.constant 0 : i32
    %c0_i32_0 = arith.constant 0 : i32
    %c0_i32_1 = arith.constant 0 : i32
    return %c0_i32, %c0_i32_0 : i32, i32
  }
  func.func @transform_6(%arg0: i32, %arg1: i32) -> (i32, i32) {
    %c0_i32 = arith.constant 0 : i32
    %c0_i32_0 = arith.constant 0 : i32
    %c0_i32_1 = arith.constant 0 : i32
    return %c0_i32, %c0_i32_0 : i32, i32
  }
  func.func @transform_7(%arg0: i32, %arg1: i32) -> (i32, i32) {
    %c0_i32 = arith.constant 0 : i32
    %c0_i32_0 = arith.constant 0 : i32
    %c0_i32_1 = arith.constant 0 : i32
    return %c0_i32, %c0_i32_0 : i32, i32
  }
  func.func @transform_8(%arg0: i32, %arg1: i32) -> (i32, i32) {
    %c0_i32 = arith.constant 0 : i32
    %c0_i32_0 = arith.constant 0 : i32
    %c0_i32_1 = arith.constant 0 : i32
    return %c0_i32, %c0_i32_0 : i32, i32
  }
  func.func @transform_9(%arg0: i32, %arg1: i32) -> (i32, i32) {
    %c0_i32 = arith.constant 0 : i32
    %c0_i32_0 = arith.constant 0 : i32
    %c0_i32_1 = arith.constant 0 : i32
    return %c0_i32, %c0_i32_0 : i32, i32
  }
  func.func @transform_10(%arg0: i32, %arg1: i32) -> (i32, i32) {
    %c0_i32 = arith.constant 0 : i32
    %c0_i32_0 = arith.constant 0 : i32
    %c0_i32_1 = arith.constant 0 : i32
    return %c0_i32, %c0_i32_0 : i32, i32
  }
  func.func @transform_11(%arg0: i32, %arg1: i32) -> (i32, i32) {
    %c0_i32 = arith.constant 0 : i32
    %c0_i32_0 = arith.constant 0 : i32
    %c0_i32_1 = arith.constant 0 : i32
    return %c0_i32, %c0_i32_0 : i32, i32
  }
  func.func @transform_12(%arg0: i32, %arg1: i32) -> (i32, i32) {
    %c0_i32 = arith.constant 0 : i32
    %c0_i32_0 = arith.constant 0 : i32
    %c0_i32_1 = arith.constant 0 : i32
    return %c0_i32, %c0_i32_0 : i32, i32
  }
  func.func @transform_13(%arg0: i32, %arg1: i32) -> (i32, i32) {
    %c0_i32 = arith.constant 0 : i32
    %c0_i32_0 = arith.constant 0 : i32
    %c0_i32_1 = arith.constant 0 : i32
    return %c0_i32, %c0_i32_0 : i32, i32
  }
  func.func @transform_14(%arg0: i32, %arg1: i32) -> (i32, i32) {
    %c0_i32 = arith.constant 0 : i32
    %c0_i32_0 = arith.constant 0 : i32
    %c0_i32_1 = arith.constant 0 : i32
    return %c0_i32, %c0_i32_0 : i32, i32
  }
  func.func @transform_15(%arg0: i32, %arg1: i32) -> (i32, i32) {
    %c0_i32 = arith.constant 0 : i32
    %c0_i32_0 = arith.constant 0 : i32
    %c0_i32_1 = arith.constant 0 : i32
    return %c0_i32, %c0_i32_0 : i32, i32
  }
  func.func @transform_16(%arg0: i32, %arg1: i32) -> (i32, i32) {
    %c0_i32 = arith.constant 0 : i32
    %c0_i32_0 = arith.constant 0 : i32
    %c0_i32_1 = arith.constant 0 : i32
    return %c0_i32, %c0_i32_0 : i32, i32
  }
  func.func @transform_17(%arg0: i32, %arg1: i32) -> (i32, i32) {
    %c0_i32 = arith.constant 0 : i32
    %c0_i32_0 = arith.constant 0 : i32
    %c0_i32_1 = arith.constant 0 : i32
    return %c0_i32, %c0_i32_0 : i32, i32
  }
  func.func @transform_18(%arg0: i32, %arg1: i32) -> (i32, i32, i32) {
    %c0_i32 = arith.constant 0 : i32
    %c0_i32_0 = arith.constant 0 : i32
    return %arg0, %arg1, %c0_i32 : i32, i32, i32
  }
}

module attributes {stable_mosaic.version = 11 : i64} {
  func.func @encoder_layer_kernel(%arg0: i32, %arg1: i32, %arg2: memref<1x8x32xf32, #tpu.memory_space<vmem>>, %arg3: memref<1x8x32xf32, #tpu.memory_space<vmem>>, %arg4: memref<32x32xbf16, #tpu.memory_space<vmem>>, %arg5: memref<1x32xf32, #tpu.memory_space<vmem>>, %arg6: memref<32x32xbf16, #tpu.memory_space<vmem>>, %arg7: memref<1x32xf32, #tpu.memory_space<vmem>>, %arg8: memref<32x32xbf16, #tpu.memory_space<vmem>>, %arg9: memref<1x32xf32, #tpu.memory_space<vmem>>, %arg10: memref<32x32xbf16, #tpu.memory_space<vmem>>, %arg11: memref<1x32xf32, #tpu.memory_space<vmem>>, %arg12: memref<32x64xbf16, #tpu.memory_space<vmem>>, %arg13: memref<1x64xf32, #tpu.memory_space<vmem>>, %arg14: memref<64x32xbf16, #tpu.memory_space<vmem>>, %arg15: memref<1x32xf32, #tpu.memory_space<vmem>>, %arg16: memref<1x32xf32, #tpu.memory_space<vmem>>, %arg17: memref<1x32xf32, #tpu.memory_space<vmem>>, %arg18: memref<1x32xf32, #tpu.memory_space<vmem>>, %arg19: memref<1x32xf32, #tpu.memory_space<vmem>>, %arg20: memref<1x8x32xf32, #tpu.memory_space<vmem>>, %arg21: memref<8x32xbf16, #tpu.memory_space<vmem>>, %arg22: memref<8x32xbf16, #tpu.memory_space<vmem>>) attributes {dimension_semantics = [#tpu.dimension_semantics<parallel>, #tpu.dimension_semantics<arbitrary>], iteration_bounds = array<i64: 2, 1>, scalar_prefetch = 0 : i64, scratch_operands = 2 : i64, tpu.core_type = #tpu.core_type<tc>, window_params = [{transform_indices = @transform_0, window_bounds = array<i64: 1, 8, 32>}, {transform_indices = @transform_1, window_bounds = array<i64: 1, 8, 32>}, {pipeline_mode = #tpu.pipeline_mode<synchronous>, transform_indices = @transform_2, window_bounds = array<i64: 32, 32>}, {pipeline_mode = #tpu.pipeline_mode<synchronous>, transform_indices = @transform_3, window_bounds = array<i64: 1, 32>}, {pipeline_mode = #tpu.pipeline_mode<synchronous>, transform_indices = @transform_4, window_bounds = array<i64: 32, 32>}, {pipeline_mode = #tpu.pipeline_mode<synchronous>, transform_indices = @transform_5, window_bounds = array<i64: 1, 32>}, {pipeline_mode = #tpu.pipeline_mode<synchronous>, transform_indices = @transform_6, window_bounds = array<i64: 32, 32>}, {pipeline_mode = #tpu.pipeline_mode<synchronous>, transform_indices = @transform_7, window_bounds = array<i64: 1, 32>}, {pipeline_mode = #tpu.pipeline_mode<synchronous>, transform_indices = @transform_8, window_bounds = array<i64: 32, 32>}, {pipeline_mode = #tpu.pipeline_mode<synchronous>, transform_indices = @transform_9, window_bounds = array<i64: 1, 32>}, {pipeline_mode = #tpu.pipeline_mode<synchronous>, transform_indices = @transform_10, window_bounds = array<i64: 32, 64>}, {pipeline_mode = #tpu.pipeline_mode<synchronous>, transform_indices = @transform_11, window_bounds = array<i64: 1, 64>}, {pipeline_mode = #tpu.pipeline_mode<synchronous>, transform_indices = @transform_12, window_bounds = array<i64: 64, 32>}, {pipeline_mode = #tpu.pipeline_mode<synchronous>, transform_indices = @transform_13, window_bounds = array<i64: 1, 32>}, {pipeline_mode = #tpu.pipeline_mode<synchronous>, transform_indices = @transform_14, window_bounds = array<i64: 1, 32>}, {pipeline_mode = #tpu.pipeline_mode<synchronous>, transform_indices = @transform_15, window_bounds = array<i64: 1, 32>}, {pipeline_mode = #tpu.pipeline_mode<synchronous>, transform_indices = @transform_16, window_bounds = array<i64: 1, 32>}, {pipeline_mode = #tpu.pipeline_mode<synchronous>, transform_indices = @transform_17, window_bounds = array<i64: 1, 32>}, {transform_indices = @transform_18, window_bounds = array<i64: 1, 8, 32>}]} {
    %c0_i32 = arith.constant 0 : i32
    %0 = arith.cmpi eq, %arg1, %c0_i32 : i32
    %1 = arith.extui %0 : i1 to i32
    %c0_i32_0 = arith.constant 0 : i32
    %2 = arith.cmpi ne, %1, %c0_i32_0 : i32
    scf.if %2 {
      %c0_72 = arith.constant 0 : index
      %c0_73 = arith.constant 0 : index
      %c0_74 = arith.constant 0 : index
      %167 = vector.load %arg2[%c0_72, %c0_73, %c0_74] : memref<1x8x32xf32, #tpu.memory_space<vmem>>, vector<1x8x32xf32>
      %168 = vector.shape_cast %167 : vector<1x8x32xf32> to vector<8x32xf32>
      %169 = arith.truncf %168 : vector<8x32xf32> to vector<8x32xbf16>
      %c0_75 = arith.constant 0 : index
      %c0_76 = arith.constant 0 : index
      %170 = vector.load %arg6[%c0_75, %c0_76] : memref<32x32xbf16, #tpu.memory_space<vmem>>, vector<32x32xbf16>
      %cst_77 = arith.constant dense<0.000000e+00> : vector<8x32xf32>
      %171 = tpu.matmul %169, %170, %cst_77 {dimension_numbers = #tpu.dot_dimension_numbers<[1], [0], [0], [1], [0, 0, 1, 1], [], []>} : vector<8x32xbf16>, vector<32x32xbf16>, vector<8x32xf32> -> vector<8x32xf32>
      %c0_78 = arith.constant 0 : index
      %c0_79 = arith.constant 0 : index
      %172 = vector.load %arg7[%c0_78, %c0_79] : memref<1x32xf32, #tpu.memory_space<vmem>>, vector<1x32xf32>
      %173 = vector.broadcast %172 : vector<1x32xf32> to vector<8x32xf32>
      %174 = arith.addf %171, %173 : vector<8x32xf32>
      %c0_80 = arith.constant 0 : index
      %c0_81 = arith.constant 0 : index
      %175 = vector.load %arg8[%c0_80, %c0_81] : memref<32x32xbf16, #tpu.memory_space<vmem>>, vector<32x32xbf16>
      %cst_82 = arith.constant dense<0.000000e+00> : vector<8x32xf32>
      %176 = tpu.matmul %169, %175, %cst_82 {dimension_numbers = #tpu.dot_dimension_numbers<[1], [0], [0], [1], [0, 0, 1, 1], [], []>} : vector<8x32xbf16>, vector<32x32xbf16>, vector<8x32xf32> -> vector<8x32xf32>
      %c0_83 = arith.constant 0 : index
      %c0_84 = arith.constant 0 : index
      %177 = vector.load %arg9[%c0_83, %c0_84] : memref<1x32xf32, #tpu.memory_space<vmem>>, vector<1x32xf32>
      %178 = vector.broadcast %177 : vector<1x32xf32> to vector<8x32xf32>
      %179 = arith.addf %176, %178 : vector<8x32xf32>
      %180 = arith.truncf %174 : vector<8x32xf32> to vector<8x32xbf16>
      %c0_85 = arith.constant 0 : index
      %c0_86 = arith.constant 0 : index
      %181 = vector.load %arg21[%c0_85, %c0_86] : memref<8x32xbf16, #tpu.memory_space<vmem>>, vector<8x32xbf16>
      tpu.vector_store %arg21[%c0_85, %c0_86], %180 {strides = array<i32>} : memref<8x32xbf16, #tpu.memory_space<vmem>>, vector<8x32xbf16>,
      %182 = arith.truncf %179 : vector<8x32xf32> to vector<8x32xbf16>
      %c0_87 = arith.constant 0 : index
      %c0_88 = arith.constant 0 : index
      %183 = vector.load %arg22[%c0_87, %c0_88] : memref<8x32xbf16, #tpu.memory_space<vmem>>, vector<8x32xbf16>
      tpu.vector_store %arg22[%c0_87, %c0_88], %182 {strides = array<i32>} : memref<8x32xbf16, #tpu.memory_space<vmem>>, vector<8x32xbf16>,
    } else {
    }
    %c0 = arith.constant 0 : index
    %c0_1 = arith.constant 0 : index
    %c0_2 = arith.constant 0 : index
    %3 = vector.load %arg3[%c0, %c0_1, %c0_2] : memref<1x8x32xf32, #tpu.memory_space<vmem>>, vector<1x8x32xf32>
    %4 = vector.shape_cast %3 : vector<1x8x32xf32> to vector<8x32xf32>
    %5 = arith.truncf %4 : vector<8x32xf32> to vector<8x32xbf16>
    %c0_3 = arith.constant 0 : index
    %c0_4 = arith.constant 0 : index
    %6 = vector.load %arg4[%c0_3, %c0_4] : memref<32x32xbf16, #tpu.memory_space<vmem>>, vector<32x32xbf16>
    %cst = arith.constant dense<0.000000e+00> : vector<8x32xf32>
    %7 = tpu.matmul %5, %6, %cst {dimension_numbers = #tpu.dot_dimension_numbers<[1], [0], [0], [1], [0, 0, 1, 1], [], []>} : vector<8x32xbf16>, vector<32x32xbf16>, vector<8x32xf32> -> vector<8x32xf32>
    %c0_5 = arith.constant 0 : index
    %c0_6 = arith.constant 0 : index
    %8 = vector.load %arg5[%c0_5, %c0_6] : memref<1x32xf32, #tpu.memory_space<vmem>>, vector<1x32xf32>
    %9 = vector.broadcast %8 : vector<1x32xf32> to vector<8x32xf32>
    %10 = arith.addf %7, %9 : vector<8x32xf32>
    %cst_7 = arith.constant 0.353553385 : f32
    %11 = vector.broadcast %cst_7 : f32 to vector<8x32xf32>
    %12 = arith.mulf %10, %11 : vector<8x32xf32>
    %13 = arith.truncf %12 : vector<8x32xf32> to vector<8x32xbf16>
    %c0_8 = arith.constant 0 : index
    %c0_9 = arith.constant 0 : index
    %14 = vector.load %arg21[%c0_8, %c0_9] : memref<8x32xbf16, #tpu.memory_space<vmem>>, vector<8x32xbf16>
    %c0_10 = arith.constant 0 : index
    %c0_11 = arith.constant 0 : index
    %15 = vector.load %arg22[%c0_10, %c0_11] : memref<8x32xbf16, #tpu.memory_space<vmem>>, vector<8x32xbf16>
    %cst_12 = arith.constant 0.000000e+00 : f32
    %16 = vector.broadcast %cst_12 : f32 to vector<8x32xf32>
    %17 = vector.extract_strided_slice %13 {offsets = [0, 0], sizes = [8, 8], strides = [1, 1]} : vector<8x32xbf16> to vector<8x8xbf16>
    %18 = vector.extract_strided_slice %14 {offsets = [0, 0], sizes = [8, 8], strides = [1, 1]} : vector<8x32xbf16> to vector<8x8xbf16>
    %19 = vector.extract_strided_slice %15 {offsets = [0, 0], sizes = [8, 8], strides = [1, 1]} : vector<8x32xbf16> to vector<8x8xbf16>
    %cst_13 = arith.constant dense<0.000000e+00> : vector<8x8xf32>
    %20 = tpu.matmul %17, %18, %cst_13 {dimension_numbers = #tpu.dot_dimension_numbers<[1], [1], [0], [0], [0, 0, 1, 0], [], []>} : vector<8x8xbf16>, vector<8x8xbf16>, vector<8x8xf32> -> vector<8x8xf32>
    %cst_14 = arith.constant dense<0xFF800000> : vector<8xf32>
    %21 = vector.multi_reduction <maximumf>, %20, %cst_14 [1] : vector<8x8xf32> to vector<8xf32>
    %22 = vector.shape_cast %21 : vector<8xf32> to vector<8x1xf32>
    %23 = vector.broadcast %22 : vector<8x1xf32> to vector<8x8xf32>
    %24 = arith.subf %20, %23 : vector<8x8xf32>
    %25 = math.exp %24 : vector<8x8xf32>
    %cst_15 = arith.constant dense<0.000000e+00> : vector<8xf32>
    %26 = vector.multi_reduction <add>, %25, %cst_15 [1] : vector<8x8xf32> to vector<8xf32>
    %27 = vector.shape_cast %26 : vector<8xf32> to vector<8x1xf32>
    %28 = tpu.reciprocal %27 {approx = true} : vector<8x1xf32> -> vector<8x1xf32>
    %29 = vector.broadcast %28 : vector<8x1xf32> to vector<8x8xf32>
    %30 = arith.mulf %25, %29 : vector<8x8xf32>
    %31 = arith.truncf %30 : vector<8x8xf32> to vector<8x8xbf16>
    %cst_16 = arith.constant dense<0.000000e+00> : vector<8x8xf32>
    %32 = tpu.matmul %31, %19, %cst_16 {dimension_numbers = #tpu.dot_dimension_numbers<[1], [0], [0], [1], [0, 0, 1, 1], [], []>} : vector<8x8xbf16>, vector<8x8xbf16>, vector<8x8xf32> -> vector<8x8xf32>
    %33 = arith.truncf %32 : vector<8x8xf32> to vector<8x8xbf16>
    %c0_17 = arith.constant 0 : index
    %c0_18 = arith.constant 0 : index
    %34 = vector.load %arg10[%c0_17, %c0_18] : memref<32x32xbf16, #tpu.memory_space<vmem>>, vector<8x32xbf16>
    %cst_19 = arith.constant dense<0.000000e+00> : vector<8x32xf32>
    %35 = tpu.matmul %33, %34, %cst_19 {dimension_numbers = #tpu.dot_dimension_numbers<[1], [0], [0], [1], [0, 0, 1, 1], [], []>} : vector<8x8xbf16>, vector<8x32xbf16>, vector<8x32xf32> -> vector<8x32xf32>
    %36 = arith.addf %16, %35 : vector<8x32xf32>
    %37 = vector.extract_strided_slice %13 {offsets = [0, 8], sizes = [8, 8], strides = [1, 1]} : vector<8x32xbf16> to vector<8x8xbf16>
    %38 = vector.extract_strided_slice %14 {offsets = [0, 8], sizes = [8, 8], strides = [1, 1]} : vector<8x32xbf16> to vector<8x8xbf16>
    %39 = vector.extract_strided_slice %15 {offsets = [0, 8], sizes = [8, 8], strides = [1, 1]} : vector<8x32xbf16> to vector<8x8xbf16>
    %cst_20 = arith.constant dense<0.000000e+00> : vector<8x8xf32>
    %40 = tpu.matmul %37, %38, %cst_20 {dimension_numbers = #tpu.dot_dimension_numbers<[1], [1], [0], [0], [0, 0, 1, 0], [], []>} : vector<8x8xbf16>, vector<8x8xbf16>, vector<8x8xf32> -> vector<8x8xf32>
    %cst_21 = arith.constant dense<0xFF800000> : vector<8xf32>
    %41 = vector.multi_reduction <maximumf>, %40, %cst_21 [1] : vector<8x8xf32> to vector<8xf32>
    %42 = vector.shape_cast %41 : vector<8xf32> to vector<8x1xf32>
    %43 = vector.broadcast %42 : vector<8x1xf32> to vector<8x8xf32>
    %44 = arith.subf %40, %43 : vector<8x8xf32>
    %45 = math.exp %44 : vector<8x8xf32>
    %cst_22 = arith.constant dense<0.000000e+00> : vector<8xf32>
    %46 = vector.multi_reduction <add>, %45, %cst_22 [1] : vector<8x8xf32> to vector<8xf32>
    %47 = vector.shape_cast %46 : vector<8xf32> to vector<8x1xf32>
    %48 = tpu.reciprocal %47 {approx = true} : vector<8x1xf32> -> vector<8x1xf32>
    %49 = vector.broadcast %48 : vector<8x1xf32> to vector<8x8xf32>
    %50 = arith.mulf %45, %49 : vector<8x8xf32>
    %51 = arith.truncf %50 : vector<8x8xf32> to vector<8x8xbf16>
    %cst_23 = arith.constant dense<0.000000e+00> : vector<8x8xf32>
    %52 = tpu.matmul %51, %39, %cst_23 {dimension_numbers = #tpu.dot_dimension_numbers<[1], [0], [0], [1], [0, 0, 1, 1], [], []>} : vector<8x8xbf16>, vector<8x8xbf16>, vector<8x8xf32> -> vector<8x8xf32>
    %53 = arith.truncf %52 : vector<8x8xf32> to vector<8x8xbf16>
    %c8 = arith.constant 8 : index
    %c0_24 = arith.constant 0 : index
    %54 = vector.load %arg10[%c8, %c0_24] : memref<32x32xbf16, #tpu.memory_space<vmem>>, vector<8x32xbf16>
    %cst_25 = arith.constant dense<0.000000e+00> : vector<8x32xf32>
    %55 = tpu.matmul %53, %54, %cst_25 {dimension_numbers = #tpu.dot_dimension_numbers<[1], [0], [0], [1], [0, 0, 1, 1], [], []>} : vector<8x8xbf16>, vector<8x32xbf16>, vector<8x32xf32> -> vector<8x32xf32>
    %56 = arith.addf %36, %55 : vector<8x32xf32>
    %57 = vector.extract_strided_slice %13 {offsets = [0, 16], sizes = [8, 8], strides = [1, 1]} : vector<8x32xbf16> to vector<8x8xbf16>
    %58 = vector.extract_strided_slice %14 {offsets = [0, 16], sizes = [8, 8], strides = [1, 1]} : vector<8x32xbf16> to vector<8x8xbf16>
    %59 = vector.extract_strided_slice %15 {offsets = [0, 16], sizes = [8, 8], strides = [1, 1]} : vector<8x32xbf16> to vector<8x8xbf16>
    %cst_26 = arith.constant dense<0.000000e+00> : vector<8x8xf32>
    %60 = tpu.matmul %57, %58, %cst_26 {dimension_numbers = #tpu.dot_dimension_numbers<[1], [1], [0], [0], [0, 0, 1, 0], [], []>} : vector<8x8xbf16>, vector<8x8xbf16>, vector<8x8xf32> -> vector<8x8xf32>
    %cst_27 = arith.constant dense<0xFF800000> : vector<8xf32>
    %61 = vector.multi_reduction <maximumf>, %60, %cst_27 [1] : vector<8x8xf32> to vector<8xf32>
    %62 = vector.shape_cast %61 : vector<8xf32> to vector<8x1xf32>
    %63 = vector.broadcast %62 : vector<8x1xf32> to vector<8x8xf32>
    %64 = arith.subf %60, %63 : vector<8x8xf32>
    %65 = math.exp %64 : vector<8x8xf32>
    %cst_28 = arith.constant dense<0.000000e+00> : vector<8xf32>
    %66 = vector.multi_reduction <add>, %65, %cst_28 [1] : vector<8x8xf32> to vector<8xf32>
    %67 = vector.shape_cast %66 : vector<8xf32> to vector<8x1xf32>
    %68 = tpu.reciprocal %67 {approx = true} : vector<8x1xf32> -> vector<8x1xf32>
    %69 = vector.broadcast %68 : vector<8x1xf32> to vector<8x8xf32>
    %70 = arith.mulf %65, %69 : vector<8x8xf32>
    %71 = arith.truncf %70 : vector<8x8xf32> to vector<8x8xbf16>
    %cst_29 = arith.constant dense<0.000000e+00> : vector<8x8xf32>
    %72 = tpu.matmul %71, %59, %cst_29 {dimension_numbers = #tpu.dot_dimension_numbers<[1], [0], [0], [1], [0, 0, 1, 1], [], []>} : vector<8x8xbf16>, vector<8x8xbf16>, vector<8x8xf32> -> vector<8x8xf32>
    %73 = arith.truncf %72 : vector<8x8xf32> to vector<8x8xbf16>
    %c16 = arith.constant 16 : index
    %c0_30 = arith.constant 0 : index
    %74 = vector.load %arg10[%c16, %c0_30] : memref<32x32xbf16, #tpu.memory_space<vmem>>, vector<8x32xbf16>
    %cst_31 = arith.constant dense<0.000000e+00> : vector<8x32xf32>
    %75 = tpu.matmul %73, %74, %cst_31 {dimension_numbers = #tpu.dot_dimension_numbers<[1], [0], [0], [1], [0, 0, 1, 1], [], []>} : vector<8x8xbf16>, vector<8x32xbf16>, vector<8x32xf32> -> vector<8x32xf32>
    %76 = arith.addf %56, %75 : vector<8x32xf32>
    %77 = vector.extract_strided_slice %13 {offsets = [0, 24], sizes = [8, 8], strides = [1, 1]} : vector<8x32xbf16> to vector<8x8xbf16>
    %78 = vector.extract_strided_slice %14 {offsets = [0, 24], sizes = [8, 8], strides = [1, 1]} : vector<8x32xbf16> to vector<8x8xbf16>
    %79 = vector.extract_strided_slice %15 {offsets = [0, 24], sizes = [8, 8], strides = [1, 1]} : vector<8x32xbf16> to vector<8x8xbf16>
    %cst_32 = arith.constant dense<0.000000e+00> : vector<8x8xf32>
    %80 = tpu.matmul %77, %78, %cst_32 {dimension_numbers = #tpu.dot_dimension_numbers<[1], [1], [0], [0], [0, 0, 1, 0], [], []>} : vector<8x8xbf16>, vector<8x8xbf16>, vector<8x8xf32> -> vector<8x8xf32>
    %cst_33 = arith.constant dense<0xFF800000> : vector<8xf32>
    %81 = vector.multi_reduction <maximumf>, %80, %cst_33 [1] : vector<8x8xf32> to vector<8xf32>
    %82 = vector.shape_cast %81 : vector<8xf32> to vector<8x1xf32>
    %83 = vector.broadcast %82 : vector<8x1xf32> to vector<8x8xf32>
    %84 = arith.subf %80, %83 : vector<8x8xf32>
    %85 = math.exp %84 : vector<8x8xf32>
    %cst_34 = arith.constant dense<0.000000e+00> : vector<8xf32>
    %86 = vector.multi_reduction <add>, %85, %cst_34 [1] : vector<8x8xf32> to vector<8xf32>
    %87 = vector.shape_cast %86 : vector<8xf32> to vector<8x1xf32>
    %88 = tpu.reciprocal %87 {approx = true} : vector<8x1xf32> -> vector<8x1xf32>
    %89 = vector.broadcast %88 : vector<8x1xf32> to vector<8x8xf32>
    %90 = arith.mulf %85, %89 : vector<8x8xf32>
    %91 = arith.truncf %90 : vector<8x8xf32> to vector<8x8xbf16>
    %cst_35 = arith.constant dense<0.000000e+00> : vector<8x8xf32>
    %92 = tpu.matmul %91, %79, %cst_35 {dimension_numbers = #tpu.dot_dimension_numbers<[1], [0], [0], [1], [0, 0, 1, 1], [], []>} : vector<8x8xbf16>, vector<8x8xbf16>, vector<8x8xf32> -> vector<8x8xf32>
    %93 = arith.truncf %92 : vector<8x8xf32> to vector<8x8xbf16>
    %c24 = arith.constant 24 : index
    %c0_36 = arith.constant 0 : index
    %94 = vector.load %arg10[%c24, %c0_36] : memref<32x32xbf16, #tpu.memory_space<vmem>>, vector<8x32xbf16>
    %cst_37 = arith.constant dense<0.000000e+00> : vector<8x32xf32>
    %95 = tpu.matmul %93, %94, %cst_37 {dimension_numbers = #tpu.dot_dimension_numbers<[1], [0], [0], [1], [0, 0, 1, 1], [], []>} : vector<8x8xbf16>, vector<8x32xbf16>, vector<8x32xf32> -> vector<8x32xf32>
    %96 = arith.addf %76, %95 : vector<8x32xf32>
    %c0_38 = arith.constant 0 : index
    %c0_39 = arith.constant 0 : index
    %97 = vector.load %arg11[%c0_38, %c0_39] : memref<1x32xf32, #tpu.memory_space<vmem>>, vector<1x32xf32>
    %98 = vector.broadcast %97 : vector<1x32xf32> to vector<8x32xf32>
    %99 = arith.addf %96, %98 : vector<8x32xf32>
    %100 = arith.addf %4, %99 : vector<8x32xf32>
    %c0_40 = arith.constant 0 : index
    %c0_41 = arith.constant 0 : index
    %101 = vector.load %arg16[%c0_40, %c0_41] : memref<1x32xf32, #tpu.memory_space<vmem>>, vector<1x32xf32>
    %c0_42 = arith.constant 0 : index
    %c0_43 = arith.constant 0 : index
    %102 = vector.load %arg17[%c0_42, %c0_43] : memref<1x32xf32, #tpu.memory_space<vmem>>, vector<1x32xf32>
    %cst_44 = arith.constant dense<0.000000e+00> : vector<8xf32>
    %103 = vector.multi_reduction <add>, %100, %cst_44 [1] : vector<8x32xf32> to vector<8xf32>
    %104 = vector.shape_cast %103 : vector<8xf32> to vector<8x1xf32>
    %cst_45 = arith.constant 3.200000e+01 : f32
    %105 = vector.broadcast %cst_45 : f32 to vector<8x1xf32>
    %106 = arith.divf %104, %105 : vector<8x1xf32>
    %107 = vector.broadcast %106 : vector<8x1xf32> to vector<8x32xf32>
    %108 = arith.subf %100, %107 : vector<8x32xf32>
    %109 = arith.mulf %108, %108 : vector<8x32xf32>
    %cst_46 = arith.constant dense<0.000000e+00> : vector<8xf32>
    %110 = vector.multi_reduction <add>, %109, %cst_46 [1] : vector<8x32xf32> to vector<8xf32>
    %111 = vector.shape_cast %110 : vector<8xf32> to vector<8x1xf32>
    %cst_47 = arith.constant 3.200000e+01 : f32
    %112 = vector.broadcast %cst_47 : f32 to vector<8x1xf32>
    %113 = arith.divf %111, %112 : vector<8x1xf32>
    %114 = vector.broadcast %106 : vector<8x1xf32> to vector<8x32xf32>
    %115 = arith.subf %100, %114 : vector<8x32xf32>
    %cst_48 = arith.constant 9.99999974E-6 : f32
    %116 = vector.broadcast %cst_48 : f32 to vector<8x1xf32>
    %117 = arith.addf %113, %116 : vector<8x1xf32>
    %118 = math.rsqrt %117 : vector<8x1xf32>
    %119 = vector.broadcast %118 : vector<8x1xf32> to vector<8x32xf32>
    %120 = arith.mulf %115, %119 : vector<8x32xf32>
    %121 = vector.broadcast %101 : vector<1x32xf32> to vector<8x32xf32>
    %122 = arith.mulf %120, %121 : vector<8x32xf32>
    %123 = vector.broadcast %102 : vector<1x32xf32> to vector<8x32xf32>
    %124 = arith.addf %122, %123 : vector<8x32xf32>
    %125 = arith.truncf %124 : vector<8x32xf32> to vector<8x32xbf16>
    %c0_49 = arith.constant 0 : index
    %c0_50 = arith.constant 0 : index
    %126 = vector.load %arg12[%c0_49, %c0_50] : memref<32x64xbf16, #tpu.memory_space<vmem>>, vector<32x64xbf16>
    %cst_51 = arith.constant dense<0.000000e+00> : vector<8x64xf32>
    %127 = tpu.matmul %125, %126, %cst_51 {dimension_numbers = #tpu.dot_dimension_numbers<[1], [0], [0], [1], [0, 0, 1, 1], [], []>} : vector<8x32xbf16>, vector<32x64xbf16>, vector<8x64xf32> -> vector<8x64xf32>
    %c0_52 = arith.constant 0 : index
    %c0_53 = arith.constant 0 : index
    %128 = vector.load %arg13[%c0_52, %c0_53] : memref<1x64xf32, #tpu.memory_space<vmem>>, vector<1x64xf32>
    %129 = vector.broadcast %128 : vector<1x64xf32> to vector<8x64xf32>
    %130 = arith.addf %127, %129 : vector<8x64xf32>
    %cst_54 = arith.constant 0.000000e+00 : f32
    %131 = vector.broadcast %cst_54 : f32 to vector<8x64xf32>
    %132 = arith.maximumf %130, %131 : vector<8x64xf32>
    %133 = arith.truncf %132 : vector<8x64xf32> to vector<8x64xbf16>
    %c0_55 = arith.constant 0 : index
    %c0_56 = arith.constant 0 : index
    %134 = vector.load %arg14[%c0_55, %c0_56] : memref<64x32xbf16, #tpu.memory_space<vmem>>, vector<64x32xbf16>
    %cst_57 = arith.constant dense<0.000000e+00> : vector<8x32xf32>
    %135 = tpu.matmul %133, %134, %cst_57 {dimension_numbers = #tpu.dot_dimension_numbers<[1], [0], [0], [1], [0, 0, 1, 1], [], []>} : vector<8x64xbf16>, vector<64x32xbf16>, vector<8x32xf32> -> vector<8x32xf32>
    %c0_58 = arith.constant 0 : index
    %c0_59 = arith.constant 0 : index
    %136 = vector.load %arg15[%c0_58, %c0_59] : memref<1x32xf32, #tpu.memory_space<vmem>>, vector<1x32xf32>
    %137 = vector.broadcast %136 : vector<1x32xf32> to vector<8x32xf32>
    %138 = arith.addf %135, %137 : vector<8x32xf32>
    %139 = arith.addf %124, %138 : vector<8x32xf32>
    %c0_60 = arith.constant 0 : index
    %c0_61 = arith.constant 0 : index
    %140 = vector.load %arg18[%c0_60, %c0_61] : memref<1x32xf32, #tpu.memory_space<vmem>>, vector<1x32xf32>
    %c0_62 = arith.constant 0 : index
    %c0_63 = arith.constant 0 : index
    %141 = vector.load %arg19[%c0_62, %c0_63] : memref<1x32xf32, #tpu.memory_space<vmem>>, vector<1x32xf32>
    %cst_64 = arith.constant dense<0.000000e+00> : vector<8xf32>
    %142 = vector.multi_reduction <add>, %139, %cst_64 [1] : vector<8x32xf32> to vector<8xf32>
    %143 = vector.shape_cast %142 : vector<8xf32> to vector<8x1xf32>
    %cst_65 = arith.constant 3.200000e+01 : f32
    %144 = vector.broadcast %cst_65 : f32 to vector<8x1xf32>
    %145 = arith.divf %143, %144 : vector<8x1xf32>
    %146 = vector.broadcast %145 : vector<8x1xf32> to vector<8x32xf32>
    %147 = arith.subf %139, %146 : vector<8x32xf32>
    %148 = arith.mulf %147, %147 : vector<8x32xf32>
    %cst_66 = arith.constant dense<0.000000e+00> : vector<8xf32>
    %149 = vector.multi_reduction <add>, %148, %cst_66 [1] : vector<8x32xf32> to vector<8xf32>
    %150 = vector.shape_cast %149 : vector<8xf32> to vector<8x1xf32>
    %cst_67 = arith.constant 3.200000e+01 : f32
    %151 = vector.broadcast %cst_67 : f32 to vector<8x1xf32>
    %152 = arith.divf %150, %151 : vector<8x1xf32>
    %153 = vector.broadcast %145 : vector<8x1xf32> to vector<8x32xf32>
    %154 = arith.subf %139, %153 : vector<8x32xf32>
    %cst_68 = arith.constant 9.99999974E-6 : f32
    %155 = vector.broadcast %cst_68 : f32 to vector<8x1xf32>
    %156 = arith.addf %152, %155 : vector<8x1xf32>
    %157 = math.rsqrt %156 : vector<8x1xf32>
    %158 = vector.broadcast %157 : vector<8x1xf32> to vector<8x32xf32>
    %159 = arith.mulf %154, %158 : vector<8x32xf32>
    %160 = vector.broadcast %140 : vector<1x32xf32> to vector<8x32xf32>
    %161 = arith.mulf %159, %160 : vector<8x32xf32>
    %162 = vector.broadcast %141 : vector<1x32xf32> to vector<8x32xf32>
    %163 = arith.addf %161, %162 : vector<8x32xf32>
    %c0_69 = arith.constant 0 : index
    %c0_70 = arith.constant 0 : index
    %c0_71 = arith.constant 0 : index
    %164 = vector.load %arg20[%c0_69, %c0_70, %c0_71] : memref<1x8x32xf32, #tpu.memory_space<vmem>>, vector<1x8x32xf32>
    %165 = vector.shape_cast %164 : vector<1x8x32xf32> to vector<8x32xf32>
    %166 = vector.shape_cast %163 : vector<8x32xf32> to vector<1x8x32xf32>
    tpu.vector_store %arg20[%c0_69, %c0_70, %c0_71], %166 {strides = array<i32>} : memref<1x8x32xf32, #tpu.memory_space<vmem>>, vector<1x8x32xf32>,
    return
  }
  func.func @transform_0(%arg0: i32, %arg1: i32) -> (i32, i32, i32) {
    %c0_i32 = arith.constant 0 : i32
    %c0_i32_0 = arith.constant 0 : i32
    %c0_i32_1 = arith.constant 0 : i32
    return %arg0, %c0_i32, %c0_i32_0 : i32, i32, i32
  }
  func.func @transform_1(%arg0: i32, %arg1: i32) -> (i32, i32, i32) {
    %c0_i32 = arith.constant 0 : i32
    %c0_i32_0 = arith.constant 0 : i32
    return %arg0, %arg1, %c0_i32 : i32, i32, i32
  }
  func.func @transform_2(%arg0: i32, %arg1: i32) -> (i32, i32) {
    %c0_i32 = arith.constant 0 : i32
    %c0_i32_0 = arith.constant 0 : i32
    %c0_i32_1 = arith.constant 0 : i32
    return %c0_i32, %c0_i32_0 : i32, i32
  }
  func.func @transform_3(%arg0: i32, %arg1: i32) -> (i32, i32) {
    %c0_i32 = arith.constant 0 : i32
    %c0_i32_0 = arith.constant 0 : i32
    %c0_i32_1 = arith.constant 0 : i32
    return %c0_i32, %c0_i32_0 : i32, i32
  }
  func.func @transform_4(%arg0: i32, %arg1: i32) -> (i32, i32) {
    %c0_i32 = arith.constant 0 : i32
    %c0_i32_0 = arith.constant 0 : i32
    %c0_i32_1 = arith.constant 0 : i32
    return %c0_i32, %c0_i32_0 : i32, i32
  }
  func.func @transform_5(%arg0: i32, %arg1: i32) -> (i32, i32) {
    %c0_i32 = arith.constant 0 : i32
    %c0_i32_0 = arith.constant 0 : i32
    %c0_i32_1 = arith.constant 0 : i32
    return %c0_i32, %c0_i32_0 : i32, i32
  }
  func.func @transform_6(%arg0: i32, %arg1: i32) -> (i32, i32) {
    %c0_i32 = arith.constant 0 : i32
    %c0_i32_0 = arith.constant 0 : i32
    %c0_i32_1 = arith.constant 0 : i32
    return %c0_i32, %c0_i32_0 : i32, i32
  }
  func.func @transform_7(%arg0: i32, %arg1: i32) -> (i32, i32) {
    %c0_i32 = arith.constant 0 : i32
    %c0_i32_0 = arith.constant 0 : i32
    %c0_i32_1 = arith.constant 0 : i32
    return %c0_i32, %c0_i32_0 : i32, i32
  }
  func.func @transform_8(%arg0: i32, %arg1: i32) -> (i32, i32) {
    %c0_i32 = arith.constant 0 : i32
    %c0_i32_0 = arith.constant 0 : i32
    %c0_i32_1 = arith.constant 0 : i32
    return %c0_i32, %c0_i32_0 : i32, i32
  }
  func.func @transform_9(%arg0: i32, %arg1: i32) -> (i32, i32) {
    %c0_i32 = arith.constant 0 : i32
    %c0_i32_0 = arith.constant 0 : i32
    %c0_i32_1 = arith.constant 0 : i32
    return %c0_i32, %c0_i32_0 : i32, i32
  }
  func.func @transform_10(%arg0: i32, %arg1: i32) -> (i32, i32) {
    %c0_i32 = arith.constant 0 : i32
    %c0_i32_0 = arith.constant 0 : i32
    %c0_i32_1 = arith.constant 0 : i32
    return %c0_i32, %c0_i32_0 : i32, i32
  }
  func.func @transform_11(%arg0: i32, %arg1: i32) -> (i32, i32) {
    %c0_i32 = arith.constant 0 : i32
    %c0_i32_0 = arith.constant 0 : i32
    %c0_i32_1 = arith.constant 0 : i32
    return %c0_i32, %c0_i32_0 : i32, i32
  }
  func.func @transform_12(%arg0: i32, %arg1: i32) -> (i32, i32) {
    %c0_i32 = arith.constant 0 : i32
    %c0_i32_0 = arith.constant 0 : i32
    %c0_i32_1 = arith.constant 0 : i32
    return %c0_i32, %c0_i32_0 : i32, i32
  }
  func.func @transform_13(%arg0: i32, %arg1: i32) -> (i32, i32) {
    %c0_i32 = arith.constant 0 : i32
    %c0_i32_0 = arith.constant 0 : i32
    %c0_i32_1 = arith.constant 0 : i32
    return %c0_i32, %c0_i32_0 : i32, i32
  }
  func.func @transform_14(%arg0: i32, %arg1: i32) -> (i32, i32) {
    %c0_i32 = arith.constant 0 : i32
    %c0_i32_0 = arith.constant 0 : i32
    %c0_i32_1 = arith.constant 0 : i32
    return %c0_i32, %c0_i32_0 : i32, i32
  }
  func.func @transform_15(%arg0: i32, %arg1: i32) -> (i32, i32) {
    %c0_i32 = arith.constant 0 : i32
    %c0_i32_0 = arith.constant 0 : i32
    %c0_i32_1 = arith.constant 0 : i32
    return %c0_i32, %c0_i32_0 : i32, i32
  }
  func.func @transform_16(%arg0: i32, %arg1: i32) -> (i32, i32) {
    %c0_i32 = arith.constant 0 : i32
    %c0_i32_0 = arith.constant 0 : i32
    %c0_i32_1 = arith.constant 0 : i32
    return %c0_i32, %c0_i32_0 : i32, i32
  }
  func.func @transform_17(%arg0: i32, %arg1: i32) -> (i32, i32) {
    %c0_i32 = arith.constant 0 : i32
    %c0_i32_0 = arith.constant 0 : i32
    %c0_i32_1 = arith.constant 0 : i32
    return %c0_i32, %c0_i32_0 : i32, i32
  }
  func.func @transform_18(%arg0: i32, %arg1: i32) -> (i32, i32, i32) {
    %c0_i32 = arith.constant 0 : i32
    %c0_i32_0 = arith.constant 0 : i32
    return %arg0, %arg1, %c0_i32 : i32, i32, i32
  }
}

</mosaic_0001>

<llo_original>
// kernel: tpu_custom_call.1
$region0: #{tpu_custom_call.1}
  #allocation0 [shape = 'u32[]', space=smem, size = 0x4, offset = 0x4, fixed_abs, tag = 'smem constant byte address 0x4 - core index']
  #allocation1 [shape = 'u32[144,128]{1,0:T(1,128)}', space=vmem, size = 0x12000, scoped, tag = 'internal scratch']
  #allocation2 [shape = 'bf16[8,32]{1,0:T(8,128)(2,1)}', space=vmem, size = 0x800, scoped, tag = 'scratch operand']
  #allocation3 [shape = 'bf16[8,32]{1,0:T(8,128)(2,1)}', space=vmem, size = 0x800, scoped, tag = 'scratch operand']
  %s0 = inlined_call_operand.vmem [shape: f32[2,8,32], index: 0, kind: input, shape index: {}]
  %s1 = inlined_call_operand.vmem [shape: f32[2,8,32], index: 1, kind: input, shape index: {}]
  %s2 = inlined_call_operand.vmem [shape: bf16[32,32], index: 2, kind: input, shape index: {}]
  %s3 = inlined_call_operand.hbm [shape: f32[1,32], index: 3, kind: input, shape index: {}]
  %s4 = inlined_call_operand.hbm [shape: bf16[32,32], index: 4, kind: input, shape index: {}]
  %s5 = inlined_call_operand.hbm [shape: f32[1,32], index: 5, kind: input, shape index: {}]
  %s6 = inlined_call_operand.hbm [shape: bf16[32,32], index: 6, kind: input, shape index: {}]
  %s7 = inlined_call_operand.hbm [shape: f32[1,32], index: 7, kind: input, shape index: {}]
  %s8 = inlined_call_operand.hbm [shape: bf16[32,32], index: 8, kind: input, shape index: {}]
  %s9 = inlined_call_operand.hbm [shape: f32[1,32], index: 9, kind: input, shape index: {}]
  %s10 = inlined_call_operand.vmem [shape: bf16[32,64], index: 10, kind: input, shape index: {}]
  %s11 = inlined_call_operand.vmem [shape: f32[1,64], index: 11, kind: input, shape index: {}]
  %s12 = inlined_call_operand.vmem [shape: bf16[64,32], index: 12, kind: input, shape index: {}]
  %s13 = inlined_call_operand.vmem [shape: f32[1,32], index: 13, kind: input, shape index: {}]
  %s14 = inlined_call_operand.vmem [shape: f32[1,32], index: 14, kind: input, shape index: {}]
  %s15 = inlined_call_operand.vmem [shape: f32[1,32], index: 15, kind: input, shape index: {}]
  %s16 = inlined_call_operand.vmem [shape: f32[1,32], index: 16, kind: input, shape index: {}]
  %s17 = inlined_call_operand.vmem [shape: f32[1,32], index: 17, kind: input, shape index: {}]
  %s18 = inlined_call_operand.hbm [shape: f32[2,8,32], index: 18, kind: output, shape index: {}]
  %s19 = sld [smem:[#allocation0]]
  $region137: #{tpu_custom_call.1} parent=0
    _
  %s21 = ssub.s32 1, %s19
  %s22 = scalar_select 0, %s21, %s19
  $region1: #{tpu_custom_call.1} parent=0
    #allocation4 [shape = 'u8[512]{0}', space=vmem, size = 0x400, scoped, tag = 'input window, operand 3, single buffered']
    #allocation5 [shape = 's32[2]{0}', space=sflag, size = 0x8, scoped, tag = 'scoped memory for tpu_custom_call.1']
    #allocation6 [shape = 's32[2]{0}', space=sflag, size = 0x8, scoped, tag = 'scoped memory for tpu_custom_call.1']
    #allocation7 [shape = 'u8[8192]{0}', space=vmem, size = 0x2000, scoped, tag = 'input window, operand 4, single buffered']
    #allocation8 [shape = 's32[1]{0}', space=sflag, size = 0x4, scoped, tag = 'scoped memory for tpu_custom_call.1']
    #allocation9 [shape = 'u8[512]{0}', space=vmem, size = 0x400, scoped, tag = 'input window, operand 5, single buffered']
    #allocation10 [shape = 'u8[8192]{0}', space=vmem, size = 0x2000, scoped, tag = 'input window, operand 6, single buffered']
    #allocation11 [shape = 's32[1]{0}', space=sflag, size = 0x4, scoped, tag = 'scoped memory for tpu_custom_call.1']
    #allocation12 [shape = 'u8[512]{0}', space=vmem, size = 0x400, scoped, tag = 'input window, operand 7, single buffered']
    #allocation13 [shape = 'u8[8192]{0}', space=vmem, size = 0x2000, scoped, tag = 'input window, operand 8, single buffered']
    #allocation14 [shape = 's32[1]{0}', space=sflag, size = 0x4, scoped, tag = 'scoped memory for tpu_custom_call.1']
    #allocation15 [shape = 'u8[512]{0}', space=vmem, size = 0x400, scoped, tag = 'input window, operand 9, single buffered']
    #allocation16 [shape = 'u8[8192]{0}', space=vmem, size = 0x2000, scoped, tag = 'output window, operand 0']
    %23 = vsyncpa [#allocation5], 0
    %24 = vsyncpa [#allocation8], 0
    %25 = vsyncpa [#allocation11], 0
    %26 = vsyncpa [#allocation14], 0
    %27 = vsyncpa [#allocation6], 0
    %s28 = scalar_lea.sflag [#allocation6], 1
    %29 = vsyncpa %s28, 0
    loop: start=0, step=1, limit=4
    $region2: #{tpu_custom_call.1} parent=1 // loop_pre_header
      _
    $region3: #{tpu_custom_call.1} parent=1 // loop_header
      %s31 = sphi 0, %s35
      %p32 = scmp.ge.s32.totalorder %s31, 4
      %s38 = sphi 0, %s50
      %s39 = sphi 0, %s46
      %s40 = sphi 0, %s38
      %s41 = sphi 0, %s39
      %s42 = sphi 0, %s40
      %s43 = sphi 0, %s41
      %s53 = sphi 0, %s55
      %s56 = sphi 0, %s53
      %s57 = sphi 0, %s56
      %s73 = sphi 0, %s57
      %s81 = sphi 0, %s83
      %s84 = sphi 0, %s81
      %s85 = sphi 0, %s84
      %s101 = sphi 0, %s85
      %s105 = sphi 0, %s105
      %s107 = sphi 0, %s105
      %s108 = sphi 0, %s107
      %s122 = sphi 0, %s108
      %s126 = sphi 0, %s126
      %s128 = sphi 0, %s126
      %s129 = sphi 0, %s128
      %s143 = sphi 0, %s129
      %s147 = sphi 0, %s147
      %s149 = sphi 0, %s147
      %s150 = sphi 0, %s149
      %s164 = sphi 0, %s150
      %s168 = sphi 0, %s168
      %s170 = sphi 0, %s168
      %s171 = sphi 0, %s170
      %s185 = sphi 0, %s171
      %s189 = sphi 0, %s189
      %s191 = sphi 0, %s189
      %s192 = sphi 0, %s191
      %s206 = sphi 0, %s192
      %s210 = sphi 0, %s210
      %s212 = sphi 0, %s210
      %s213 = sphi 0, %s212
      %s227 = sphi 0, %s213
      %s231 = sphi 0, %s231
      %s233 = sphi 0, %s231
      %s234 = sphi 0, %s233
      %s248 = sphi 0, %s234
      %s252 = sphi 0, %s252
      %s254 = sphi 0, %s252
      %s255 = sphi 0, %s254
      %s269 = sphi 0, %s255
      %s273 = sphi 0, %s273
      %s275 = sphi 0, %s273
      %s276 = sphi 0, %s275
      %s290 = sphi 0, %s276
      %s294 = sphi 0, %s294
      %s296 = sphi 0, %s294
      %s297 = sphi 0, %s296
      %s311 = sphi 0, %s297
      %s315 = sphi 0, %s315
      %s317 = sphi 0, %s315
      %s318 = sphi 0, %s317
      %s332 = sphi 0, %s318
      %s336 = sphi 0, %s336
      %s338 = sphi 0, %s336
      %s339 = sphi 0, %s338
      %s353 = sphi 0, %s339
      %s357 = sphi 0, %s357
      %s359 = sphi 0, %s357
      %s360 = sphi 0, %s359
      %s374 = sphi 0, %s360
      %s378 = sphi 0, %s378
      %s380 = sphi 0, %s378
      %s381 = sphi 0, %s380
      %s395 = sphi 0, %s381
      %s399 = sphi 0, %s399
      %s401 = sphi 0, %s399
      %s402 = sphi 0, %s401
      %s416 = sphi 0, %s402
      %s420 = sphi 0, %s420
      %s422 = sphi 0, %s420
      %s423 = sphi 0, %s422
      %s437 = sphi 0, %s423
      %s445 = sphi 0, %s447
      %s448 = sphi 0, %s445
      %s449 = sphi 0, %s448
      %s465 = sphi 0, %s449
    $region4: #{tpu_custom_call.1} parent=1 // loop_header_branch
      %34 = sbr.rel (%p32) target = $region8
    $region5: #{tpu_custom_call.1} parent=1 // loop_body
      %s36 = ssub.s32 %s31, 1
      %s37 = ssub.s32 %s31, 2
      %s44 = sadd.s32 1, %s39
      %p45 = scmp.ge.s32.totalorder %s44, 1
      %s46 = scalar_select %p45, 0, %s44
      %s47 = sadd.s32 1, %s38
      %s48 = scalar_select %p45, %s47, %s38
      %p49 = scmp.ge.s32.totalorder %s48, 2
      %s50 = scalar_select %p49, 0, %s48
      %s51 = ssub.s32 %s38, %s50
      %p52 = scmp.eq.s32.totalorder %s51, 0
      %s54 = sadd.s32 %s53, 1
      %s55 = scalar_select %p52, %s53, %s54
      %p58 = pneg %p52
      %p59 = scmp.eq.s32.totalorder %s31, 1
      %p60 = por %p58, %p59
      %p61 = scmp.ne.s32.totalorder %s53, %s56
      %p62 = scmp.eq.s32.totalorder %s31, 0
      %p63 = por %p61, %p62
      %p64 = scmp.ne.s32.totalorder %s53, %s56
      %p65 = scmp.eq.s32.totalorder %s36, 1
      %p66 = por %p64, %p65
      %p67 = scmp.ne.s32.totalorder %s56, %s57
      %p68 = scmp.eq.s32.totalorder %s36, 0
      %p69 = por %p67, %p68
      %p70 = scmp.ne.s32.totalorder %s56, %s57
      %p71 = scmp.eq.s32.totalorder %s37, 1
      %p72 = por %p70, %p71
      %p74 = scmp.ne.s32.totalorder %s57, %s73
      %p75 = scmp.eq.s32.totalorder %s37, 0
      %p76 = por %p74, %p75
      %s77 = ssub.s32 %s38, %s50
      %s78 = ssub.s32 %s39, %s46
      %s79 = sor.u32 %s77, %s78
      %p80 = scmp.eq.s32.totalorder %s79, 0
      %s82 = sadd.s32 %s81, 1
      %s83 = scalar_select %p80, %s81, %s82
      %p86 = pneg %p80
      %p87 = scmp.eq.s32.totalorder %s31, 1
      %p88 = por %p86, %p87
      %p89 = scmp.ne.s32.totalorder %s81, %s84
      %p90 = scmp.eq.s32.totalorder %s31, 0
      %p91 = por %p89, %p90
      %p92 = scmp.ne.s32.totalorder %s81, %s84
      %p93 = scmp.eq.s32.totalorder %s36, 1
      %p94 = por %p92, %p93
      %p95 = scmp.ne.s32.totalorder %s84, %s85
      %p96 = scmp.eq.s32.totalorder %s36, 0
      %p97 = por %p95, %p96
      %p98 = scmp.ne.s32.totalorder %s84, %s85
      %p99 = scmp.eq.s32.totalorder %s37, 1
      %p100 = por %p98, %p99
      %p102 = scmp.ne.s32.totalorder %s85, %s101
      %p103 = scmp.eq.s32.totalorder %s37, 0
      %p104 = por %p102, %p103
      %s106 = sadd.s32 %s105, 1
      %p109 = scmp.eq.s32.totalorder %s31, 1
      %p110 = scmp.ne.s32.totalorder %s105, %s107
      %p111 = scmp.eq.s32.totalorder %s31, 0
      %p112 = por %p110, %p111
      %p113 = scmp.ne.s32.totalorder %s105, %s107
      %p114 = scmp.eq.s32.totalorder %s36, 1
      %p115 = por %p113, %p114
      %p116 = scmp.ne.s32.totalorder %s107, %s108
      %p117 = scmp.eq.s32.totalorder %s36, 0
      %p118 = por %p116, %p117
      %p119 = scmp.ne.s32.totalorder %s107, %s108
      %p120 = scmp.eq.s32.totalorder %s37, 1
      %p121 = por %p119, %p120
      %p123 = scmp.ne.s32.totalorder %s108, %s122
      %p124 = scmp.eq.s32.totalorder %s37, 0
      %p125 = por %p123, %p124
      %s127 = sadd.s32 %s126, 1
      %p130 = scmp.eq.s32.totalorder %s31, 1
      %p131 = scmp.ne.s32.totalorder %s126, %s128
      %p132 = scmp.eq.s32.totalorder %s31, 0
      %p133 = por %p131, %p132
      %p134 = scmp.ne.s32.totalorder %s126, %s128
      %p135 = scmp.eq.s32.totalorder %s36, 1
      %p136 = por %p134, %p135
      %p137 = scmp.ne.s32.totalorder %s128, %s129
      %p138 = scmp.eq.s32.totalorder %s36, 0
      %p139 = por %p137, %p138
      %p140 = scmp.ne.s32.totalorder %s128, %s129
      %p141 = scmp.eq.s32.totalorder %s37, 1
      %p142 = por %p140, %p141
      %p144 = scmp.ne.s32.totalorder %s129, %s143
      %p145 = scmp.eq.s32.totalorder %s37, 0
      %p146 = por %p144, %p145
      %s148 = sadd.s32 %s147, 1
      %p151 = scmp.eq.s32.totalorder %s31, 1
      %p152 = scmp.ne.s32.totalorder %s147, %s149
      %p153 = scmp.eq.s32.totalorder %s31, 0
      %p154 = por %p152, %p153
      %p155 = scmp.ne.s32.totalorder %s147, %s149
      %p156 = scmp.eq.s32.totalorder %s36, 1
      %p157 = por %p155, %p156
      %p158 = scmp.ne.s32.totalorder %s149, %s150
      %p159 = scmp.eq.s32.totalorder %s36, 0
      %p160 = por %p158, %p159
      %p161 = scmp.ne.s32.totalorder %s149, %s150
      %p162 = scmp.eq.s32.totalorder %s37, 1
      %p163 = por %p161, %p162
      %p165 = scmp.ne.s32.totalorder %s150, %s164
      %p166 = scmp.eq.s32.totalorder %s37, 0
      %p167 = por %p165, %p166
      %s169 = sadd.s32 %s168, 1
      %p172 = scmp.eq.s32.totalorder %s31, 1
      %p173 = scmp.ne.s32.totalorder %s168, %s170
      %p174 = scmp.eq.s32.totalorder %s31, 0
      %p175 = por %p173, %p174
      %p176 = scmp.ne.s32.totalorder %s168, %s170
      %p177 = scmp.eq.s32.totalorder %s36, 1
      %p178 = por %p176, %p177
      %p179 = scmp.ne.s32.totalorder %s170, %s171
      %p180 = scmp.eq.s32.totalorder %s36, 0
      %p181 = por %p179, %p180
      %p182 = scmp.ne.s32.totalorder %s170, %s171
      %p183 = scmp.eq.s32.totalorder %s37, 1
      %p184 = por %p182, %p183
      %p186 = scmp.ne.s32.totalorder %s171, %s185
      %p187 = scmp.eq.s32.totalorder %s37, 0
      %p188 = por %p186, %p187
      %s190 = sadd.s32 %s189, 1
      %p193 = scmp.eq.s32.totalorder %s31, 1
      %p194 = scmp.ne.s32.totalorder %s189, %s191
      %p195 = scmp.eq.s32.totalorder %s31, 0
      %p196 = por %p194, %p195
      %p197 = scmp.ne.s32.totalorder %s189, %s191
      %p198 = scmp.eq.s32.totalorder %s36, 1
      %p199 = por %p197, %p198
      %p200 = scmp.ne.s32.totalorder %s191, %s192
      %p201 = scmp.eq.s32.totalorder %s36, 0
      %p202 = por %p200, %p201
      %p203 = scmp.ne.s32.totalorder %s191, %s192
      %p204 = scmp.eq.s32.totalorder %s37, 1
      %p205 = por %p203, %p204
      %p207 = scmp.ne.s32.totalorder %s192, %s206
      %p208 = scmp.eq.s32.totalorder %s37, 0
      %p209 = por %p207, %p208
      %s211 = sadd.s32 %s210, 1
      %p214 = scmp.eq.s32.totalorder %s31, 1
      %p215 = scmp.ne.s32.totalorder %s210, %s212
      %p216 = scmp.eq.s32.totalorder %s31, 0
      %p217 = por %p215, %p216
      %p218 = scmp.ne.s32.totalorder %s210, %s212
      %p219 = scmp.eq.s32.totalorder %s36, 1
      %p220 = por %p218, %p219
      %p221 = scmp.ne.s32.totalorder %s212, %s213
      %p222 = scmp.eq.s32.totalorder %s36, 0
      %p223 = por %p221, %p222
      %p224 = scmp.ne.s32.totalorder %s212, %s213
      %p225 = scmp.eq.s32.totalorder %s37, 1
      %p226 = por %p224, %p225
      %p228 = scmp.ne.s32.totalorder %s213, %s227
      %p229 = scmp.eq.s32.totalorder %s37, 0
      %p230 = por %p228, %p229
      %s232 = sadd.s32 %s231, 1
      %p235 = scmp.eq.s32.totalorder %s31, 1
      %p236 = scmp.ne.s32.totalorder %s231, %s233
      %p237 = scmp.eq.s32.totalorder %s31, 0
      %p238 = por %p236, %p237
      %p239 = scmp.ne.s32.totalorder %s231, %s233
      %p240 = scmp.eq.s32.totalorder %s36, 1
      %p241 = por %p239, %p240
      %p242 = scmp.ne.s32.totalorder %s233, %s234
      %p243 = scmp.eq.s32.totalorder %s36, 0
      %p244 = por %p242, %p243
      %p245 = scmp.ne.s32.totalorder %s233, %s234
      %p246 = scmp.eq.s32.totalorder %s37, 1
      %p247 = por %p245, %p246
      %p249 = scmp.ne.s32.totalorder %s234, %s248
      %p250 = scmp.eq.s32.totalorder %s37, 0
      %p251 = por %p249, %p250
      %s253 = sadd.s32 %s252, 1
      %p256 = scmp.eq.s32.totalorder %s31, 1
      %p257 = scmp.ne.s32.totalorder %s252, %s254
      %p258 = scmp.eq.s32.totalorder %s31, 0
      %p259 = por %p257, %p258
      %p260 = scmp.ne.s32.totalorder %s252, %s254
      %p261 = scmp.eq.s32.totalorder %s36, 1
      %p262 = por %p260, %p261
      %p263 = scmp.ne.s32.totalorder %s254, %s255
      %p264 = scmp.eq.s32.totalorder %s36, 0
      %p265 = por %p263, %p264
      %p266 = scmp.ne.s32.totalorder %s254, %s255
      %p267 = scmp.eq.s32.totalorder %s37, 1
      %p268 = por %p266, %p267
      %p270 = scmp.ne.s32.totalorder %s255, %s269
      %p271 = scmp.eq.s32.totalorder %s37, 0
      %p272 = por %p270, %p271
      %s274 = sadd.s32 %s273, 1
      %p277 = scmp.eq.s32.totalorder %s31, 1
      %p278 = scmp.ne.s32.totalorder %s273, %s275
      %p279 = scmp.eq.s32.totalorder %s31, 0
      %p280 = por %p278, %p279
      %p281 = scmp.ne.s32.totalorder %s273, %s275
      %p282 = scmp.eq.s32.totalorder %s36, 1
      %p283 = por %p281, %p282
      %p284 = scmp.ne.s32.totalorder %s275, %s276
      %p285 = scmp.eq.s32.totalorder %s36, 0
      %p286 = por %p284, %p285
      %p287 = scmp.ne.s32.totalorder %s275, %s276
      %p288 = scmp.eq.s32.totalorder %s37, 1
      %p289 = por %p287, %p288
      %p291 = scmp.ne.s32.totalorder %s276, %s290
      %p292 = scmp.eq.s32.totalorder %s37, 0
      %p293 = por %p291, %p292
      %s295 = sadd.s32 %s294, 1
      %p298 = scmp.eq.s32.totalorder %s31, 1
      %p299 = scmp.ne.s32.totalorder %s294, %s296
      %p300 = scmp.eq.s32.totalorder %s31, 0
      %p301 = por %p299, %p300
      %p302 = scmp.ne.s32.totalorder %s294, %s296
      %p303 = scmp.eq.s32.totalorder %s36, 1
      %p304 = por %p302, %p303
      %p305 = scmp.ne.s32.totalorder %s296, %s297
      %p306 = scmp.eq.s32.totalorder %s36, 0
      %p307 = por %p305, %p306
      %p308 = scmp.ne.s32.totalorder %s296, %s297
      %p309 = scmp.eq.s32.totalorder %s37, 1
      %p310 = por %p308, %p309
      %p312 = scmp.ne.s32.totalorder %s297, %s311
      %p313 = scmp.eq.s32.totalorder %s37, 0
      %p314 = por %p312, %p313
      %s316 = sadd.s32 %s315, 1
      %p319 = scmp.eq.s32.totalorder %s31, 1
      %p320 = scmp.ne.s32.totalorder %s315, %s317
      %p321 = scmp.eq.s32.totalorder %s31, 0
      %p322 = por %p320, %p321
      %p323 = scmp.ne.s32.totalorder %s315, %s317
      %p324 = scmp.eq.s32.totalorder %s36, 1
      %p325 = por %p323, %p324
      %p326 = scmp.ne.s32.totalorder %s317, %s318
      %p327 = scmp.eq.s32.totalorder %s36, 0
      %p328 = por %p326, %p327
      %p329 = scmp.ne.s32.totalorder %s317, %s318
      %p330 = scmp.eq.s32.totalorder %s37, 1
      %p331 = por %p329, %p330
      %p333 = scmp.ne.s32.totalorder %s318, %s332
      %p334 = scmp.eq.s32.totalorder %s37, 0
      %p335 = por %p333, %p334
      %s337 = sadd.s32 %s336, 1
      %p340 = scmp.eq.s32.totalorder %s31, 1
      %p341 = scmp.ne.s32.totalorder %s336, %s338
      %p342 = scmp.eq.s32.totalorder %s31, 0
      %p343 = por %p341, %p342
      %p344 = scmp.ne.s32.totalorder %s336, %s338
      %p345 = scmp.eq.s32.totalorder %s36, 1
      %p346 = por %p344, %p345
      %p347 = scmp.ne.s32.totalorder %s338, %s339
      %p348 = scmp.eq.s32.totalorder %s36, 0
      %p349 = por %p347, %p348
      %p350 = scmp.ne.s32.totalorder %s338, %s339
      %p351 = scmp.eq.s32.totalorder %s37, 1
      %p352 = por %p350, %p351
      %p354 = scmp.ne.s32.totalorder %s339, %s353
      %p355 = scmp.eq.s32.totalorder %s37, 0
      %p356 = por %p354, %p355
      %s358 = sadd.s32 %s357, 1
      %p361 = scmp.eq.s32.totalorder %s31, 1
      %p362 = scmp.ne.s32.totalorder %s357, %s359
      %p363 = scmp.eq.s32.totalorder %s31, 0
      %p364 = por %p362, %p363
      %p365 = scmp.ne.s32.totalorder %s357, %s359
      %p366 = scmp.eq.s32.totalorder %s36, 1
      %p367 = por %p365, %p366
      %p368 = scmp.ne.s32.totalorder %s359, %s360
      %p369 = scmp.eq.s32.totalorder %s36, 0
      %p370 = por %p368, %p369
      %p371 = scmp.ne.s32.totalorder %s359, %s360
      %p372 = scmp.eq.s32.totalorder %s37, 1
      %p373 = por %p371, %p372
      %p375 = scmp.ne.s32.totalorder %s360, %s374
      %p376 = scmp.eq.s32.totalorder %s37, 0
      %p377 = por %p375, %p376
      %s379 = sadd.s32 %s378, 1
      %p382 = scmp.eq.s32.totalorder %s31, 1
      %p383 = scmp.ne.s32.totalorder %s378, %s380
      %p384 = scmp.eq.s32.totalorder %s31, 0
      %p385 = por %p383, %p384
      %p386 = scmp.ne.s32.totalorder %s378, %s380
      %p387 = scmp.eq.s32.totalorder %s36, 1
      %p388 = por %p386, %p387
      %p389 = scmp.ne.s32.totalorder %s380, %s381
      %p390 = scmp.eq.s32.totalorder %s36, 0
      %p391 = por %p389, %p390
      %p392 = scmp.ne.s32.totalorder %s380, %s381
      %p393 = scmp.eq.s32.totalorder %s37, 1
      %p394 = por %p392, %p393
      %p396 = scmp.ne.s32.totalorder %s381, %s395
      %p397 = scmp.eq.s32.totalorder %s37, 0
      %p398 = por %p396, %p397
      %s400 = sadd.s32 %s399, 1
      %p403 = scmp.eq.s32.totalorder %s31, 1
      %p404 = scmp.ne.s32.totalorder %s399, %s401
      %p405 = scmp.eq.s32.totalorder %s31, 0
      %p406 = por %p404, %p405
      %p407 = scmp.ne.s32.totalorder %s399, %s401
      %p408 = scmp.eq.s32.totalorder %s36, 1
      %p409 = por %p407, %p408
      %p410 = scmp.ne.s32.totalorder %s401, %s402
      %p411 = scmp.eq.s32.totalorder %s36, 0
      %p412 = por %p410, %p411
      %p413 = scmp.ne.s32.totalorder %s401, %s402
      %p414 = scmp.eq.s32.totalorder %s37, 1
      %p415 = por %p413, %p414
      %p417 = scmp.ne.s32.totalorder %s402, %s416
      %p418 = scmp.eq.s32.totalorder %s37, 0
      %p419 = por %p417, %p418
      %s421 = sadd.s32 %s420, 1
      %p424 = scmp.eq.s32.totalorder %s31, 1
      %p425 = scmp.ne.s32.totalorder %s420, %s422
      %p426 = scmp.eq.s32.totalorder %s31, 0
      %p427 = por %p425, %p426
      %p428 = scmp.ne.s32.totalorder %s420, %s422
      %p429 = scmp.eq.s32.totalorder %s36, 1
      %p430 = por %p428, %p429
      %p431 = scmp.ne.s32.totalorder %s422, %s423
      %p432 = scmp.eq.s32.totalorder %s36, 0
      %p433 = por %p431, %p432
      %p434 = scmp.ne.s32.totalorder %s422, %s423
      %p435 = scmp.eq.s32.totalorder %s37, 1
      %p436 = por %p434, %p435
      %p438 = scmp.ne.s32.totalorder %s423, %s437
      %p439 = scmp.eq.s32.totalorder %s37, 0
      %p440 = por %p438, %p439
      %s441 = ssub.s32 %s38, %s50
      %s442 = ssub.s32 %s39, %s46
      %s443 = sor.u32 %s441, %s442
      %p444 = scmp.eq.s32.totalorder %s443, 0
      %s446 = sadd.s32 %s445, 1
      %s447 = scalar_select %p444, %s445, %s446
      %p450 = pneg %p444
      %p451 = scmp.eq.s32.totalorder %s31, 1
      %p452 = por %p450, %p451
      %p453 = scmp.ne.s32.totalorder %s445, %s448
      %p454 = scmp.eq.s32.totalorder %s31, 0
      %p455 = por %p453, %p454
      %p456 = scmp.ne.s32.totalorder %s445, %s448
      %p457 = scmp.eq.s32.totalorder %s36, 1
      %p458 = por %p456, %p457
      %p459 = scmp.ne.s32.totalorder %s448, %s449
      %p460 = scmp.eq.s32.totalorder %s36, 0
      %p461 = por %p459, %p460
      %p462 = scmp.ne.s32.totalorder %s448, %s449
      %p463 = scmp.eq.s32.totalorder %s37, 1
      %p464 = por %p462, %p463
      %p466 = scmp.ne.s32.totalorder %s449, %s465
      %p467 = scmp.eq.s32.totalorder %s37, 0
      %p468 = por %p466, %p467
      %p469 = scmp.le.s32.totalorder 1, %s31
      %p470 = scmp.lt.s32.totalorder %s31, 3
      %p471 = pnand %p469, %p470
      %p472 = pneg %p471
      // Predicated region
      $region9: #{tpu_custom_call.1} parent=5 // pred_check
        _
      $region10: #{tpu_custom_call.1} parent=5 // pred_check_branch
        %474 = sbr.rel (%p471) target = $region12
      $region11: #{tpu_custom_call.1} parent=5 // pred_region
        %s475 = ssub.s32 %s31, 1
        // Predicated region
        $region13: #{tpu_custom_call.1} parent=11 // pred_check
          %p476 = pneg %p118
        $region14: #{tpu_custom_call.1} parent=11 // pred_check_branch
          %478 = sbr.rel (%p476) target = $region16
        $region15: #{tpu_custom_call.1} parent=11 // pred_region
          _
        $region16: #{tpu_custom_call.1} parent=11 // pred_fallthru
          _
        // Predicated region
        $region17: #{tpu_custom_call.1} parent=11 // pred_check
          %p479 = pneg %p139
        $region18: #{tpu_custom_call.1} parent=11 // pred_check_branch
          %481 = sbr.rel (%p479) target = $region20
        $region19: #{tpu_custom_call.1} parent=11 // pred_region
          %s483 = ssub.s32 16, 16
          %484 = vsyncadd [#allocation5], %s483
          %s486 = sshll.u32 [#allocation4], 4
          %s487 = int_to_ptr.vmem [resolvable:$true] %s486
          %489 = dma.hbm_to_vmem [thread:$0]  %s3, 16, %s487, [#allocation5]
        $region20: #{tpu_custom_call.1} parent=11 // pred_fallthru
          _
        // Predicated region
        $region21: #{tpu_custom_call.1} parent=11 // pred_check
          %p490 = pneg %p160
        $region22: #{tpu_custom_call.1} parent=11 // pred_check_branch
          %492 = sbr.rel (%p490) target = $region24
        $region23: #{tpu_custom_call.1} parent=11 // pred_region
          %s494 = ssub.s32 256, 256
          %495 = vsyncadd [#allocation8], %s494
          %s496 = sshll.u32 [#allocation7], 4
          %s497 = int_to_ptr.vmem [resolvable:$true] %s496
          %502 = dma.hbm_to_vmem [thread:$0]  %s4, 256, %s497, [#allocation8], 64, 64, 4
        $region24: #{tpu_custom_call.1} parent=11 // pred_fallthru
          _
        // Predicated region
        $region25: #{tpu_custom_call.1} parent=11 // pred_check
          %p503 = pneg %p181
        $region26: #{tpu_custom_call.1} parent=11 // pred_check_branch
          %505 = sbr.rel (%p503) target = $region28
        $region27: #{tpu_custom_call.1} parent=11 // pred_region
          %s507 = ssub.s32 16, 16
          %508 = vsyncadd [#allocation8], %s507
          %s510 = sshll.u32 [#allocation9], 4
          %s511 = int_to_ptr.vmem [resolvable:$true] %s510
          %513 = dma.hbm_to_vmem [thread:$0]  %s5, 16, %s511, [#allocation8]
        $region28: #{tpu_custom_call.1} parent=11 // pred_fallthru
          _
        // Predicated region
        $region29: #{tpu_custom_call.1} parent=11 // pred_check
          %p514 = pneg %p202
        $region30: #{tpu_custom_call.1} parent=11 // pred_check_branch
          %516 = sbr.rel (%p514) target = $region32
        $region31: #{tpu_custom_call.1} parent=11 // pred_region
          %s518 = ssub.s32 256, 256
          %519 = vsyncadd [#allocation11], %s518
          %s520 = sshll.u32 [#allocation10], 4
          %s521 = int_to_ptr.vmem [resolvable:$true] %s520
          %526 = dma.hbm_to_vmem [thread:$0]  %s6, 256, %s521, [#allocation11], 64, 64, 4
        $region32: #{tpu_custom_call.1} parent=11 // pred_fallthru
          _
        // Predicated region
        $region33: #{tpu_custom_call.1} parent=11 // pred_check
          %p527 = pneg %p223
        $region34: #{tpu_custom_call.1} parent=11 // pred_check_branch
          %529 = sbr.rel (%p527) target = $region36
        $region35: #{tpu_custom_call.1} parent=11 // pred_region
          %s531 = ssub.s32 16, 16
          %532 = vsyncadd [#allocation11], %s531
          %s534 = sshll.u32 [#allocation12], 4
          %s535 = int_to_ptr.vmem [resolvable:$true] %s534
          %537 = dma.hbm_to_vmem [thread:$0]  %s7, 16, %s535, [#allocation11]
        $region36: #{tpu_custom_call.1} parent=11 // pred_fallthru
          _
        // Predicated region
        $region37: #{tpu_custom_call.1} parent=11 // pred_check
          %p538 = pneg %p244
        $region38: #{tpu_custom_call.1} parent=11 // pred_check_branch
          %540 = sbr.rel (%p538) target = $region40
        $region39: #{tpu_custom_call.1} parent=11 // pred_region
          %s542 = ssub.s32 256, 256
          %543 = vsyncadd [#allocation14], %s542
          %s544 = sshll.u32 [#allocation13], 4
          %s545 = int_to_ptr.vmem [resolvable:$true] %s544
          %550 = dma.hbm_to_vmem [thread:$0]  %s8, 256, %s545, [#allocation14], 64, 64, 4
        $region40: #{tpu_custom_call.1} parent=11 // pred_fallthru
          _
        // Predicated region
        $region41: #{tpu_custom_call.1} parent=11 // pred_check
          %p551 = pneg %p265
        $region42: #{tpu_custom_call.1} parent=11 // pred_check_branch
          %553 = sbr.rel (%p551) target = $region44
        $region43: #{tpu_custom_call.1} parent=11 // pred_region
          %s555 = ssub.s32 16, 16
          %556 = vsyncadd [#allocation14], %s555
          %s558 = sshll.u32 [#allocation15], 4
          %s559 = int_to_ptr.vmem [resolvable:$true] %s558
          %561 = dma.hbm_to_vmem [thread:$0]  %s9, 16, %s559, [#allocation14]
        $region44: #{tpu_custom_call.1} parent=11 // pred_fallthru
          _
        // Predicated region
        $region45: #{tpu_custom_call.1} parent=11 // pred_check
          %p562 = pneg %p286
        $region46: #{tpu_custom_call.1} parent=11 // pred_check_branch
          %564 = sbr.rel (%p562) target = $region48
        $region47: #{tpu_custom_call.1} parent=11 // pred_region
          _
        $region48: #{tpu_custom_call.1} parent=11 // pred_fallthru
          _
        // Predicated region
        $region49: #{tpu_custom_call.1} parent=11 // pred_check
          %p565 = pneg %p307
        $region50: #{tpu_custom_call.1} parent=11 // pred_check_branch
          %567 = sbr.rel (%p565) target = $region52
        $region51: #{tpu_custom_call.1} parent=11 // pred_region
          _
        $region52: #{tpu_custom_call.1} parent=11 // pred_fallthru
          _
        // Predicated region
        $region53: #{tpu_custom_call.1} parent=11 // pred_check
          %p568 = pneg %p328
        $region54: #{tpu_custom_call.1} parent=11 // pred_check_branch
          %570 = sbr.rel (%p568) target = $region56
        $region55: #{tpu_custom_call.1} parent=11 // pred_region
          _
        $region56: #{tpu_custom_call.1} parent=11 // pred_fallthru
          _
        // Predicated region
        $region57: #{tpu_custom_call.1} parent=11 // pred_check
          %p571 = pneg %p349
        $region58: #{tpu_custom_call.1} parent=11 // pred_check_branch
          %573 = sbr.rel (%p571) target = $region60
        $region59: #{tpu_custom_call.1} parent=11 // pred_region
          _
        $region60: #{tpu_custom_call.1} parent=11 // pred_fallthru
          _
        // Predicated region
        $region61: #{tpu_custom_call.1} parent=11 // pred_check
          %p574 = pneg %p370
        $region62: #{tpu_custom_call.1} parent=11 // pred_check_branch
          %576 = sbr.rel (%p574) target = $region64
        $region63: #{tpu_custom_call.1} parent=11 // pred_region
          _
        $region64: #{tpu_custom_call.1} parent=11 // pred_fallthru
          _
        // Predicated region
        $region65: #{tpu_custom_call.1} parent=11 // pred_check
          %p577 = pneg %p391
        $region66: #{tpu_custom_call.1} parent=11 // pred_check_branch
          %579 = sbr.rel (%p577) target = $region68
        $region67: #{tpu_custom_call.1} parent=11 // pred_region
          _
        $region68: #{tpu_custom_call.1} parent=11 // pred_fallthru
          _
        // Predicated region
        $region69: #{tpu_custom_call.1} parent=11 // pred_check
          %p580 = pneg %p412
        $region70: #{tpu_custom_call.1} parent=11 // pred_check_branch
          %582 = sbr.rel (%p580) target = $region72
        $region71: #{tpu_custom_call.1} parent=11 // pred_region
          _
        $region72: #{tpu_custom_call.1} parent=11 // pred_fallthru
          _
        // Predicated region
        $region73: #{tpu_custom_call.1} parent=11 // pred_check
          %p583 = pneg %p433
        $region74: #{tpu_custom_call.1} parent=11 // pred_check_branch
          %585 = sbr.rel (%p583) target = $region76
        $region75: #{tpu_custom_call.1} parent=11 // pred_region
          _
        $region76: #{tpu_custom_call.1} parent=11 // pred_fallthru
          _
      $region12: #{tpu_custom_call.1} parent=5 // pred_fallthru
        _
      %p586 = scmp.lt.s32.totalorder %s31, 2
      // Predicated region
      $region77: #{tpu_custom_call.1} parent=5 // pred_check
        %p587 = pneg %p586
      $region78: #{tpu_custom_call.1} parent=5 // pred_check_branch
        %589 = sbr.rel (%p587) target = $region80
      $region79: #{tpu_custom_call.1} parent=5 // pred_region
        // Predicated region
        $region81: #{tpu_custom_call.1} parent=79 // pred_check
          %p590 = pneg %p63
        $region82: #{tpu_custom_call.1} parent=79 // pred_check_branch
          %592 = sbr.rel (%p590) target = $region84
        $region83: #{tpu_custom_call.1} parent=79 // pred_region
          %p593 = scmp.lt.s32.totalorder %s38, 1
          %s594 = scalar_select %p593, %s38, 1
          %s595 = smul.addr %s594, 8
          %s596 = scalar_lea.vmem %s0, %s595
        $region84: #{tpu_custom_call.1} parent=79 // pred_fallthru
          _
        // Predicated region
        $region85: #{tpu_custom_call.1} parent=79 // pred_check
          %p597 = pneg %p91
        $region86: #{tpu_custom_call.1} parent=79 // pred_check_branch
          %599 = sbr.rel (%p597) target = $region88
        $region87: #{tpu_custom_call.1} parent=79 // pred_region
          %p600 = scmp.lt.s32.totalorder %s38, 1
          %s601 = scalar_select %p600, %s38, 1
          %p602 = scmp.lt.s32.totalorder %s39, 0
          %s603 = scalar_select %p602, %s39, 0
          %s604 = sadd.s32 %s603, %s601
          %s605 = smul.addr %s604, 8
          %s606 = scalar_lea.vmem %s1, %s605
        $region88: #{tpu_custom_call.1} parent=79 // pred_fallthru
          _
      $region80: #{tpu_custom_call.1} parent=5 // pred_fallthru
        _
      %p607 = scmp.le.s32.totalorder 1, %s31
      %p608 = scmp.lt.s32.totalorder %s31, 3
      %p609 = pnand %p607, %p608
      %p610 = pneg %p609
      // Predicated region
      $region89: #{tpu_custom_call.1} parent=5 // pred_check
        _
      $region90: #{tpu_custom_call.1} parent=5 // pred_check_branch
        %612 = sbr.rel (%p609) target = $region92
      $region91: #{tpu_custom_call.1} parent=5 // pred_region
        %s613 = ssub.s32 %s31, 1
        // Predicated region
        $region93: #{tpu_custom_call.1} parent=91 // pred_check
          %p614 = pneg %p139
        $region94: #{tpu_custom_call.1} parent=91 // pred_check_branch
          %616 = sbr.rel (%p614) target = $region96
        $region95: #{tpu_custom_call.1} parent=91 // pred_region
          %617 = dma.done [#allocation5], 16
        $region96: #{tpu_custom_call.1} parent=91 // pred_fallthru
          _
        // Predicated region
        $region97: #{tpu_custom_call.1} parent=91 // pred_check
          %p618 = pneg %p160
        $region98: #{tpu_custom_call.1} parent=91 // pred_check_branch
          %620 = sbr.rel (%p618) target = $region100
        $region99: #{tpu_custom_call.1} parent=91 // pred_region
          %621 = dma.done [#allocation8], 256
        $region100: #{tpu_custom_call.1} parent=91 // pred_fallthru
          _
        // Predicated region
        $region101: #{tpu_custom_call.1} parent=91 // pred_check
          %p622 = pneg %p181
        $region102: #{tpu_custom_call.1} parent=91 // pred_check_branch
          %624 = sbr.rel (%p622) target = $region104
        $region103: #{tpu_custom_call.1} parent=91 // pred_region
          %625 = dma.done [#allocation8], 16
        $region104: #{tpu_custom_call.1} parent=91 // pred_fallthru
          _
        // Predicated region
        $region105: #{tpu_custom_call.1} parent=91 // pred_check
          %p626 = pneg %p202
        $region106: #{tpu_custom_call.1} parent=91 // pred_check_branch
          %628 = sbr.rel (%p626) target = $region108
        $region107: #{tpu_custom_call.1} parent=91 // pred_region
          %629 = dma.done [#allocation11], 256
        $region108: #{tpu_custom_call.1} parent=91 // pred_fallthru
          _
        // Predicated region
        $region109: #{tpu_custom_call.1} parent=91 // pred_check
          %p630 = pneg %p223
        $region110: #{tpu_custom_call.1} parent=91 // pred_check_branch
          %632 = sbr.rel (%p630) target = $region112
        $region111: #{tpu_custom_call.1} parent=91 // pred_region
          %633 = dma.done [#allocation11], 16
        $region112: #{tpu_custom_call.1} parent=91 // pred_fallthru
          _
        // Predicated region
        $region113: #{tpu_custom_call.1} parent=91 // pred_check
          %p634 = pneg %p244
        $region114: #{tpu_custom_call.1} parent=91 // pred_check_branch
          %636 = sbr.rel (%p634) target = $region116
        $region115: #{tpu_custom_call.1} parent=91 // pred_region
          %637 = dma.done [#allocation14], 256
        $region116: #{tpu_custom_call.1} parent=91 // pred_fallthru
          _
        // Predicated region
        $region117: #{tpu_custom_call.1} parent=91 // pred_check
          %p638 = pneg %p265
        $region118: #{tpu_custom_call.1} parent=91 // pred_check_branch
          %640 = sbr.rel (%p638) target = $region120
        $region119: #{tpu_custom_call.1} parent=91 // pred_region
          %641 = dma.done [#allocation14], 16
        $region120: #{tpu_custom_call.1} parent=91 // pred_fallthru
          _
        %p642 = scmp.lt.s32.totalorder %s40, 1
        %s643 = scalar_select %p642, %s40, 1
        %s644 = smul.addr %s643, 8
        %s645 = scalar_lea.vmem %s0, %s644
        %p646 = pneg %p69
        %p647 = pneg %p66
        %p648 = scmp.lt.s32.totalorder %s40, 1
        %s649 = scalar_select %p648, %s40, 1
        %p650 = scmp.lt.s32.totalorder %s41, 0
        %s651 = scalar_select %p650, %s41, 0
        %s652 = sadd.s32 %s651, %s649
        %s653 = smul.addr %s652, 8
        %s654 = scalar_lea.vmem %s1, %s653
        %p655 = pneg %p97
        %p656 = pneg %p94
        %p657 = pneg %p118
        %p658 = pneg %p115
        %p659 = pneg %p139
        %p660 = pneg %p136
        %p661 = pneg %p160
        %p662 = pneg %p157
        %p663 = pneg %p181
        %p664 = pneg %p178
        %p665 = pneg %p202
        %p666 = pneg %p199
        %p667 = pneg %p223
        %p668 = pneg %p220
        %p669 = pneg %p244
        %p670 = pneg %p241
        %p671 = pneg %p265
        %p672 = pneg %p262
        %p673 = pneg %p286
        %p674 = pneg %p283
        %p675 = pneg %p307
        %p676 = pneg %p304
        %p677 = pneg %p328
        %p678 = pneg %p325
        %p679 = pneg %p349
        %p680 = pneg %p346
        %p681 = pneg %p370
        %p682 = pneg %p367
        %p683 = pneg %p391
        %p684 = pneg %p388
        %p685 = pneg %p412
        %p686 = pneg %p409
        %p687 = pneg %p433
        %p688 = pneg %p430
        %p689 = pneg %p461
        %p690 = pneg %p458
        %s691 = sand.u32 %s448, 1
        %s692 = scalar_lea.sflag [#allocation6], %s691
        %s693 = sand.u32 %s448, 1
        %s694 = smul.addr %s693, 8
        %s695 = scalar_lea.vmem [#allocation16], %s694
        %p696 = scmp.lt.s32.totalorder %s40, 1
        %s697 = scalar_select %p696, %s40, 1
        %s698 = smul.addr %s697, 8
        %s699 = scalar_lea.vmem %s0, %s698
        %p700 = scmp.lt.s32.totalorder %s40, 1
        %s701 = scalar_select %p700, %s40, 1
        %p702 = scmp.lt.s32.totalorder %s41, 0
        %s703 = scalar_select %p702, %s41, 0
        %s704 = sadd.s32 %s703, %s701
        %s705 = smul.addr %s704, 8
        %s706 = scalar_lea.vmem %s1, %s705
        %p708 = scmp.eq.s32.totalorder %s41, 0
        // Predicated region
        $region121: #{tpu_custom_call.1} parent=91 // pred_check
          %p709 = pneg %p708
        $region122: #{tpu_custom_call.1} parent=91 // pred_check_branch
          %711 = sbr.rel (%p709) target = $region124
        $region123: #{tpu_custom_call.1} parent=91 // pred_region
          %v712 = vld [vmem:[%s699] sm:$0xff]
          %v713 = vpack.c.bf16 %v712, %v712
          %v714 = vld [vmem:[#allocation7] sm:$0xf]
          %v715 = vld [vmem:[#allocation7 + $0x4] sm:$0xf]
          %v716 = vld [vmem:[#allocation7 + $0x8] sm:$0xf]
          %v717 = vld [vmem:[#allocation7 + $0xc] sm:$0xf]
          %v718 = vld [vmem:[#allocation9] sm:$0x1]
          %v720 = vlaneseq
          %v721 = vshrl.u32 %v720, 7
          %v722 = vsub.s32 0, %v721
          %v723 = vrot.slane %v718, %v722
          %v729 = vunpack.c.l.b16 %v714
          %v730 = vunpack.c.l.b16 %v715
          %v731 = vunpack.c.l.b16 %v716
          %v732 = vunpack.c.l.b16 %v717
          %v733 = vpack.c.b16 %v730, %v729
          %v734 = vpack.c.b16 %v732, %v731
          %vm737 = vcmask 261120
          %v739 = vsel %vm737, %v713, 0
          %741 = vmatprep.subr.bf16.mxu0 0
          %742 = vmatpush1.bf16.msra.mxu0 0
          %743 = vmatprep.subr.bf16.mxu0 0
          %744 = vmatpush1.bf16.msra.mxu0 0
          %745 = vmatprep.subr.bf16.mxu0 0
          %746 = vmatpush1.bf16.msra.mxu0 0
          %747 = vmatprep.subr.bf16.mxu0 0
          %748 = vmatpush1.bf16.msra.mxu0 0
          %749 = vmatprep.subr.bf16.mxu0 0
          %750 = vmatpush1.bf16.msra.mxu0 0
          %751 = vmatprep.subr.bf16.mxu0 0
          %752 = vmatpush1.bf16.msra.mxu0 0
          %753 = vmatprep.subr.bf16.mxu0 0
          %754 = vmatpush1.bf16.msra.mxu0 %v734
          %755 = vmatprep.subr.bf16.mxu0 0
          %756 = vmatpush1.bf16.msra.mxu0 %v733
          %757 = vmatprep.subr.bf16.mxu0 0
          %758 = vmatpush2.bf16.msra.mxu0 0
          %759 = vmatprep.subr.bf16.mxu0 0
          %760 = vmatpush2.bf16.msra.mxu0 0
          %761 = vmatprep.subr.bf16.mxu0 0
          %762 = vmatpush2.bf16.msra.mxu0 0
          %763 = vmatprep.subr.bf16.mxu0 0
          %764 = vmatpush2.bf16.msra.mxu0 0
          %765 = vmatprep.subr.bf16.mxu0 0
          %766 = vmatpush2.bf16.msra.mxu0 0
          %767 = vmatprep.subr.bf16.mxu0 0
          %768 = vmatpush2.bf16.msra.mxu0 0
          %769 = vmatprep.subr.bf16.mxu0 0
          %770 = vmatpush2.bf16.msra.mxu0 0
          %771 = vmatprep.subr.bf16.mxu0 0
          %772 = vmatpush2.bf16.msra.mxu0 0
          %773 = vmatprep.mubr.bf16.mxu0 0
          %774 = vmatmul.mubr.bf16.gmra.mxu0 %v739
          %v775 = vpop.f32.mrf.mxu0
          %v776 = vadd.f32 %v723, %v775
          %v777 = vpop.f32.mrf.mxu0
          %v778 = vpop.f32.mrf.mxu0
          %v779 = vpop.f32.mrf.mxu0
          %780 = vdwg.mxu0
          %v781 = vld [vmem:[#allocation10] sm:$0xf]
          %v782 = vld [vmem:[#allocation10 + $0x4] sm:$0xf]
          %v783 = vld [vmem:[#allocation10 + $0x8] sm:$0xf]
          %v784 = vld [vmem:[#allocation10 + $0xc] sm:$0xf]
          %v785 = vld [vmem:[#allocation12] sm:$0x1]
          %v787 = vlaneseq
          %v788 = vshrl.u32 %v787, 7
          %v789 = vsub.s32 0, %v788
          %v790 = vrot.slane %v785, %v789
          %v796 = vunpack.c.l.b16 %v781
          %v797 = vunpack.c.l.b16 %v782
          %v798 = vunpack.c.l.b16 %v783
          %v799 = vunpack.c.l.b16 %v784
          %v800 = vpack.c.b16 %v797, %v796
          %v801 = vpack.c.b16 %v799, %v798
          %804 = vmatprep.subr.bf16.mxu0 0
          %805 = vmatpush1.bf16.msra.mxu0 0
          %806 = vmatprep.subr.bf16.mxu0 0
          %807 = vmatpush1.bf16.msra.mxu0 0
          %808 = vmatprep.subr.bf16.mxu0 0
          %809 = vmatpush1.bf16.msra.mxu0 0
          %810 = vmatprep.subr.bf16.mxu0 0
          %811 = vmatpush1.bf16.msra.mxu0 0
          %812 = vmatprep.subr.bf16.mxu0 0
          %813 = vmatpush1.bf16.msra.mxu0 0
          %814 = vmatprep.subr.bf16.mxu0 0
          %815 = vmatpush1.bf16.msra.mxu0 0
          %816 = vmatprep.subr.bf16.mxu0 0
          %817 = vmatpush1.bf16.msra.mxu0 %v801
          %818 = vmatprep.subr.bf16.mxu0 0
          %819 = vmatpush1.bf16.msra.mxu0 %v800
          %820 = vmatprep.subr.bf16.mxu0 0
          %821 = vmatpush2.bf16.msra.mxu0 0
          %822 = vmatprep.subr.bf16.mxu0 0
          %823 = vmatpush2.bf16.msra.mxu0 0
          %824 = vmatprep.subr.bf16.mxu0 0
          %825 = vmatpush2.bf16.msra.mxu0 0
          %826 = vmatprep.subr.bf16.mxu0 0
          %827 = vmatpush2.bf16.msra.mxu0 0
          %828 = vmatprep.subr.bf16.mxu0 0
          %829 = vmatpush2.bf16.msra.mxu0 0
          %830 = vmatprep.subr.bf16.mxu0 0
          %831 = vmatpush2.bf16.msra.mxu0 0
          %832 = vmatprep.subr.bf16.mxu0 0
          %833 = vmatpush2.bf16.msra.mxu0 0
          %834 = vmatprep.subr.bf16.mxu0 0
          %835 = vmatpush2.bf16.msra.mxu0 0
          %836 = vmatprep.mubr.bf16.mxu0 0
          %837 = vmatmul.mubr.bf16.gmra.mxu0 %v739
          %v838 = vpop.f32.mrf.mxu0
          %v839 = vadd.f32 %v790, %v838
          %v840 = vpop.f32.mrf.mxu0
          %v841 = vpop.f32.mrf.mxu0
          %v842 = vpop.f32.mrf.mxu0
          %843 = vdwg.mxu0
          %v844 = vpack.c.bf16 %v776, %v776
          %vm845 = vcmask 257024
          %846 = vst.msk [vmem:[#allocation2] sm:$0xf] %vm845, %v844
          %v847 = vpack.c.bf16 %v839, %v839
          %848 = vst.msk [vmem:[#allocation3] sm:$0xf] %vm845, %v847
        $region124: #{tpu_custom_call.1} parent=91 // pred_fallthru
          _
        %v849 = vld [vmem:[%s706] sm:$0xff]
        %v850 = vpack.c.bf16 %v849, %v849
        %v851 = vld [vmem:[%s2] sm:$0xf]
        %v852 = vld [vmem:[%s2 + $0x4] sm:$0xf]
        %v853 = vld [vmem:[%s2 + $0x8] sm:$0xf]
        %v854 = vld [vmem:[%s2 + $0xc] sm:$0xf]
        %v855 = vld [vmem:[#allocation4] sm:$0x1]
        %v857 = vlaneseq
        %v858 = vshrl.u32 %v857, 7
        %v859 = vsub.s32 0, %v858
        %v860 = vrot.slane %v855, %v859
        %v866 = vunpack.c.l.b16 %v851
        %v867 = vunpack.c.l.b16 %v852
        %v868 = vunpack.c.l.b16 %v853
        %v869 = vunpack.c.l.b16 %v854
        %v870 = vpack.c.b16 %v867, %v866
        %v871 = vpack.c.b16 %v869, %v868
        %vm874 = vcmask 261120
        %v876 = vsel %vm874, %v850, 0
        %878 = vmatprep.subr.bf16.mxu0 0
        %879 = vmatpush1.bf16.msra.mxu0 0
        %880 = vmatprep.subr.bf16.mxu0 0
        %881 = vmatpush1.bf16.msra.mxu0 0
        %882 = vmatprep.subr.bf16.mxu0 0
        %883 = vmatpush1.bf16.msra.mxu0 0
        %884 = vmatprep.subr.bf16.mxu0 0
        %885 = vmatpush1.bf16.msra.mxu0 0
        %886 = vmatprep.subr.bf16.mxu0 0
        %887 = vmatpush1.bf16.msra.mxu0 0
        %888 = vmatprep.subr.bf16.mxu0 0
        %889 = vmatpush1.bf16.msra.mxu0 0
        %890 = vmatprep.subr.bf16.mxu0 0
        %891 = vmatpush1.bf16.msra.mxu0 %v871
        %892 = vmatprep.subr.bf16.mxu0 0
        %893 = vmatpush1.bf16.msra.mxu0 %v870
        %894 = vmatprep.subr.bf16.mxu0 0
        %895 = vmatpush2.bf16.msra.mxu0 0
        %896 = vmatprep.subr.bf16.mxu0 0
        %897 = vmatpush2.bf16.msra.mxu0 0
        %898 = vmatprep.subr.bf16.mxu0 0
        %899 = vmatpush2.bf16.msra.mxu0 0
        %900 = vmatprep.subr.bf16.mxu0 0
        %901 = vmatpush2.bf16.msra.mxu0 0
        %902 = vmatprep.subr.bf16.mxu0 0
        %903 = vmatpush2.bf16.msra.mxu0 0
        %904 = vmatprep.subr.bf16.mxu0 0
        %905 = vmatpush2.bf16.msra.mxu0 0
        %906 = vmatprep.subr.bf16.mxu0 0
        %907 = vmatpush2.bf16.msra.mxu0 0
        %908 = vmatprep.subr.bf16.mxu0 0
        %909 = vmatpush2.bf16.msra.mxu0 0
        %910 = vmatprep.mubr.bf16.mxu0 0
        %911 = vmatmul.mubr.bf16.gmra.mxu0 %v876
        %v912 = vpop.f32.mrf.mxu0
        %v913 = vadd.f32 %v860, %v912
        %v914 = vpop.f32.mrf.mxu0
        %v915 = vpop.f32.mrf.mxu0
        %v916 = vpop.f32.mrf.mxu0
        %917 = vdwg.mxu0
        %v918 = vmul.f32 %v913, 0.35355338
        %v919 = vpack.c.bf16 %v918, %v918
        %v920 = vld [vmem:[#allocation2] sm:$0xf]
        %v921 = vld [vmem:[#allocation3] sm:$0xf]
        %vm922 = vcmask 64512
        %v924 = vsel %vm922, %v919, 0
        %v927 = vsel %vm922, %v920, 0
        %929 = vmatprep.subr.bf16.mxu0 0
        %930 = vmatpush1.bf16.xpose.msra.mxu0 0
        %931 = vmatprep.subr.bf16.mxu0 0
        %932 = vmatpush1.bf16.xpose.msra.mxu0 0
        %933 = vmatprep.subr.bf16.mxu0 0
        %934 = vmatpush1.bf16.xpose.msra.mxu0 0
        %935 = vmatprep.subr.bf16.mxu0 0
        %936 = vmatpush1.bf16.xpose.msra.mxu0 0
        %937 = vmatprep.subr.bf16.mxu0 0
        %938 = vmatpush1.bf16.xpose.msra.mxu0 0
        %939 = vmatprep.subr.bf16.mxu0 0
        %940 = vmatpush1.bf16.xpose.msra.mxu0 0
        %941 = vmatprep.subr.bf16.mxu0 0
        %942 = vmatpush1.bf16.xpose.msra.mxu0 0
        %943 = vmatprep.subr.bf16.mxu0 0
        %944 = vmatpush1.bf16.xpose.msra.mxu0 %v927
        %945 = vmatprep.subr.bf16.mxu0 0
        %946 = vmatpush2.bf16.xpose.msra.mxu0 0
        %947 = vmatprep.subr.bf16.mxu0 0
        %948 = vmatpush2.bf16.xpose.msra.mxu0 0
        %949 = vmatprep.subr.bf16.mxu0 0
        %950 = vmatpush2.bf16.xpose.msra.mxu0 0
        %951 = vmatprep.subr.bf16.mxu0 0
        %952 = vmatpush2.bf16.xpose.msra.mxu0 0
        %953 = vmatprep.subr.bf16.mxu0 0
        %954 = vmatpush2.bf16.xpose.msra.mxu0 0
        %955 = vmatprep.subr.bf16.mxu0 0
        %956 = vmatpush2.bf16.xpose.msra.mxu0 0
        %957 = vmatprep.subr.bf16.mxu0 0
        %958 = vmatpush2.bf16.xpose.msra.mxu0 0
        %959 = vmatprep.subr.bf16.mxu0 0
        %960 = vmatpush2.bf16.xpose.msra.mxu0 0
        %961 = vmatprep.mubr.bf16.mxu0 0
        %962 = vmatmul.mubr.bf16.gmra.mxu0 %v924
        %v963 = vpop.f32.mrf.mxu0
        %v964 = vadd.f32 0.0, %v963
        %v965 = vpop.f32.mrf.mxu0
        %v966 = vpop.f32.mrf.mxu0
        %v967 = vpop.f32.mrf.mxu0
        %968 = vdwg.mxu0
        %v969 = vsel %vm922, %v964, -inf
        %970 = vmax.xlane.f32.xlu0 %v969
        %v971 = vpop.xlane.xlu0 %970
        %v972 = vsub.f32 %v964, %v971
        %v973 = vmul.f32 %v972, 1.442695
        %v974 = vpow.pop %v973
        %v975 = vsel %vm922, %v974, 0.0
        %976 = vadd.xlane.f32.xlu0 %v975
        %v977 = vpop.xlane.xlu0 %976
        %v978 = vrcp.pop %v977
        %v979 = vmul.f32 %v974, %v978
        %v980 = vpack.c.bf16 %v979, %v979
        %v982 = vsel %vm922, %v980, 0
        %vm984 = vcmask 1043456
        %v986 = vsel %vm984, %v921, 0
        %988 = vmatprep.subr.bf16.mxu0 0
        %989 = vmatpush1.bf16.msra.mxu0 0
        %990 = vmatprep.subr.bf16.mxu0 0
        %991 = vmatpush1.bf16.msra.mxu0 0
        %992 = vmatprep.subr.bf16.mxu0 0
        %993 = vmatpush1.bf16.msra.mxu0 0
        %994 = vmatprep.subr.bf16.mxu0 0
        %995 = vmatpush1.bf16.msra.mxu0 0
        %996 = vmatprep.subr.bf16.mxu0 0
        %997 = vmatpush1.bf16.msra.mxu0 0
        %998 = vmatprep.subr.bf16.mxu0 0
        %999 = vmatpush1.bf16.msra.mxu0 0
        %1000 = vmatprep.subr.bf16.mxu0 0
        %1001 = vmatpush1.bf16.msra.mxu0 0
        %1002 = vmatprep.subr.bf16.mxu0 0
        %1003 = vmatpush1.bf16.msra.mxu0 %v986
        %1004 = vmatprep.subr.bf16.mxu0 0
        %1005 = vmatpush2.bf16.msra.mxu0 0
        %1006 = vmatprep.subr.bf16.mxu0 0
        %1007 = vmatpush2.bf16.msra.mxu0 0
        %1008 = vmatprep.subr.bf16.mxu0 0
        %1009 = vmatpush2.bf16.msra.mxu0 0
        %1010 = vmatprep.subr.bf16.mxu0 0
        %1011 = vmatpush2.bf16.msra.mxu0 0
        %1012 = vmatprep.subr.bf16.mxu0 0
        %1013 = vmatpush2.bf16.msra.mxu0 0
        %1014 = vmatprep.subr.bf16.mxu0 0
        %1015 = vmatpush2.bf16.msra.mxu0 0
        %1016 = vmatprep.subr.bf16.mxu0 0
        %1017 = vmatpush2.bf16.msra.mxu0 0
        %1018 = vmatprep.subr.bf16.mxu0 0
        %1019 = vmatpush2.bf16.msra.mxu0 0
        %1020 = vmatprep.mubr.bf16.mxu0 0
        %1021 = vmatmul.mubr.bf16.gmra.mxu0 %v982
        %v1022 = vpop.f32.mrf.mxu0
        %v1023 = vadd.f32 0.0, %v1022
        %v1024 = vpop.f32.mrf.mxu0
        %v1025 = vpop.f32.mrf.mxu0
        %v1026 = vpop.f32.mrf.mxu0
        %1027 = vdwg.mxu0
        %v1028 = vpack.c.bf16 %v1023, %v1023
        %v1029 = vld [vmem:[#allocation13] sm:$0xf]
        %1031 = vrot.lane.b32.xlu0 %v919, 120
        %v1032 = vpop.permute.xlu0 %1031
        %v1034 = vunpack.c.l.b16 %v920
        %v1035 = vpack.c.b16 %v1034, %v1034
        %1036 = vrot.lane.b32.xlu0 %v1035, 120
        %v1037 = vpop.permute.xlu0 %1036
        %v1039 = vsel %vm922, %v1032, 0
        %v1042 = vsel %vm922, %v1037, 0
        %1044 = vmatprep.subr.bf16.mxu0 0
        %1045 = vmatpush1.bf16.xpose.msra.mxu0 0
        %1046 = vmatprep.subr.bf16.mxu0 0
        %1047 = vmatpush1.bf16.xpose.msra.mxu0 0
        %1048 = vmatprep.subr.bf16.mxu0 0
        %1049 = vmatpush1.bf16.xpose.msra.mxu0 0
        %1050 = vmatprep.subr.bf16.mxu0 0
        %1051 = vmatpush1.bf16.xpose.msra.mxu0 0
        %1052 = vmatprep.subr.bf16.mxu0 0
        %1053 = vmatpush1.bf16.xpose.msra.mxu0 0
        %1054 = vmatprep.subr.bf16.mxu0 0
        %1055 = vmatpush1.bf16.xpose.msra.mxu0 0
        %1056 = vmatprep.subr.bf16.mxu0 0
        %1057 = vmatpush1.bf16.xpose.msra.mxu0 0
        %1058 = vmatprep.subr.bf16.mxu0 0
        %1059 = vmatpush1.bf16.xpose.msra.mxu0 %v1042
        %1060 = vmatprep.subr.bf16.mxu0 0
        %1061 = vmatpush2.bf16.xpose.msra.mxu0 0
        %1062 = vmatprep.subr.bf16.mxu0 0
        %1063 = vmatpush2.bf16.xpose.msra.mxu0 0
        %1064 = vmatprep.subr.bf16.mxu0 0
        %1065 = vmatpush2.bf16.xpose.msra.mxu0 0
        %1066 = vmatprep.subr.bf16.mxu0 0
        %1067 = vmatpush2.bf16.xpose.msra.mxu0 0
        %1068 = vmatprep.subr.bf16.mxu0 0
        %1069 = vmatpush2.bf16.xpose.msra.mxu0 0
        %1070 = vmatprep.subr.bf16.mxu0 0
        %1071 = vmatpush2.bf16.xpose.msra.mxu0 0
        %1072 = vmatprep.subr.bf16.mxu0 0
        %1073 = vmatpush2.bf16.xpose.msra.mxu0 0
        %1074 = vmatprep.subr.bf16.mxu0 0
        %1075 = vmatpush2.bf16.xpose.msra.mxu0 0
        %1076 = vmatprep.mubr.bf16.mxu0 0
        %1077 = vmatmul.mubr.bf16.gmra.mxu0 %v1039
        %v1078 = vpop.f32.mrf.mxu0
        %v1079 = vadd.f32 0.0, %v1078
        %v1080 = vpop.f32.mrf.mxu0
        %v1081 = vpop.f32.mrf.mxu0
        %v1082 = vpop.f32.mrf.mxu0
        %1083 = vdwg.mxu0
        %v1084 = vsel %vm922, %v1079, -inf
        %1085 = vmax.xlane.f32.xlu0 %v1084
        %v1086 = vpop.xlane.xlu0 %1085
        %v1087 = vsub.f32 %v1079, %v1086
        %v1088 = vmul.f32 %v1087, 1.442695
        %v1089 = vpow.pop %v1088
        %v1090 = vsel %vm922, %v1089, 0.0
        %1091 = vadd.xlane.f32.xlu0 %v1090
        %v1092 = vpop.xlane.xlu0 %1091
        %v1093 = vrcp.pop %v1092
        %v1094 = vmul.f32 %v1089, %v1093
        %v1095 = vpack.c.bf16 %v1094, %v1094
        %v1097 = vunpack.c.l.b16 %v921
        %v1098 = vpack.c.b16 %v1097, %v1097
        %1099 = vrot.lane.b32.xlu0 %v1098, 120
        %v1100 = vpop.permute.xlu0 %1099
        %v1102 = vsel %vm922, %v1095, 0
        %v1105 = vsel %vm984, %v1100, 0
        %1107 = vmatprep.subr.bf16.mxu0 0
        %1108 = vmatpush1.bf16.msra.mxu0 0
        %1109 = vmatprep.subr.bf16.mxu0 0
        %1110 = vmatpush1.bf16.msra.mxu0 0
        %1111 = vmatprep.subr.bf16.mxu0 0
        %1112 = vmatpush1.bf16.msra.mxu0 0
        %1113 = vmatprep.subr.bf16.mxu0 0
        %1114 = vmatpush1.bf16.msra.mxu0 0
        %1115 = vmatprep.subr.bf16.mxu0 0
        %1116 = vmatpush1.bf16.msra.mxu0 0
        %1117 = vmatprep.subr.bf16.mxu0 0
        %1118 = vmatpush1.bf16.msra.mxu0 0
        %1119 = vmatprep.subr.bf16.mxu0 0
        %1120 = vmatpush1.bf16.msra.mxu0 0
        %1121 = vmatprep.subr.bf16.mxu0 0
        %1122 = vmatpush1.bf16.msra.mxu0 %v1105
        %1123 = vmatprep.subr.bf16.mxu0 0
        %1124 = vmatpush2.bf16.msra.mxu0 0
        %1125 = vmatprep.subr.bf16.mxu0 0
        %1126 = vmatpush2.bf16.msra.mxu0 0
        %1127 = vmatprep.subr.bf16.mxu0 0
        %1128 = vmatpush2.bf16.msra.mxu0 0
        %1129 = vmatprep.subr.bf16.mxu0 0
        %1130 = vmatpush2.bf16.msra.mxu0 0
        %1131 = vmatprep.subr.bf16.mxu0 0
        %1132 = vmatpush2.bf16.msra.mxu0 0
        %1133 = vmatprep.subr.bf16.mxu0 0
        %1134 = vmatpush2.bf16.msra.mxu0 0
        %1135 = vmatprep.subr.bf16.mxu0 0
        %1136 = vmatpush2.bf16.msra.mxu0 0
        %1137 = vmatprep.subr.bf16.mxu0 0
        %1138 = vmatpush2.bf16.msra.mxu0 0
        %1139 = vmatprep.mubr.bf16.mxu0 0
        %1140 = vmatmul.mubr.bf16.gmra.mxu0 %v1102
        %v1141 = vpop.f32.mrf.mxu0
        %v1142 = vadd.f32 0.0, %v1141
        %v1143 = vpop.f32.mrf.mxu0
        %v1144 = vpop.f32.mrf.mxu0
        %v1145 = vpop.f32.mrf.mxu0
        %1146 = vdwg.mxu0
        %v1147 = vpack.c.bf16 %v1142, %v1142
        %v1148 = vld [vmem:[#allocation13 + $0x4] sm:$0xf]
        %v1150 = vsel %vm922, %v1147, 0
        %v1153 = vsel %vm984, %v1148, 0
        %1155 = vmatprep.subr.bf16.mxu0 0
        %1156 = vmatpush1.bf16.msra.mxu0 0
        %1157 = vmatprep.subr.bf16.mxu0 0
        %1158 = vmatpush1.bf16.msra.mxu0 0
        %1159 = vmatprep.subr.bf16.mxu0 0
        %1160 = vmatpush1.bf16.msra.mxu0 0
        %1161 = vmatprep.subr.bf16.mxu0 0
        %1162 = vmatpush1.bf16.msra.mxu0 0
        %1163 = vmatprep.subr.bf16.mxu0 0
        %1164 = vmatpush1.bf16.msra.mxu0 0
        %1165 = vmatprep.subr.bf16.mxu0 0
        %1166 = vmatpush1.bf16.msra.mxu0 0
        %1167 = vmatprep.subr.bf16.mxu0 0
        %1168 = vmatpush1.bf16.msra.mxu0 0
        %1169 = vmatprep.subr.bf16.mxu0 0
        %1170 = vmatpush1.bf16.msra.mxu0 %v1153
        %1171 = vmatprep.subr.bf16.mxu0 0
        %1172 = vmatpush2.bf16.msra.mxu0 0
        %1173 = vmatprep.subr.bf16.mxu0 0
        %1174 = vmatpush2.bf16.msra.mxu0 0
        %1175 = vmatprep.subr.bf16.mxu0 0
        %1176 = vmatpush2.bf16.msra.mxu0 0
        %1177 = vmatprep.subr.bf16.mxu0 0
        %1178 = vmatpush2.bf16.msra.mxu0 0
        %1179 = vmatprep.subr.bf16.mxu0 0
        %1180 = vmatpush2.bf16.msra.mxu0 0
        %1181 = vmatprep.subr.bf16.mxu0 0
        %1182 = vmatpush2.bf16.msra.mxu0 0
        %1183 = vmatprep.subr.bf16.mxu0 0
        %1184 = vmatpush2.bf16.msra.mxu0 0
        %1185 = vmatprep.subr.bf16.mxu0 0
        %1186 = vmatpush2.bf16.msra.mxu0 0
        %1187 = vmatprep.mubr.bf16.mxu0 0
        %1188 = vmatmul.mubr.bf16.gmra.mxu0 %v1150
        %v1189 = vpop.f32.mrf.mxu0
        %v1190 = vadd.f32 0.0, %v1189
        %v1191 = vpop.f32.mrf.mxu0
        %v1192 = vpop.f32.mrf.mxu0
        %v1193 = vpop.f32.mrf.mxu0
        %1194 = vdwg.mxu0
        %v1196 = vsel %vm922, %v1028, 0
        %v1199 = vsel %vm984, %v1029, 0
        %1201 = vmatprep.subr.bf16.mxu0 0
        %1202 = vmatpush1.bf16.msra.mxu0 0
        %1203 = vmatprep.subr.bf16.mxu0 0
        %1204 = vmatpush1.bf16.msra.mxu0 0
        %1205 = vmatprep.subr.bf16.mxu0 0
        %1206 = vmatpush1.bf16.msra.mxu0 0
        %1207 = vmatprep.subr.bf16.mxu0 0
        %1208 = vmatpush1.bf16.msra.mxu0 0
        %1209 = vmatprep.subr.bf16.mxu0 0
        %1210 = vmatpush1.bf16.msra.mxu0 0
        %1211 = vmatprep.subr.bf16.mxu0 0
        %1212 = vmatpush1.bf16.msra.mxu0 0
        %1213 = vmatprep.subr.bf16.mxu0 0
        %1214 = vmatpush1.bf16.msra.mxu0 0
        %1215 = vmatprep.subr.bf16.mxu0 0
        %1216 = vmatpush1.bf16.msra.mxu0 %v1199
        %1217 = vmatprep.subr.bf16.mxu0 0
        %1218 = vmatpush2.bf16.msra.mxu0 0
        %1219 = vmatprep.subr.bf16.mxu0 0
        %1220 = vmatpush2.bf16.msra.mxu0 0
        %1221 = vmatprep.subr.bf16.mxu0 0
        %1222 = vmatpush2.bf16.msra.mxu0 0
        %1223 = vmatprep.subr.bf16.mxu0 0
        %1224 = vmatpush2.bf16.msra.mxu0 0
        %1225 = vmatprep.subr.bf16.mxu0 0
        %1226 = vmatpush2.bf16.msra.mxu0 0
        %1227 = vmatprep.subr.bf16.mxu0 0
        %1228 = vmatpush2.bf16.msra.mxu0 0
        %1229 = vmatprep.subr.bf16.mxu0 0
        %1230 = vmatpush2.bf16.msra.mxu0 0
        %1231 = vmatprep.subr.bf16.mxu0 0
        %1232 = vmatpush2.bf16.msra.mxu0 0
        %1233 = vmatprep.mubr.bf16.mxu0 0
        %1234 = vmatmul.mubr.bf16.gmra.mxu0 %v1196
        %v1235 = vpop.f32.mrf.mxu0
        %v1236 = vadd.f32 %v1190, %v1235
        %v1237 = vpop.f32.mrf.mxu0
        %v1238 = vpop.f32.mrf.mxu0
        %v1239 = vpop.f32.mrf.mxu0
        %1240 = vdwg.mxu0
        %1241 = vrot.lane.b32.xlu0 %v919, 112
        %v1242 = vpop.permute.xlu0 %1241
        %1243 = vrot.lane.b32.xlu0 %v1035, 112
        %v1244 = vpop.permute.xlu0 %1243
        %v1246 = vsel %vm922, %v1242, 0
        %v1249 = vsel %vm922, %v1244, 0
        %1251 = vmatprep.subr.bf16.mxu0 0
        %1252 = vmatpush1.bf16.xpose.msra.mxu0 0
        %1253 = vmatprep.subr.bf16.mxu0 0
        %1254 = vmatpush1.bf16.xpose.msra.mxu0 0
        %1255 = vmatprep.subr.bf16.mxu0 0
        %1256 = vmatpush1.bf16.xpose.msra.mxu0 0
        %1257 = vmatprep.subr.bf16.mxu0 0
        %1258 = vmatpush1.bf16.xpose.msra.mxu0 0
        %1259 = vmatprep.subr.bf16.mxu0 0
        %1260 = vmatpush1.bf16.xpose.msra.mxu0 0
        %1261 = vmatprep.subr.bf16.mxu0 0
        %1262 = vmatpush1.bf16.xpose.msra.mxu0 0
        %1263 = vmatprep.subr.bf16.mxu0 0
        %1264 = vmatpush1.bf16.xpose.msra.mxu0 0
        %1265 = vmatprep.subr.bf16.mxu0 0
        %1266 = vmatpush1.bf16.xpose.msra.mxu0 %v1249
        %1267 = vmatprep.subr.bf16.mxu0 0
        %1268 = vmatpush2.bf16.xpose.msra.mxu0 0
        %1269 = vmatprep.subr.bf16.mxu0 0
        %1270 = vmatpush2.bf16.xpose.msra.mxu0 0
        %1271 = vmatprep.subr.bf16.mxu0 0
        %1272 = vmatpush2.bf16.xpose.msra.mxu0 0
        %1273 = vmatprep.subr.bf16.mxu0 0
        %1274 = vmatpush2.bf16.xpose.msra.mxu0 0
        %1275 = vmatprep.subr.bf16.mxu0 0
        %1276 = vmatpush2.bf16.xpose.msra.mxu0 0
        %1277 = vmatprep.subr.bf16.mxu0 0
        %1278 = vmatpush2.bf16.xpose.msra.mxu0 0
        %1279 = vmatprep.subr.bf16.mxu0 0
        %1280 = vmatpush2.bf16.xpose.msra.mxu0 0
        %1281 = vmatprep.subr.bf16.mxu0 0
        %1282 = vmatpush2.bf16.xpose.msra.mxu0 0
        %1283 = vmatprep.mubr.bf16.mxu0 0
        %1284 = vmatmul.mubr.bf16.gmra.mxu0 %v1246
        %v1285 = vpop.f32.mrf.mxu0
        %v1286 = vadd.f32 0.0, %v1285
        %v1287 = vpop.f32.mrf.mxu0
        %v1288 = vpop.f32.mrf.mxu0
        %v1289 = vpop.f32.mrf.mxu0
        %1290 = vdwg.mxu0
        %v1291 = vsel %vm922, %v1286, -inf
        %1292 = vmax.xlane.f32.xlu0 %v1291
        %v1293 = vpop.xlane.xlu0 %1292
        %v1294 = vsub.f32 %v1286, %v1293
        %v1295 = vmul.f32 %v1294, 1.442695
        %v1296 = vpow.pop %v1295
        %v1297 = vsel %vm922, %v1296, 0.0
        %1298 = vadd.xlane.f32.xlu0 %v1297
        %v1299 = vpop.xlane.xlu0 %1298
        %v1300 = vrcp.pop %v1299
        %v1301 = vmul.f32 %v1296, %v1300
        %v1302 = vpack.c.bf16 %v1301, %v1301
        %1303 = vrot.lane.b32.xlu0 %v1098, 112
        %v1304 = vpop.permute.xlu0 %1303
        %v1306 = vsel %vm922, %v1302, 0
        %v1309 = vsel %vm984, %v1304, 0
        %1311 = vmatprep.subr.bf16.mxu0 0
        %1312 = vmatpush1.bf16.msra.mxu0 0
        %1313 = vmatprep.subr.bf16.mxu0 0
        %1314 = vmatpush1.bf16.msra.mxu0 0
        %1315 = vmatprep.subr.bf16.mxu0 0
        %1316 = vmatpush1.bf16.msra.mxu0 0
        %1317 = vmatprep.subr.bf16.mxu0 0
        %1318 = vmatpush1.bf16.msra.mxu0 0
        %1319 = vmatprep.subr.bf16.mxu0 0
        %1320 = vmatpush1.bf16.msra.mxu0 0
        %1321 = vmatprep.subr.bf16.mxu0 0
        %1322 = vmatpush1.bf16.msra.mxu0 0
        %1323 = vmatprep.subr.bf16.mxu0 0
        %1324 = vmatpush1.bf16.msra.mxu0 0
        %1325 = vmatprep.subr.bf16.mxu0 0
        %1326 = vmatpush1.bf16.msra.mxu0 %v1309
        %1327 = vmatprep.subr.bf16.mxu0 0
        %1328 = vmatpush2.bf16.msra.mxu0 0
        %1329 = vmatprep.subr.bf16.mxu0 0
        %1330 = vmatpush2.bf16.msra.mxu0 0
        %1331 = vmatprep.subr.bf16.mxu0 0
        %1332 = vmatpush2.bf16.msra.mxu0 0
        %1333 = vmatprep.subr.bf16.mxu0 0
        %1334 = vmatpush2.bf16.msra.mxu0 0
        %1335 = vmatprep.subr.bf16.mxu0 0
        %1336 = vmatpush2.bf16.msra.mxu0 0
        %1337 = vmatprep.subr.bf16.mxu0 0
        %1338 = vmatpush2.bf16.msra.mxu0 0
        %1339 = vmatprep.subr.bf16.mxu0 0
        %1340 = vmatpush2.bf16.msra.mxu0 0
        %1341 = vmatprep.subr.bf16.mxu0 0
        %1342 = vmatpush2.bf16.msra.mxu0 0
        %1343 = vmatprep.mubr.bf16.mxu0 0
        %1344 = vmatmul.mubr.bf16.gmra.mxu0 %v1306
        %v1345 = vpop.f32.mrf.mxu0
        %v1346 = vadd.f32 0.0, %v1345
        %v1347 = vpop.f32.mrf.mxu0
        %v1348 = vpop.f32.mrf.mxu0
        %v1349 = vpop.f32.mrf.mxu0
        %1350 = vdwg.mxu0
        %v1351 = vpack.c.bf16 %v1346, %v1346
        %v1352 = vld [vmem:[#allocation13 + $0x8] sm:$0xf]
        %v1354 = vsel %vm922, %v1351, 0
        %v1357 = vsel %vm984, %v1352, 0
        %1359 = vmatprep.subr.bf16.mxu0 0
        %1360 = vmatpush1.bf16.msra.mxu0 0
        %1361 = vmatprep.subr.bf16.mxu0 0
        %1362 = vmatpush1.bf16.msra.mxu0 0
        %1363 = vmatprep.subr.bf16.mxu0 0
        %1364 = vmatpush1.bf16.msra.mxu0 0
        %1365 = vmatprep.subr.bf16.mxu0 0
        %1366 = vmatpush1.bf16.msra.mxu0 0
        %1367 = vmatprep.subr.bf16.mxu0 0
        %1368 = vmatpush1.bf16.msra.mxu0 0
        %1369 = vmatprep.subr.bf16.mxu0 0
        %1370 = vmatpush1.bf16.msra.mxu0 0
        %1371 = vmatprep.subr.bf16.mxu0 0
        %1372 = vmatpush1.bf16.msra.mxu0 0
        %1373 = vmatprep.subr.bf16.mxu0 0
        %1374 = vmatpush1.bf16.msra.mxu0 %v1357
        %1375 = vmatprep.subr.bf16.mxu0 0
        %1376 = vmatpush2.bf16.msra.mxu0 0
        %1377 = vmatprep.subr.bf16.mxu0 0
        %1378 = vmatpush2.bf16.msra.mxu0 0
        %1379 = vmatprep.subr.bf16.mxu0 0
        %1380 = vmatpush2.bf16.msra.mxu0 0
        %1381 = vmatprep.subr.bf16.mxu0 0
        %1382 = vmatpush2.bf16.msra.mxu0 0
        %1383 = vmatprep.subr.bf16.mxu0 0
        %1384 = vmatpush2.bf16.msra.mxu0 0
        %1385 = vmatprep.subr.bf16.mxu0 0
        %1386 = vmatpush2.bf16.msra.mxu0 0
        %1387 = vmatprep.subr.bf16.mxu0 0
        %1388 = vmatpush2.bf16.msra.mxu0 0
        %1389 = vmatprep.subr.bf16.mxu0 0
        %1390 = vmatpush2.bf16.msra.mxu0 0
        %1391 = vmatprep.mubr.bf16.mxu0 0
        %1392 = vmatmul.mubr.bf16.gmra.mxu0 %v1354
        %v1393 = vpop.f32.mrf.mxu0
        %v1394 = vadd.f32 0.0, %v1393
        %v1395 = vpop.f32.mrf.mxu0
        %v1396 = vpop.f32.mrf.mxu0
        %v1397 = vpop.f32.mrf.mxu0
        %1398 = vdwg.mxu0
        %v1399 = vadd.f32 %v1236, %v1394
        %1400 = vrot.lane.b32.xlu0 %v919, 104
        %v1401 = vpop.permute.xlu0 %1400
        %1402 = vrot.lane.b32.xlu0 %v1035, 104
        %v1403 = vpop.permute.xlu0 %1402
        %v1405 = vsel %vm922, %v1401, 0
        %v1408 = vsel %vm922, %v1403, 0
        %1410 = vmatprep.subr.bf16.mxu0 0
        %1411 = vmatpush1.bf16.xpose.msra.mxu0 0
        %1412 = vmatprep.subr.bf16.mxu0 0
        %1413 = vmatpush1.bf16.xpose.msra.mxu0 0
        %1414 = vmatprep.subr.bf16.mxu0 0
        %1415 = vmatpush1.bf16.xpose.msra.mxu0 0
        %1416 = vmatprep.subr.bf16.mxu0 0
        %1417 = vmatpush1.bf16.xpose.msra.mxu0 0
        %1418 = vmatprep.subr.bf16.mxu0 0
        %1419 = vmatpush1.bf16.xpose.msra.mxu0 0
        %1420 = vmatprep.subr.bf16.mxu0 0
        %1421 = vmatpush1.bf16.xpose.msra.mxu0 0
        %1422 = vmatprep.subr.bf16.mxu0 0
        %1423 = vmatpush1.bf16.xpose.msra.mxu0 0
        %1424 = vmatprep.subr.bf16.mxu0 0
        %1425 = vmatpush1.bf16.xpose.msra.mxu0 %v1408
        %1426 = vmatprep.subr.bf16.mxu0 0
        %1427 = vmatpush2.bf16.xpose.msra.mxu0 0
        %1428 = vmatprep.subr.bf16.mxu0 0
        %1429 = vmatpush2.bf16.xpose.msra.mxu0 0
        %1430 = vmatprep.subr.bf16.mxu0 0
        %1431 = vmatpush2.bf16.xpose.msra.mxu0 0
        %1432 = vmatprep.subr.bf16.mxu0 0
        %1433 = vmatpush2.bf16.xpose.msra.mxu0 0
        %1434 = vmatprep.subr.bf16.mxu0 0
        %1435 = vmatpush2.bf16.xpose.msra.mxu0 0
        %1436 = vmatprep.subr.bf16.mxu0 0
        %1437 = vmatpush2.bf16.xpose.msra.mxu0 0
        %1438 = vmatprep.subr.bf16.mxu0 0
        %1439 = vmatpush2.bf16.xpose.msra.mxu0 0
        %1440 = vmatprep.subr.bf16.mxu0 0
        %1441 = vmatpush2.bf16.xpose.msra.mxu0 0
        %1442 = vmatprep.mubr.bf16.mxu0 0
        %1443 = vmatmul.mubr.bf16.gmra.mxu0 %v1405
        %v1444 = vpop.f32.mrf.mxu0
        %v1445 = vadd.f32 0.0, %v1444
        %v1446 = vpop.f32.mrf.mxu0
        %v1447 = vpop.f32.mrf.mxu0
        %v1448 = vpop.f32.mrf.mxu0
        %1449 = vdwg.mxu0
        %v1450 = vsel %vm922, %v1445, -inf
        %1451 = vmax.xlane.f32.xlu0 %v1450
        %v1452 = vpop.xlane.xlu0 %1451
        %v1453 = vsub.f32 %v1445, %v1452
        %v1454 = vmul.f32 %v1453, 1.442695
        %v1455 = vpow.pop %v1454
        %v1456 = vsel %vm922, %v1455, 0.0
        %1457 = vadd.xlane.f32.xlu0 %v1456
        %v1458 = vpop.xlane.xlu0 %1457
        %v1459 = vrcp.pop %v1458
        %v1460 = vmul.f32 %v1455, %v1459
        %v1461 = vpack.c.bf16 %v1460, %v1460
        %1462 = vrot.lane.b32.xlu0 %v1098, 104
        %v1463 = vpop.permute.xlu0 %1462
        %v1465 = vsel %vm922, %v1461, 0
        %v1468 = vsel %vm984, %v1463, 0
        %1470 = vmatprep.subr.bf16.mxu0 0
        %1471 = vmatpush1.bf16.msra.mxu0 0
        %1472 = vmatprep.subr.bf16.mxu0 0
        %1473 = vmatpush1.bf16.msra.mxu0 0
        %1474 = vmatprep.subr.bf16.mxu0 0
        %1475 = vmatpush1.bf16.msra.mxu0 0
        %1476 = vmatprep.subr.bf16.mxu0 0
        %1477 = vmatpush1.bf16.msra.mxu0 0
        %1478 = vmatprep.subr.bf16.mxu0 0
        %1479 = vmatpush1.bf16.msra.mxu0 0
        %1480 = vmatprep.subr.bf16.mxu0 0
        %1481 = vmatpush1.bf16.msra.mxu0 0
        %1482 = vmatprep.subr.bf16.mxu0 0
        %1483 = vmatpush1.bf16.msra.mxu0 0
        %1484 = vmatprep.subr.bf16.mxu0 0
        %1485 = vmatpush1.bf16.msra.mxu0 %v1468
        %1486 = vmatprep.subr.bf16.mxu0 0
        %1487 = vmatpush2.bf16.msra.mxu0 0
        %1488 = vmatprep.subr.bf16.mxu0 0
        %1489 = vmatpush2.bf16.msra.mxu0 0
        %1490 = vmatprep.subr.bf16.mxu0 0
        %1491 = vmatpush2.bf16.msra.mxu0 0
        %1492 = vmatprep.subr.bf16.mxu0 0
        %1493 = vmatpush2.bf16.msra.mxu0 0
        %1494 = vmatprep.subr.bf16.mxu0 0
        %1495 = vmatpush2.bf16.msra.mxu0 0
        %1496 = vmatprep.subr.bf16.mxu0 0
        %1497 = vmatpush2.bf16.msra.mxu0 0
        %1498 = vmatprep.subr.bf16.mxu0 0
        %1499 = vmatpush2.bf16.msra.mxu0 0
        %1500 = vmatprep.subr.bf16.mxu0 0
        %1501 = vmatpush2.bf16.msra.mxu0 0
        %1502 = vmatprep.mubr.bf16.mxu0 0
        %1503 = vmatmul.mubr.bf16.gmra.mxu0 %v1465
        %v1504 = vpop.f32.mrf.mxu0
        %v1505 = vadd.f32 0.0, %v1504
        %v1506 = vpop.f32.mrf.mxu0
        %v1507 = vpop.f32.mrf.mxu0
        %v1508 = vpop.f32.mrf.mxu0
        %1509 = vdwg.mxu0
        %v1510 = vpack.c.bf16 %v1505, %v1505
        %v1511 = vld [vmem:[#allocation13 + $0xc] sm:$0xf]
        %v1513 = vsel %vm922, %v1510, 0
        %v1516 = vsel %vm984, %v1511, 0
        %1518 = vmatprep.subr.bf16.mxu0 0
        %1519 = vmatpush1.bf16.msra.mxu0 0
        %1520 = vmatprep.subr.bf16.mxu0 0
        %1521 = vmatpush1.bf16.msra.mxu0 0
        %1522 = vmatprep.subr.bf16.mxu0 0
        %1523 = vmatpush1.bf16.msra.mxu0 0
        %1524 = vmatprep.subr.bf16.mxu0 0
        %1525 = vmatpush1.bf16.msra.mxu0 0
        %1526 = vmatprep.subr.bf16.mxu0 0
        %1527 = vmatpush1.bf16.msra.mxu0 0
        %1528 = vmatprep.subr.bf16.mxu0 0
        %1529 = vmatpush1.bf16.msra.mxu0 0
        %1530 = vmatprep.subr.bf16.mxu0 0
        %1531 = vmatpush1.bf16.msra.mxu0 0
        %1532 = vmatprep.subr.bf16.mxu0 0
        %1533 = vmatpush1.bf16.msra.mxu0 %v1516
        %1534 = vmatprep.subr.bf16.mxu0 0
        %1535 = vmatpush2.bf16.msra.mxu0 0
        %1536 = vmatprep.subr.bf16.mxu0 0
        %1537 = vmatpush2.bf16.msra.mxu0 0
        %1538 = vmatprep.subr.bf16.mxu0 0
        %1539 = vmatpush2.bf16.msra.mxu0 0
        %1540 = vmatprep.subr.bf16.mxu0 0
        %1541 = vmatpush2.bf16.msra.mxu0 0
        %1542 = vmatprep.subr.bf16.mxu0 0
        %1543 = vmatpush2.bf16.msra.mxu0 0
        %1544 = vmatprep.subr.bf16.mxu0 0
        %1545 = vmatpush2.bf16.msra.mxu0 0
        %1546 = vmatprep.subr.bf16.mxu0 0
        %1547 = vmatpush2.bf16.msra.mxu0 0
        %1548 = vmatprep.subr.bf16.mxu0 0
        %1549 = vmatpush2.bf16.msra.mxu0 0
        %1550 = vmatprep.mubr.bf16.mxu0 0
        %1551 = vmatmul.mubr.bf16.gmra.mxu0 %v1513
        %v1552 = vpop.f32.mrf.mxu0
        %v1553 = vadd.f32 0.0, %v1552
        %v1554 = vpop.f32.mrf.mxu0
        %v1555 = vpop.f32.mrf.mxu0
        %v1556 = vpop.f32.mrf.mxu0
        %1557 = vdwg.mxu0
        %v1558 = vadd.f32 %v1399, %v1553
        %v1559 = vld [vmem:[#allocation15] sm:$0x1]
        %v1561 = vlaneseq
        %v1562 = vshrl.u32 %v1561, 7
        %v1563 = vsub.s32 0, %v1562
        %v1564 = vrot.slane %v1559, %v1563
        %v1566 = vadd.f32 %v1558, %v1564
        %v1567 = vadd.f32 %v849, %v1566
        %v1568 = vld [vmem:[%s14] sm:$0x1]
        %v1569 = vld [vmem:[%s15] sm:$0x1]
        %v1570 = vsel %vm874, %v1567, 0.0
        %1571 = vadd.xlane.f32.xlu0 %v1570
        %v1572 = vpop.xlane.xlu0 %1571
        %v1573 = vrcp.pop 32.0
        %v1574 = vmul.f32 %v1572, %v1573
        %v1575 = vsub.f32 %v1567, %v1574
        %v1576 = vmul.f32 %v1575, %v1575
        %v1577 = vsel %vm874, %v1576, 0.0
        %1578 = vadd.xlane.f32.xlu0 %v1577
        %v1579 = vpop.xlane.xlu0 %1578
        %v1580 = vmul.f32 %v1579, %v1573
        %v1581 = vadd.f32 %v1580, 1e-05
        %v1582 = vrsqrt.pop %v1581
        %v1583 = vmul.f32 %v1575, %v1582
        %v1585 = vlaneseq
        %v1586 = vshrl.u32 %v1585, 7
        %v1587 = vsub.s32 0, %v1586
        %v1588 = vrot.slane %v1568, %v1587
        %v1590 = vmul.f32 %v1583, %v1588
        %v1592 = vlaneseq
        %v1593 = vshrl.u32 %v1592, 7
        %v1594 = vsub.s32 0, %v1593
        %v1595 = vrot.slane %v1569, %v1594
        %v1597 = vadd.f32 %v1590, %v1595
        %v1598 = vpack.c.bf16 %v1597, %v1597
        %v1599 = vld [vmem:[%s10] sm:$0xf]
        %v1600 = vld [vmem:[%s10 + $0x4] sm:$0xf]
        %v1601 = vld [vmem:[%s10 + $0x8] sm:$0xf]
        %v1602 = vld [vmem:[%s10 + $0xc] sm:$0xf]
        %v1603 = vld [vmem:[%s11] sm:$0x1]
        %v1605 = vlaneseq
        %v1606 = vshrl.u32 %v1605, 7
        %v1607 = vsub.s32 0, %v1606
        %v1608 = vrot.slane %v1603, %v1607
        %v1614 = vunpack.c.l.b16 %v1599
        %v1615 = vunpack.c.l.b16 %v1600
        %v1616 = vunpack.c.l.b16 %v1601
        %v1617 = vunpack.c.l.b16 %v1602
        %v1618 = vpack.c.b16 %v1615, %v1614
        %v1619 = vpack.c.b16 %v1617, %v1616
        %v1623 = vsel %vm874, %v1598, 0
        %1625 = vmatprep.subr.bf16.mxu0 0
        %1626 = vmatpush1.bf16.msra.mxu0 0
        %1627 = vmatprep.subr.bf16.mxu0 0
        %1628 = vmatpush1.bf16.msra.mxu0 0
        %1629 = vmatprep.subr.bf16.mxu0 0
        %1630 = vmatpush1.bf16.msra.mxu0 0
        %1631 = vmatprep.subr.bf16.mxu0 0
        %1632 = vmatpush1.bf16.msra.mxu0 0
        %1633 = vmatprep.subr.bf16.mxu0 0
        %1634 = vmatpush1.bf16.msra.mxu0 0
        %1635 = vmatprep.subr.bf16.mxu0 0
        %1636 = vmatpush1.bf16.msra.mxu0 0
        %1637 = vmatprep.subr.bf16.mxu0 0
        %1638 = vmatpush1.bf16.msra.mxu0 %v1619
        %1639 = vmatprep.subr.bf16.mxu0 0
        %1640 = vmatpush1.bf16.msra.mxu0 %v1618
        %1641 = vmatprep.subr.bf16.mxu0 0
        %1642 = vmatpush2.bf16.msra.mxu0 0
        %1643 = vmatprep.subr.bf16.mxu0 0
        %1644 = vmatpush2.bf16.msra.mxu0 0
        %1645 = vmatprep.subr.bf16.mxu0 0
        %1646 = vmatpush2.bf16.msra.mxu0 0
        %1647 = vmatprep.subr.bf16.mxu0 0
        %1648 = vmatpush2.bf16.msra.mxu0 0
        %1649 = vmatprep.subr.bf16.mxu0 0
        %1650 = vmatpush2.bf16.msra.mxu0 0
        %1651 = vmatprep.subr.bf16.mxu0 0
        %1652 = vmatpush2.bf16.msra.mxu0 0
        %1653 = vmatprep.subr.bf16.mxu0 0
        %1654 = vmatpush2.bf16.msra.mxu0 0
        %1655 = vmatprep.subr.bf16.mxu0 0
        %1656 = vmatpush2.bf16.msra.mxu0 0
        %1657 = vmatprep.mubr.bf16.mxu0 0
        %1658 = vmatmul.mubr.bf16.gmra.mxu0 %v1623
        %v1659 = vpop.f32.mrf.mxu0
        %v1660 = vadd.f32 %v1608, %v1659
        %v1661 = vpop.f32.mrf.mxu0
        %v1662 = vpop.f32.mrf.mxu0
        %v1663 = vpop.f32.mrf.mxu0
        %1664 = vdwg.mxu0
        %v1665 = vmax.f32 %v1660, 0.0
        %v1666 = vpack.c.bf16 %v1665, %v1665
        %v1667 = vld [vmem:[%s12] sm:$0xf]
        %v1668 = vld [vmem:[%s12 + $0x4] sm:$0xf]
        %v1669 = vld [vmem:[%s12 + $0x8] sm:$0xf]
        %v1670 = vld [vmem:[%s12 + $0xc] sm:$0xf]
        %v1671 = vld [vmem:[%s12 + $0x10] sm:$0xf]
        %v1672 = vld [vmem:[%s12 + $0x14] sm:$0xf]
        %v1673 = vld [vmem:[%s12 + $0x18] sm:$0xf]
        %v1674 = vld [vmem:[%s12 + $0x1c] sm:$0xf]
        %v1675 = vld [vmem:[%s13] sm:$0x1]
        %v1677 = vlaneseq
        %v1678 = vshrl.u32 %v1677, 7
        %v1679 = vsub.s32 0, %v1678
        %v1680 = vrot.slane %v1675, %v1679
        %v1690 = vunpack.c.l.b16 %v1667
        %v1691 = vunpack.c.l.b16 %v1668
        %v1692 = vunpack.c.l.b16 %v1669
        %v1693 = vunpack.c.l.b16 %v1670
        %v1694 = vunpack.c.l.b16 %v1671
        %v1695 = vunpack.c.l.b16 %v1672
        %v1696 = vunpack.c.l.b16 %v1673
        %v1697 = vunpack.c.l.b16 %v1674
        %v1698 = vpack.c.b16 %v1691, %v1690
        %v1699 = vpack.c.b16 %v1693, %v1692
        %v1700 = vpack.c.b16 %v1695, %v1694
        %v1701 = vpack.c.b16 %v1697, %v1696
        %vm1706 = vcmask 523264
        %v1708 = vsel %vm1706, %v1666, 0
        %1710 = vmatprep.subr.bf16.mxu0 0
        %1711 = vmatpush1.bf16.msra.mxu0 0
        %1712 = vmatprep.subr.bf16.mxu0 0
        %1713 = vmatpush1.bf16.msra.mxu0 0
        %1714 = vmatprep.subr.bf16.mxu0 0
        %1715 = vmatpush1.bf16.msra.mxu0 0
        %1716 = vmatprep.subr.bf16.mxu0 0
        %1717 = vmatpush1.bf16.msra.mxu0 0
        %1718 = vmatprep.subr.bf16.mxu0 0
        %1719 = vmatpush1.bf16.msra.mxu0 %v1701
        %1720 = vmatprep.subr.bf16.mxu0 0
        %1721 = vmatpush1.bf16.msra.mxu0 %v1700
        %1722 = vmatprep.subr.bf16.mxu0 0
        %1723 = vmatpush1.bf16.msra.mxu0 %v1699
        %1724 = vmatprep.subr.bf16.mxu0 0
        %1725 = vmatpush1.bf16.msra.mxu0 %v1698
        %1726 = vmatprep.subr.bf16.mxu0 0
        %1727 = vmatpush2.bf16.msra.mxu0 0
        %1728 = vmatprep.subr.bf16.mxu0 0
        %1729 = vmatpush2.bf16.msra.mxu0 0
        %1730 = vmatprep.subr.bf16.mxu0 0
        %1731 = vmatpush2.bf16.msra.mxu0 0
        %1732 = vmatprep.subr.bf16.mxu0 0
        %1733 = vmatpush2.bf16.msra.mxu0 0
        %1734 = vmatprep.subr.bf16.mxu0 0
        %1735 = vmatpush2.bf16.msra.mxu0 0
        %1736 = vmatprep.subr.bf16.mxu0 0
        %1737 = vmatpush2.bf16.msra.mxu0 0
        %1738 = vmatprep.subr.bf16.mxu0 0
        %1739 = vmatpush2.bf16.msra.mxu0 0
        %1740 = vmatprep.subr.bf16.mxu0 0
        %1741 = vmatpush2.bf16.msra.mxu0 0
        %1742 = vmatprep.mubr.bf16.mxu0 0
        %1743 = vmatmul.mubr.bf16.gmra.mxu0 %v1708
        %v1744 = vpop.f32.mrf.mxu0
        %v1745 = vadd.f32 %v1680, %v1744
        %v1746 = vpop.f32.mrf.mxu0
        %v1747 = vpop.f32.mrf.mxu0
        %v1748 = vpop.f32.mrf.mxu0
        %1749 = vdwg.mxu0
        %v1750 = vadd.f32 %v1597, %v1745
        %v1751 = vld [vmem:[%s16] sm:$0x1]
        %v1752 = vld [vmem:[%s17] sm:$0x1]
        %v1753 = vsel %vm874, %v1750, 0.0
        %1754 = vadd.xlane.f32.xlu0 %v1753
        %v1755 = vpop.xlane.xlu0 %1754
        %v1756 = vmul.f32 %v1755, %v1573
        %v1757 = vsub.f32 %v1750, %v1756
        %v1758 = vmul.f32 %v1757, %v1757
        %v1759 = vsel %vm874, %v1758, 0.0
        %1760 = vadd.xlane.f32.xlu0 %v1759
        %v1761 = vpop.xlane.xlu0 %1760
        %v1762 = vmul.f32 %v1761, %v1573
        %v1763 = vadd.f32 %v1762, 1e-05
        %v1764 = vrsqrt.pop %v1763
        %v1765 = vmul.f32 %v1757, %v1764
        %v1767 = vlaneseq
        %v1768 = vshrl.u32 %v1767, 7
        %v1769 = vsub.s32 0, %v1768
        %v1770 = vrot.slane %v1751, %v1769
        %v1772 = vmul.f32 %v1765, %v1770
        %v1774 = vlaneseq
        %v1775 = vshrl.u32 %v1774, 7
        %v1776 = vsub.s32 0, %v1775
        %v1777 = vrot.slane %v1752, %v1776
        %v1779 = vadd.f32 %v1772, %v1777
        %1780 = vst.msk [vmem:[%s695] sm:$0xff] %vm874, %v1779
        %s1781 = sand.u32 %s448, 1
        %s1782 = scalar_lea.sflag [#allocation6], %s1781
        %s1783 = sand.u32 %s448, 1
        %s1784 = smul.addr %s1783, 8
        %s1785 = scalar_lea.vmem [#allocation16], %s1784
        // Predicated region
        $region125: #{tpu_custom_call.1} parent=91 // pred_check
          %p1786 = pneg %p458
        $region126: #{tpu_custom_call.1} parent=91 // pred_check_branch
          %1788 = sbr.rel (%p1786) target = $region128
        $region127: #{tpu_custom_call.1} parent=91 // pred_region
          %s1790 = ssub.s32 128, 128
          %1791 = vsyncadd %s1782, %s1790
          %s1792 = sadd.s32 %s41, %s40
          %s1793 = smul.addr %s1792, 128
          %s1794 = scalar_lea.hbm %s18, %s1793
          %s1796 = sshll.u32 %s1785, 4
          %s1797 = int_to_ptr.vmem [resolvable:$true] %s1796
          %1799 = dma.vmem_to_hbm [thread:$0]  %s1797, 128, %s1794, %s1782
        $region128: #{tpu_custom_call.1} parent=91 // pred_fallthru
          _
      $region92: #{tpu_custom_call.1} parent=5 // pred_fallthru
        _
      %p1800 = scmp.le.s32.totalorder 2, %s31
      // Predicated region
      $region129: #{tpu_custom_call.1} parent=5 // pred_check
        %p1801 = pneg %p1800
      $region130: #{tpu_custom_call.1} parent=5 // pred_check_branch
        %1803 = sbr.rel (%p1801) target = $region132
      $region131: #{tpu_custom_call.1} parent=5 // pred_region
        %s1804 = ssub.s32 %s31, 2
        // Predicated region
        $region133: #{tpu_custom_call.1} parent=131 // pred_check
          %p1805 = pneg %p464
        $region134: #{tpu_custom_call.1} parent=131 // pred_check_branch
          %1807 = sbr.rel (%p1805) target = $region136
        $region135: #{tpu_custom_call.1} parent=131 // pred_region
          %s1808 = sand.u32 %s449, 1
          %s1809 = scalar_lea.sflag [#allocation6], %s1808
          %s1810 = sand.u32 %s449, 1
          %s1811 = smul.addr %s1810, 8
          %s1812 = scalar_lea.vmem [#allocation16], %s1811
          %1813 = dma.done %s1809, 128
        $region136: #{tpu_custom_call.1} parent=131 // pred_fallthru
          _
      $region132: #{tpu_custom_call.1} parent=5 // pred_fallthru
        _
    $region6: #{tpu_custom_call.1} parent=1 // loop_footer
      %s35 = sadd.s32 1, %s31
    $region7: #{tpu_custom_call.1} parent=1 // loop_footer_branch
      %30 = sbr.rel target = $region3
    $region8: #{tpu_custom_call.1} parent=1 // loop_exit
      _
    %1814 = vsyncpa [#allocation5], 1
    %s1815 = scalar_lea.sflag [#allocation5], 1
    %1816 = vsyncpa %s1815, 1
    %1817 = vsyncpa [#allocation8], 1
    %1818 = vsyncpa [#allocation11], 1
    %1819 = vsyncpa [#allocation14], 1
    %1820 = vsyncpa [#allocation6], 1
    %s1821 = scalar_lea.sflag [#allocation6], 1
    %1822 = vsyncpa %s1821, 1

// kernel: tpu_custom_call.1
$region0: #{tpu_custom_call.1}
  #allocation0 [shape = 'u32[]', space=smem, size = 0x4, offset = 0x4, fixed_abs, tag = 'smem constant byte address 0x4 - core index']
  #allocation1 [shape = 'u32[144,128]{1,0:T(1,128)}', space=vmem, size = 0x12000, scoped, tag = 'internal scratch']
  #allocation2 [shape = 'bf16[8,32]{1,0:T(8,128)(2,1)}', space=vmem, size = 0x800, scoped, tag = 'scratch operand']
  #allocation3 [shape = 'bf16[8,32]{1,0:T(8,128)(2,1)}', space=vmem, size = 0x800, scoped, tag = 'scratch operand']
  %s0 = inlined_call_operand.vmem [shape: f32[2,8,32], index: 0, kind: input, shape index: {}]
  %s1 = inlined_call_operand.vmem [shape: f32[2,8,32], index: 1, kind: input, shape index: {}]
  %s2 = inlined_call_operand.vmem [shape: bf16[32,32], index: 2, kind: input, shape index: {}]
  %s3 = inlined_call_operand.hbm [shape: f32[1,32], index: 3, kind: input, shape index: {}]
  %s4 = inlined_call_operand.hbm [shape: bf16[32,32], index: 4, kind: input, shape index: {}]
  %s5 = inlined_call_operand.hbm [shape: f32[1,32], index: 5, kind: input, shape index: {}]
  %s6 = inlined_call_operand.hbm [shape: bf16[32,32], index: 6, kind: input, shape index: {}]
  %s7 = inlined_call_operand.hbm [shape: f32[1,32], index: 7, kind: input, shape index: {}]
  %s8 = inlined_call_operand.hbm [shape: bf16[32,32], index: 8, kind: input, shape index: {}]
  %s9 = inlined_call_operand.hbm [shape: f32[1,32], index: 9, kind: input, shape index: {}]
  %s10 = inlined_call_operand.vmem [shape: bf16[32,64], index: 10, kind: input, shape index: {}]
  %s11 = inlined_call_operand.vmem [shape: f32[1,64], index: 11, kind: input, shape index: {}]
  %s12 = inlined_call_operand.vmem [shape: bf16[64,32], index: 12, kind: input, shape index: {}]
  %s13 = inlined_call_operand.vmem [shape: f32[1,32], index: 13, kind: input, shape index: {}]
  %s14 = inlined_call_operand.vmem [shape: f32[1,32], index: 14, kind: input, shape index: {}]
  %s15 = inlined_call_operand.vmem [shape: f32[1,32], index: 15, kind: input, shape index: {}]
  %s16 = inlined_call_operand.vmem [shape: f32[1,32], index: 16, kind: input, shape index: {}]
  %s17 = inlined_call_operand.vmem [shape: f32[1,32], index: 17, kind: input, shape index: {}]
  %s18 = inlined_call_operand.hbm [shape: f32[2,8,32], index: 18, kind: output, shape index: {}]
  %s19 = sld [smem:[#allocation0]]
  $region137: #{tpu_custom_call.1} parent=0
    _
  %s21 = ssub.s32 1, %s19
  %s22 = scalar_select 0, %s21, %s19
  $region1: #{tpu_custom_call.1} parent=0
    #allocation4 [shape = 'u8[512]{0}', space=vmem, size = 0x400, scoped, tag = 'input window, operand 3, single buffered']
    #allocation5 [shape = 's32[2]{0}', space=sflag, size = 0x8, scoped, tag = 'scoped memory for tpu_custom_call.1']
    #allocation6 [shape = 's32[2]{0}', space=sflag, size = 0x8, scoped, tag = 'scoped memory for tpu_custom_call.1']
    #allocation7 [shape = 'u8[8192]{0}', space=vmem, size = 0x2000, scoped, tag = 'input window, operand 4, single buffered']
    #allocation8 [shape = 's32[1]{0}', space=sflag, size = 0x4, scoped, tag = 'scoped memory for tpu_custom_call.1']
    #allocation9 [shape = 'u8[512]{0}', space=vmem, size = 0x400, scoped, tag = 'input window, operand 5, single buffered']
    #allocation10 [shape = 'u8[8192]{0}', space=vmem, size = 0x2000, scoped, tag = 'input window, operand 6, single buffered']
    #allocation11 [shape = 's32[1]{0}', space=sflag, size = 0x4, scoped, tag = 'scoped memory for tpu_custom_call.1']
    #allocation12 [shape = 'u8[512]{0}', space=vmem, size = 0x400, scoped, tag = 'input window, operand 7, single buffered']
    #allocation13 [shape = 'u8[8192]{0}', space=vmem, size = 0x2000, scoped, tag = 'input window, operand 8, single buffered']
    #allocation14 [shape = 's32[1]{0}', space=sflag, size = 0x4, scoped, tag = 'scoped memory for tpu_custom_call.1']
    #allocation15 [shape = 'u8[512]{0}', space=vmem, size = 0x400, scoped, tag = 'input window, operand 9, single buffered']
    #allocation16 [shape = 'u8[8192]{0}', space=vmem, size = 0x2000, scoped, tag = 'output window, operand 0']
    %23 = vsyncpa [#allocation5], 0
    %24 = vsyncpa [#allocation8], 0
    %25 = vsyncpa [#allocation11], 0
    %26 = vsyncpa [#allocation14], 0
    %27 = vsyncpa [#allocation6], 0
    %s28 = scalar_lea.sflag [#allocation6], 1
    %29 = vsyncpa %s28, 0
    loop: start=0, step=1, limit=4
    $region2: #{tpu_custom_call.1} parent=1 // loop_pre_header
      _
    $region3: #{tpu_custom_call.1} parent=1 // loop_header
      %s31 = sphi 0, %s35
      %p32 = scmp.ge.s32.totalorder %s31, 4
      %s38 = sphi 0, %s50
      %s39 = sphi 0, %s46
      %s40 = sphi 0, %s38
      %s41 = sphi 0, %s39
      %s42 = sphi 0, %s40
      %s43 = sphi 0, %s41
      %s53 = sphi 0, %s55
      %s56 = sphi 0, %s53
      %s57 = sphi 0, %s56
      %s73 = sphi 0, %s57
      %s81 = sphi 0, %s83
      %s84 = sphi 0, %s81
      %s85 = sphi 0, %s84
      %s101 = sphi 0, %s85
      %s105 = sphi 0, %s105
      %s107 = sphi 0, %s105
      %s108 = sphi 0, %s107
      %s122 = sphi 0, %s108
      %s126 = sphi 0, %s126
      %s128 = sphi 0, %s126
      %s129 = sphi 0, %s128
      %s143 = sphi 0, %s129
      %s147 = sphi 0, %s147
      %s149 = sphi 0, %s147
      %s150 = sphi 0, %s149
      %s164 = sphi 0, %s150
      %s168 = sphi 0, %s168
      %s170 = sphi 0, %s168
      %s171 = sphi 0, %s170
      %s185 = sphi 0, %s171
      %s189 = sphi 0, %s189
      %s191 = sphi 0, %s189
      %s192 = sphi 0, %s191
      %s206 = sphi 0, %s192
      %s210 = sphi 0, %s210
      %s212 = sphi 0, %s210
      %s213 = sphi 0, %s212
      %s227 = sphi 0, %s213
      %s231 = sphi 0, %s231
      %s233 = sphi 0, %s231
      %s234 = sphi 0, %s233
      %s248 = sphi 0, %s234
      %s252 = sphi 0, %s252
      %s254 = sphi 0, %s252
      %s255 = sphi 0, %s254
      %s269 = sphi 0, %s255
      %s273 = sphi 0, %s273
      %s275 = sphi 0, %s273
      %s276 = sphi 0, %s275
      %s290 = sphi 0, %s276
      %s294 = sphi 0, %s294
      %s296 = sphi 0, %s294
      %s297 = sphi 0, %s296
      %s311 = sphi 0, %s297
      %s315 = sphi 0, %s315
      %s317 = sphi 0, %s315
      %s318 = sphi 0, %s317
      %s332 = sphi 0, %s318
      %s336 = sphi 0, %s336
      %s338 = sphi 0, %s336
      %s339 = sphi 0, %s338
      %s353 = sphi 0, %s339
      %s357 = sphi 0, %s357
      %s359 = sphi 0, %s357
      %s360 = sphi 0, %s359
      %s374 = sphi 0, %s360
      %s378 = sphi 0, %s378
      %s380 = sphi 0, %s378
      %s381 = sphi 0, %s380
      %s395 = sphi 0, %s381
      %s399 = sphi 0, %s399
      %s401 = sphi 0, %s399
      %s402 = sphi 0, %s401
      %s416 = sphi 0, %s402
      %s420 = sphi 0, %s420
      %s422 = sphi 0, %s420
      %s423 = sphi 0, %s422
      %s437 = sphi 0, %s423
      %s445 = sphi 0, %s447
      %s448 = sphi 0, %s445
      %s449 = sphi 0, %s448
      %s465 = sphi 0, %s449
    $region4: #{tpu_custom_call.1} parent=1 // loop_header_branch
      %34 = sbr.rel (%p32) target = $region8
    $region5: #{tpu_custom_call.1} parent=1 // loop_body
      %s36 = ssub.s32 %s31, 1
      %s37 = ssub.s32 %s31, 2
      %s44 = sadd.s32 1, %s39
      %p45 = scmp.ge.s32.totalorder %s44, 1
      %s46 = scalar_select %p45, 0, %s44
      %s47 = sadd.s32 1, %s38
      %s48 = scalar_select %p45, %s47, %s38
      %p49 = scmp.ge.s32.totalorder %s48, 2
      %s50 = scalar_select %p49, 0, %s48
      %s51 = ssub.s32 %s38, %s50
      %p52 = scmp.eq.s32.totalorder %s51, 0
      %s54 = sadd.s32 %s53, 1
      %s55 = scalar_select %p52, %s53, %s54
      %p58 = pneg %p52
      %p59 = scmp.eq.s32.totalorder %s31, 1
      %p60 = por %p58, %p59
      %p61 = scmp.ne.s32.totalorder %s53, %s56
      %p62 = scmp.eq.s32.totalorder %s31, 0
      %p63 = por %p61, %p62
      %p64 = scmp.ne.s32.totalorder %s53, %s56
      %p65 = scmp.eq.s32.totalorder %s36, 1
      %p66 = por %p64, %p65
      %p67 = scmp.ne.s32.totalorder %s56, %s57
      %p68 = scmp.eq.s32.totalorder %s36, 0
      %p69 = por %p67, %p68
      %p70 = scmp.ne.s32.totalorder %s56, %s57
      %p71 = scmp.eq.s32.totalorder %s37, 1
      %p72 = por %p70, %p71
      %p74 = scmp.ne.s32.totalorder %s57, %s73
      %p75 = scmp.eq.s32.totalorder %s37, 0
      %p76 = por %p74, %p75
      %s77 = ssub.s32 %s38, %s50
      %s78 = ssub.s32 %s39, %s46
      %s79 = sor.u32 %s77, %s78
      %p80 = scmp.eq.s32.totalorder %s79, 0
      %s82 = sadd.s32 %s81, 1
      %s83 = scalar_select %p80, %s81, %s82
      %p86 = pneg %p80
      %p87 = scmp.eq.s32.totalorder %s31, 1
      %p88 = por %p86, %p87
      %p89 = scmp.ne.s32.totalorder %s81, %s84
      %p90 = scmp.eq.s32.totalorder %s31, 0
      %p91 = por %p89, %p90
      %p92 = scmp.ne.s32.totalorder %s81, %s84
      %p93 = scmp.eq.s32.totalorder %s36, 1
      %p94 = por %p92, %p93
      %p95 = scmp.ne.s32.totalorder %s84, %s85
      %p96 = scmp.eq.s32.totalorder %s36, 0
      %p97 = por %p95, %p96
      %p98 = scmp.ne.s32.totalorder %s84, %s85
      %p99 = scmp.eq.s32.totalorder %s37, 1
      %p100 = por %p98, %p99
      %p102 = scmp.ne.s32.totalorder %s85, %s101
      %p103 = scmp.eq.s32.totalorder %s37, 0
      %p104 = por %p102, %p103
      %s106 = sadd.s32 %s105, 1
      %p109 = scmp.eq.s32.totalorder %s31, 1
      %p110 = scmp.ne.s32.totalorder %s105, %s107
      %p111 = scmp.eq.s32.totalorder %s31, 0
      %p112 = por %p110, %p111
      %p113 = scmp.ne.s32.totalorder %s105, %s107
      %p114 = scmp.eq.s32.totalorder %s36, 1
      %p115 = por %p113, %p114
      %p116 = scmp.ne.s32.totalorder %s107, %s108
      %p117 = scmp.eq.s32.totalorder %s36, 0
      %p118 = por %p116, %p117
      %p119 = scmp.ne.s32.totalorder %s107, %s108
      %p120 = scmp.eq.s32.totalorder %s37, 1
      %p121 = por %p119, %p120
      %p123 = scmp.ne.s32.totalorder %s108, %s122
      %p124 = scmp.eq.s32.totalorder %s37, 0
      %p125 = por %p123, %p124
      %s127 = sadd.s32 %s126, 1
      %p130 = scmp.eq.s32.totalorder %s31, 1
      %p131 = scmp.ne.s32.totalorder %s126, %s128
      %p132 = scmp.eq.s32.totalorder %s31, 0
      %p133 = por %p131, %p132
      %p134 = scmp.ne.s32.totalorder %s126, %s128
      %p135 = scmp.eq.s32.totalorder %s36, 1
      %p136 = por %p134, %p135
      %p137 = scmp.ne.s32.totalorder %s128, %s129
      %p138 = scmp.eq.s32.totalorder %s36, 0
      %p139 = por %p137, %p138
      %p140 = scmp.ne.s32.totalorder %s128, %s129
      %p141 = scmp.eq.s32.totalorder %s37, 1
      %p142 = por %p140, %p141
      %p144 = scmp.ne.s32.totalorder %s129, %s143
      %p145 = scmp.eq.s32.totalorder %s37, 0
      %p146 = por %p144, %p145
      %s148 = sadd.s32 %s147, 1
      %p151 = scmp.eq.s32.totalorder %s31, 1
      %p152 = scmp.ne.s32.totalorder %s147, %s149
      %p153 = scmp.eq.s32.totalorder %s31, 0
      %p154 = por %p152, %p153
      %p155 = scmp.ne.s32.totalorder %s147, %s149
      %p156 = scmp.eq.s32.totalorder %s36, 1
      %p157 = por %p155, %p156
      %p158 = scmp.ne.s32.totalorder %s149, %s150
      %p159 = scmp.eq.s32.totalorder %s36, 0
      %p160 = por %p158, %p159
      %p161 = scmp.ne.s32.totalorder %s149, %s150
      %p162 = scmp.eq.s32.totalorder %s37, 1
      %p163 = por %p161, %p162
      %p165 = scmp.ne.s32.totalorder %s150, %s164
      %p166 = scmp.eq.s32.totalorder %s37, 0
      %p167 = por %p165, %p166
      %s169 = sadd.s32 %s168, 1
      %p172 = scmp.eq.s32.totalorder %s31, 1
      %p173 = scmp.ne.s32.totalorder %s168, %s170
      %p174 = scmp.eq.s32.totalorder %s31, 0
      %p175 = por %p173, %p174
      %p176 = scmp.ne.s32.totalorder %s168, %s170
      %p177 = scmp.eq.s32.totalorder %s36, 1
      %p178 = por %p176, %p177
      %p179 = scmp.ne.s32.totalorder %s170, %s171
      %p180 = scmp.eq.s32.totalorder %s36, 0
      %p181 = por %p179, %p180
      %p182 = scmp.ne.s32.totalorder %s170, %s171
      %p183 = scmp.eq.s32.totalorder %s37, 1
      %p184 = por %p182, %p183
      %p186 = scmp.ne.s32.totalorder %s171, %s185
      %p187 = scmp.eq.s32.totalorder %s37, 0
      %p188 = por %p186, %p187
      %s190 = sadd.s32 %s189, 1
      %p193 = scmp.eq.s32.totalorder %s31, 1
      %p194 = scmp.ne.s32.totalorder %s189, %s191
      %p195 = scmp.eq.s32.totalorder %s31, 0
      %p196 = por %p194, %p195
      %p197 = scmp.ne.s32.totalorder %s189, %s191
      %p198 = scmp.eq.s32.totalorder %s36, 1
      %p199 = por %p197, %p198
      %p200 = scmp.ne.s32.totalorder %s191, %s192
      %p201 = scmp.eq.s32.totalorder %s36, 0
      %p202 = por %p200, %p201
      %p203 = scmp.ne.s32.totalorder %s191, %s192
      %p204 = scmp.eq.s32.totalorder %s37, 1
      %p205 = por %p203, %p204
      %p207 = scmp.ne.s32.totalorder %s192, %s206
      %p208 = scmp.eq.s32.totalorder %s37, 0
      %p209 = por %p207, %p208
      %s211 = sadd.s32 %s210, 1
      %p214 = scmp.eq.s32.totalorder %s31, 1
      %p215 = scmp.ne.s32.totalorder %s210, %s212
      %p216 = scmp.eq.s32.totalorder %s31, 0
      %p217 = por %p215, %p216
      %p218 = scmp.ne.s32.totalorder %s210, %s212
      %p219 = scmp.eq.s32.totalorder %s36, 1
      %p220 = por %p218, %p219
      %p221 = scmp.ne.s32.totalorder %s212, %s213
      %p222 = scmp.eq.s32.totalorder %s36, 0
      %p223 = por %p221, %p222
      %p224 = scmp.ne.s32.totalorder %s212, %s213
      %p225 = scmp.eq.s32.totalorder %s37, 1
      %p226 = por %p224, %p225
      %p228 = scmp.ne.s32.totalorder %s213, %s227
      %p229 = scmp.eq.s32.totalorder %s37, 0
      %p230 = por %p228, %p229
      %s232 = sadd.s32 %s231, 1
      %p235 = scmp.eq.s32.totalorder %s31, 1
      %p236 = scmp.ne.s32.totalorder %s231, %s233
      %p237 = scmp.eq.s32.totalorder %s31, 0
      %p238 = por %p236, %p237
      %p239 = scmp.ne.s32.totalorder %s231, %s233
      %p240 = scmp.eq.s32.totalorder %s36, 1
      %p241 = por %p239, %p240
      %p242 = scmp.ne.s32.totalorder %s233, %s234
      %p243 = scmp.eq.s32.totalorder %s36, 0
      %p244 = por %p242, %p243
      %p245 = scmp.ne.s32.totalorder %s233, %s234
      %p246 = scmp.eq.s32.totalorder %s37, 1
      %p247 = por %p245, %p246
      %p249 = scmp.ne.s32.totalorder %s234, %s248
      %p250 = scmp.eq.s32.totalorder %s37, 0
      %p251 = por %p249, %p250
      %s253 = sadd.s32 %s252, 1
      %p256 = scmp.eq.s32.totalorder %s31, 1
      %p257 = scmp.ne.s32.totalorder %s252, %s254
      %p258 = scmp.eq.s32.totalorder %s31, 0
      %p259 = por %p257, %p258
      %p260 = scmp.ne.s32.totalorder %s252, %s254
      %p261 = scmp.eq.s32.totalorder %s36, 1
      %p262 = por %p260, %p261
      %p263 = scmp.ne.s32.totalorder %s254, %s255
      %p264 = scmp.eq.s32.totalorder %s36, 0
      %p265 = por %p263, %p264
      %p266 = scmp.ne.s32.totalorder %s254, %s255
      %p267 = scmp.eq.s32.totalorder %s37, 1
      %p268 = por %p266, %p267
      %p270 = scmp.ne.s32.totalorder %s255, %s269
      %p271 = scmp.eq.s32.totalorder %s37, 0
      %p272 = por %p270, %p271
      %s274 = sadd.s32 %s273, 1
      %p277 = scmp.eq.s32.totalorder %s31, 1
      %p278 = scmp.ne.s32.totalorder %s273, %s275
      %p279 = scmp.eq.s32.totalorder %s31, 0
      %p280 = por %p278, %p279
      %p281 = scmp.ne.s32.totalorder %s273, %s275
      %p282 = scmp.eq.s32.totalorder %s36, 1
      %p283 = por %p281, %p282
      %p284 = scmp.ne.s32.totalorder %s275, %s276
      %p285 = scmp.eq.s32.totalorder %s36, 0
      %p286 = por %p284, %p285
      %p287 = scmp.ne.s32.totalorder %s275, %s276
      %p288 = scmp.eq.s32.totalorder %s37, 1
      %p289 = por %p287, %p288
      %p291 = scmp.ne.s32.totalorder %s276, %s290
      %p292 = scmp.eq.s32.totalorder %s37, 0
      %p293 = por %p291, %p292
      %s295 = sadd.s32 %s294, 1
      %p298 = scmp.eq.s32.totalorder %s31, 1
      %p299 = scmp.ne.s32.totalorder %s294, %s296
      %p300 = scmp.eq.s32.totalorder %s31, 0
      %p301 = por %p299, %p300
      %p302 = scmp.ne.s32.totalorder %s294, %s296
      %p303 = scmp.eq.s32.totalorder %s36, 1
      %p304 = por %p302, %p303
      %p305 = scmp.ne.s32.totalorder %s296, %s297
      %p306 = scmp.eq.s32.totalorder %s36, 0
      %p307 = por %p305, %p306
      %p308 = scmp.ne.s32.totalorder %s296, %s297
      %p309 = scmp.eq.s32.totalorder %s37, 1
      %p310 = por %p308, %p309
      %p312 = scmp.ne.s32.totalorder %s297, %s311
      %p313 = scmp.eq.s32.totalorder %s37, 0
      %p314 = por %p312, %p313
      %s316 = sadd.s32 %s315, 1
      %p319 = scmp.eq.s32.totalorder %s31, 1
      %p320 = scmp.ne.s32.totalorder %s315, %s317
      %p321 = scmp.eq.s32.totalorder %s31, 0
      %p322 = por %p320, %p321
      %p323 = scmp.ne.s32.totalorder %s315, %s317
      %p324 = scmp.eq.s32.totalorder %s36, 1
      %p325 = por %p323, %p324
      %p326 = scmp.ne.s32.totalorder %s317, %s318
      %p327 = scmp.eq.s32.totalorder %s36, 0
      %p328 = por %p326, %p327
      %p329 = scmp.ne.s32.totalorder %s317, %s318
      %p330 = scmp.eq.s32.totalorder %s37, 1
      %p331 = por %p329, %p330
      %p333 = scmp.ne.s32.totalorder %s318, %s332
      %p334 = scmp.eq.s32.totalorder %s37, 0
      %p335 = por %p333, %p334
      %s337 = sadd.s32 %s336, 1
      %p340 = scmp.eq.s32.totalorder %s31, 1
      %p341 = scmp.ne.s32.totalorder %s336, %s338
      %p342 = scmp.eq.s32.totalorder %s31, 0
      %p343 = por %p341, %p342
      %p344 = scmp.ne.s32.totalorder %s336, %s338
      %p345 = scmp.eq.s32.totalorder %s36, 1
      %p346 = por %p344, %p345
      %p347 = scmp.ne.s32.totalorder %s338, %s339
      %p348 = scmp.eq.s32.totalorder %s36, 0
      %p349 = por %p347, %p348
      %p350 = scmp.ne.s32.totalorder %s338, %s339
      %p351 = scmp.eq.s32.totalorder %s37, 1
      %p352 = por %p350, %p351
      %p354 = scmp.ne.s32.totalorder %s339, %s353
      %p355 = scmp.eq.s32.totalorder %s37, 0
      %p356 = por %p354, %p355
      %s358 = sadd.s32 %s357, 1
      %p361 = scmp.eq.s32.totalorder %s31, 1
      %p362 = scmp.ne.s32.totalorder %s357, %s359
      %p363 = scmp.eq.s32.totalorder %s31, 0
      %p364 = por %p362, %p363
      %p365 = scmp.ne.s32.totalorder %s357, %s359
      %p366 = scmp.eq.s32.totalorder %s36, 1
      %p367 = por %p365, %p366
      %p368 = scmp.ne.s32.totalorder %s359, %s360
      %p369 = scmp.eq.s32.totalorder %s36, 0
      %p370 = por %p368, %p369
      %p371 = scmp.ne.s32.totalorder %s359, %s360
      %p372 = scmp.eq.s32.totalorder %s37, 1
      %p373 = por %p371, %p372
      %p375 = scmp.ne.s32.totalorder %s360, %s374
      %p376 = scmp.eq.s32.totalorder %s37, 0
      %p377 = por %p375, %p376
      %s379 = sadd.s32 %s378, 1
      %p382 = scmp.eq.s32.totalorder %s31, 1
      %p383 = scmp.ne.s32.totalorder %s378, %s380
      %p384 = scmp.eq.s32.totalorder %s31, 0
      %p385 = por %p383, %p384
      %p386 = scmp.ne.s32.totalorder %s378, %s380
      %p387 = scmp.eq.s32.totalorder %s36, 1
      %p388 = por %p386, %p387
      %p389 = scmp.ne.s32.totalorder %s380, %s381
      %p390 = scmp.eq.s32.totalorder %s36, 0
      %p391 = por %p389, %p390
      %p392 = scmp.ne.s32.totalorder %s380, %s381
      %p393 = scmp.eq.s32.totalorder %s37, 1
      %p394 = por %p392, %p393
      %p396 = scmp.ne.s32.totalorder %s381, %s395
      %p397 = scmp.eq.s32.totalorder %s37, 0
      %p398 = por %p396, %p397
      %s400 = sadd.s32 %s399, 1
      %p403 = scmp.eq.s32.totalorder %s31, 1
      %p404 = scmp.ne.s32.totalorder %s399, %s401
      %p405 = scmp.eq.s32.totalorder %s31, 0
      %p406 = por %p404, %p405
      %p407 = scmp.ne.s32.totalorder %s399, %s401
      %p408 = scmp.eq.s32.totalorder %s36, 1
      %p409 = por %p407, %p408
      %p410 = scmp.ne.s32.totalorder %s401, %s402
      %p411 = scmp.eq.s32.totalorder %s36, 0
      %p412 = por %p410, %p411
      %p413 = scmp.ne.s32.totalorder %s401, %s402
      %p414 = scmp.eq.s32.totalorder %s37, 1
      %p415 = por %p413, %p414
      %p417 = scmp.ne.s32.totalorder %s402, %s416
      %p418 = scmp.eq.s32.totalorder %s37, 0
      %p419 = por %p417, %p418
      %s421 = sadd.s32 %s420, 1
      %p424 = scmp.eq.s32.totalorder %s31, 1
      %p425 = scmp.ne.s32.totalorder %s420, %s422
      %p426 = scmp.eq.s32.totalorder %s31, 0
      %p427 = por %p425, %p426
      %p428 = scmp.ne.s32.totalorder %s420, %s422
      %p429 = scmp.eq.s32.totalorder %s36, 1
      %p430 = por %p428, %p429
      %p431 = scmp.ne.s32.totalorder %s422, %s423
      %p432 = scmp.eq.s32.totalorder %s36, 0
      %p433 = por %p431, %p432
      %p434 = scmp.ne.s32.totalorder %s422, %s423
      %p435 = scmp.eq.s32.totalorder %s37, 1
      %p436 = por %p434, %p435
      %p438 = scmp.ne.s32.totalorder %s423, %s437
      %p439 = scmp.eq.s32.totalorder %s37, 0
      %p440 = por %p438, %p439
      %s441 = ssub.s32 %s38, %s50
      %s442 = ssub.s32 %s39, %s46
      %s443 = sor.u32 %s441, %s442
      %p444 = scmp.eq.s32.totalorder %s443, 0
      %s446 = sadd.s32 %s445, 1
      %s447 = scalar_select %p444, %s445, %s446
      %p450 = pneg %p444
      %p451 = scmp.eq.s32.totalorder %s31, 1
      %p452 = por %p450, %p451
      %p453 = scmp.ne.s32.totalorder %s445, %s448
      %p454 = scmp.eq.s32.totalorder %s31, 0
      %p455 = por %p453, %p454
      %p456 = scmp.ne.s32.totalorder %s445, %s448
      %p457 = scmp.eq.s32.totalorder %s36, 1
      %p458 = por %p456, %p457
      %p459 = scmp.ne.s32.totalorder %s448, %s449
      %p460 = scmp.eq.s32.totalorder %s36, 0
      %p461 = por %p459, %p460
      %p462 = scmp.ne.s32.totalorder %s448, %s449
      %p463 = scmp.eq.s32.totalorder %s37, 1
      %p464 = por %p462, %p463
      %p466 = scmp.ne.s32.totalorder %s449, %s465
      %p467 = scmp.eq.s32.totalorder %s37, 0
      %p468 = por %p466, %p467
      %p469 = scmp.le.s32.totalorder 1, %s31
      %p470 = scmp.lt.s32.totalorder %s31, 3
      %p471 = pnand %p469, %p470
      %p472 = pneg %p471
      // Predicated region
      $region9: #{tpu_custom_call.1} parent=5 // pred_check
        _
      $region10: #{tpu_custom_call.1} parent=5 // pred_check_branch
        %474 = sbr.rel (%p471) target = $region12
      $region11: #{tpu_custom_call.1} parent=5 // pred_region
        %s475 = ssub.s32 %s31, 1
        // Predicated region
        $region13: #{tpu_custom_call.1} parent=11 // pred_check
          %p476 = pneg %p118
        $region14: #{tpu_custom_call.1} parent=11 // pred_check_branch
          %478 = sbr.rel (%p476) target = $region16
        $region15: #{tpu_custom_call.1} parent=11 // pred_region
          _
        $region16: #{tpu_custom_call.1} parent=11 // pred_fallthru
          _
        // Predicated region
        $region17: #{tpu_custom_call.1} parent=11 // pred_check
          %p479 = pneg %p139
        $region18: #{tpu_custom_call.1} parent=11 // pred_check_branch
          %481 = sbr.rel (%p479) target = $region20
        $region19: #{tpu_custom_call.1} parent=11 // pred_region
          %s483 = ssub.s32 16, 16
          %484 = vsyncadd [#allocation5], %s483
          %s486 = sshll.u32 [#allocation4], 4
          %s487 = int_to_ptr.vmem [resolvable:$true] %s486
          %489 = dma.hbm_to_vmem [thread:$0]  %s3, 16, %s487, [#allocation5]
        $region20: #{tpu_custom_call.1} parent=11 // pred_fallthru
          _
        // Predicated region
        $region21: #{tpu_custom_call.1} parent=11 // pred_check
          %p490 = pneg %p160
        $region22: #{tpu_custom_call.1} parent=11 // pred_check_branch
          %492 = sbr.rel (%p490) target = $region24
        $region23: #{tpu_custom_call.1} parent=11 // pred_region
          %s494 = ssub.s32 256, 256
          %495 = vsyncadd [#allocation8], %s494
          %s496 = sshll.u32 [#allocation7], 4
          %s497 = int_to_ptr.vmem [resolvable:$true] %s496
          %502 = dma.hbm_to_vmem [thread:$0]  %s4, 256, %s497, [#allocation8], 64, 64, 4
        $region24: #{tpu_custom_call.1} parent=11 // pred_fallthru
          _
        // Predicated region
        $region25: #{tpu_custom_call.1} parent=11 // pred_check
          %p503 = pneg %p181
        $region26: #{tpu_custom_call.1} parent=11 // pred_check_branch
          %505 = sbr.rel (%p503) target = $region28
        $region27: #{tpu_custom_call.1} parent=11 // pred_region
          %s507 = ssub.s32 16, 16
          %508 = vsyncadd [#allocation8], %s507
          %s510 = sshll.u32 [#allocation9], 4
          %s511 = int_to_ptr.vmem [resolvable:$true] %s510
          %513 = dma.hbm_to_vmem [thread:$0]  %s5, 16, %s511, [#allocation8]
        $region28: #{tpu_custom_call.1} parent=11 // pred_fallthru
          _
        // Predicated region
        $region29: #{tpu_custom_call.1} parent=11 // pred_check
          %p514 = pneg %p202
        $region30: #{tpu_custom_call.1} parent=11 // pred_check_branch
          %516 = sbr.rel (%p514) target = $region32
        $region31: #{tpu_custom_call.1} parent=11 // pred_region
          %s518 = ssub.s32 256, 256
          %519 = vsyncadd [#allocation11], %s518
          %s520 = sshll.u32 [#allocation10], 4
          %s521 = int_to_ptr.vmem [resolvable:$true] %s520
          %526 = dma.hbm_to_vmem [thread:$0]  %s6, 256, %s521, [#allocation11], 64, 64, 4
        $region32: #{tpu_custom_call.1} parent=11 // pred_fallthru
          _
        // Predicated region
        $region33: #{tpu_custom_call.1} parent=11 // pred_check
          %p527 = pneg %p223
        $region34: #{tpu_custom_call.1} parent=11 // pred_check_branch
          %529 = sbr.rel (%p527) target = $region36
        $region35: #{tpu_custom_call.1} parent=11 // pred_region
          %s531 = ssub.s32 16, 16
          %532 = vsyncadd [#allocation11], %s531
          %s534 = sshll.u32 [#allocation12], 4
          %s535 = int_to_ptr.vmem [resolvable:$true] %s534
          %537 = dma.hbm_to_vmem [thread:$0]  %s7, 16, %s535, [#allocation11]
        $region36: #{tpu_custom_call.1} parent=11 // pred_fallthru
          _
        // Predicated region
        $region37: #{tpu_custom_call.1} parent=11 // pred_check
          %p538 = pneg %p244
        $region38: #{tpu_custom_call.1} parent=11 // pred_check_branch
          %540 = sbr.rel (%p538) target = $region40
        $region39: #{tpu_custom_call.1} parent=11 // pred_region
          %s542 = ssub.s32 256, 256
          %543 = vsyncadd [#allocation14], %s542
          %s544 = sshll.u32 [#allocation13], 4
          %s545 = int_to_ptr.vmem [resolvable:$true] %s544
          %550 = dma.hbm_to_vmem [thread:$0]  %s8, 256, %s545, [#allocation14], 64, 64, 4
        $region40: #{tpu_custom_call.1} parent=11 // pred_fallthru
          _
        // Predicated region
        $region41: #{tpu_custom_call.1} parent=11 // pred_check
          %p551 = pneg %p265
        $region42: #{tpu_custom_call.1} parent=11 // pred_check_branch
          %553 = sbr.rel (%p551) target = $region44
        $region43: #{tpu_custom_call.1} parent=11 // pred_region
          %s555 = ssub.s32 16, 16
          %556 = vsyncadd [#allocation14], %s555
          %s558 = sshll.u32 [#allocation15], 4
          %s559 = int_to_ptr.vmem [resolvable:$true] %s558
          %561 = dma.hbm_to_vmem [thread:$0]  %s9, 16, %s559, [#allocation14]
        $region44: #{tpu_custom_call.1} parent=11 // pred_fallthru
          _
        // Predicated region
        $region45: #{tpu_custom_call.1} parent=11 // pred_check
          %p562 = pneg %p286
        $region46: #{tpu_custom_call.1} parent=11 // pred_check_branch
          %564 = sbr.rel (%p562) target = $region48
        $region47: #{tpu_custom_call.1} parent=11 // pred_region
          _
        $region48: #{tpu_custom_call.1} parent=11 // pred_fallthru
          _
        // Predicated region
        $region49: #{tpu_custom_call.1} parent=11 // pred_check
          %p565 = pneg %p307
        $region50: #{tpu_custom_call.1} parent=11 // pred_check_branch
          %567 = sbr.rel (%p565) target = $region52
        $region51: #{tpu_custom_call.1} parent=11 // pred_region
          _
        $region52: #{tpu_custom_call.1} parent=11 // pred_fallthru
          _
        // Predicated region
        $region53: #{tpu_custom_call.1} parent=11 // pred_check
          %p568 = pneg %p328
        $region54: #{tpu_custom_call.1} parent=11 // pred_check_branch
          %570 = sbr.rel (%p568) target = $region56
        $region55: #{tpu_custom_call.1} parent=11 // pred_region
          _
        $region56: #{tpu_custom_call.1} parent=11 // pred_fallthru
          _
        // Predicated region
        $region57: #{tpu_custom_call.1} parent=11 // pred_check
          %p571 = pneg %p349
        $region58: #{tpu_custom_call.1} parent=11 // pred_check_branch
          %573 = sbr.rel (%p571) target = $region60
        $region59: #{tpu_custom_call.1} parent=11 // pred_region
          _
        $region60: #{tpu_custom_call.1} parent=11 // pred_fallthru
          _
        // Predicated region
        $region61: #{tpu_custom_call.1} parent=11 // pred_check
          %p574 = pneg %p370
        $region62: #{tpu_custom_call.1} parent=11 // pred_check_branch
          %576 = sbr.rel (%p574) target = $region64
        $region63: #{tpu_custom_call.1} parent=11 // pred_region
          _
        $region64: #{tpu_custom_call.1} parent=11 // pred_fallthru
          _
        // Predicated region
        $region65: #{tpu_custom_call.1} parent=11 // pred_check
          %p577 = pneg %p391
        $region66: #{tpu_custom_call.1} parent=11 // pred_check_branch
          %579 = sbr.rel (%p577) target = $region68
        $region67: #{tpu_custom_call.1} parent=11 // pred_region
          _
        $region68: #{tpu_custom_call.1} parent=11 // pred_fallthru
          _
        // Predicated region
        $region69: #{tpu_custom_call.1} parent=11 // pred_check
          %p580 = pneg %p412
        $region70: #{tpu_custom_call.1} parent=11 // pred_check_branch
          %582 = sbr.rel (%p580) target = $region72
        $region71: #{tpu_custom_call.1} parent=11 // pred_region
          _
        $region72: #{tpu_custom_call.1} parent=11 // pred_fallthru
          _
        // Predicated region
        $region73: #{tpu_custom_call.1} parent=11 // pred_check
          %p583 = pneg %p433
        $region74: #{tpu_custom_call.1} parent=11 // pred_check_branch
          %585 = sbr.rel (%p583) target = $region76
        $region75: #{tpu_custom_call.1} parent=11 // pred_region
          _
        $region76: #{tpu_custom_call.1} parent=11 // pred_fallthru
          _
      $region12: #{tpu_custom_call.1} parent=5 // pred_fallthru
        _
      %p586 = scmp.lt.s32.totalorder %s31, 2
      // Predicated region
      $region77: #{tpu_custom_call.1} parent=5 // pred_check
        %p587 = pneg %p586
      $region78: #{tpu_custom_call.1} parent=5 // pred_check_branch
        %589 = sbr.rel (%p587) target = $region80
      $region79: #{tpu_custom_call.1} parent=5 // pred_region
        // Predicated region
        $region81: #{tpu_custom_call.1} parent=79 // pred_check
          %p590 = pneg %p63
        $region82: #{tpu_custom_call.1} parent=79 // pred_check_branch
          %592 = sbr.rel (%p590) target = $region84
        $region83: #{tpu_custom_call.1} parent=79 // pred_region
          %p593 = scmp.lt.s32.totalorder %s38, 1
          %s594 = scalar_select %p593, %s38, 1
          %s595 = smul.addr %s594, 8
          %s596 = scalar_lea.vmem %s0, %s595
        $region84: #{tpu_custom_call.1} parent=79 // pred_fallthru
          _
        // Predicated region
        $region85: #{tpu_custom_call.1} parent=79 // pred_check
          %p597 = pneg %p91
        $region86: #{tpu_custom_call.1} parent=79 // pred_check_branch
          %599 = sbr.rel (%p597) target = $region88
        $region87: #{tpu_custom_call.1} parent=79 // pred_region
          %p600 = scmp.lt.s32.totalorder %s38, 1
          %s601 = scalar_select %p600, %s38, 1
          %p602 = scmp.lt.s32.totalorder %s39, 0
          %s603 = scalar_select %p602, %s39, 0
          %s604 = sadd.s32 %s603, %s601
          %s605 = smul.addr %s604, 8
          %s606 = scalar_lea.vmem %s1, %s605
        $region88: #{tpu_custom_call.1} parent=79 // pred_fallthru
          _
      $region80: #{tpu_custom_call.1} parent=5 // pred_fallthru
        _
      %p607 = scmp.le.s32.totalorder 1, %s31
      %p608 = scmp.lt.s32.totalorder %s31, 3
      %p609 = pnand %p607, %p608
      %p610 = pneg %p609
      // Predicated region
      $region89: #{tpu_custom_call.1} parent=5 // pred_check
        _
      $region90: #{tpu_custom_call.1} parent=5 // pred_check_branch
        %612 = sbr.rel (%p609) target = $region92
      $region91: #{tpu_custom_call.1} parent=5 // pred_region
        %s613 = ssub.s32 %s31, 1
        // Predicated region
        $region93: #{tpu_custom_call.1} parent=91 // pred_check
          %p614 = pneg %p139
        $region94: #{tpu_custom_call.1} parent=91 // pred_check_branch
          %616 = sbr.rel (%p614) target = $region96
        $region95: #{tpu_custom_call.1} parent=91 // pred_region
          %617 = dma.done [#allocation5], 16
        $region96: #{tpu_custom_call.1} parent=91 // pred_fallthru
          _
        // Predicated region
        $region97: #{tpu_custom_call.1} parent=91 // pred_check
          %p618 = pneg %p160
        $region98: #{tpu_custom_call.1} parent=91 // pred_check_branch
          %620 = sbr.rel (%p618) target = $region100
        $region99: #{tpu_custom_call.1} parent=91 // pred_region
          %621 = dma.done [#allocation8], 256
        $region100: #{tpu_custom_call.1} parent=91 // pred_fallthru
          _
        // Predicated region
        $region101: #{tpu_custom_call.1} parent=91 // pred_check
          %p622 = pneg %p181
        $region102: #{tpu_custom_call.1} parent=91 // pred_check_branch
          %624 = sbr.rel (%p622) target = $region104
        $region103: #{tpu_custom_call.1} parent=91 // pred_region
          %625 = dma.done [#allocation8], 16
        $region104: #{tpu_custom_call.1} parent=91 // pred_fallthru
          _
        // Predicated region
        $region105: #{tpu_custom_call.1} parent=91 // pred_check
          %p626 = pneg %p202
        $region106: #{tpu_custom_call.1} parent=91 // pred_check_branch
          %628 = sbr.rel (%p626) target = $region108
        $region107: #{tpu_custom_call.1} parent=91 // pred_region
          %629 = dma.done [#allocation11], 256
        $region108: #{tpu_custom_call.1} parent=91 // pred_fallthru
          _
        // Predicated region
        $region109: #{tpu_custom_call.1} parent=91 // pred_check
          %p630 = pneg %p223
        $region110: #{tpu_custom_call.1} parent=91 // pred_check_branch
          %632 = sbr.rel (%p630) target = $region112
        $region111: #{tpu_custom_call.1} parent=91 // pred_region
          %633 = dma.done [#allocation11], 16
        $region112: #{tpu_custom_call.1} parent=91 // pred_fallthru
          _
        // Predicated region
        $region113: #{tpu_custom_call.1} parent=91 // pred_check
          %p634 = pneg %p244
        $region114: #{tpu_custom_call.1} parent=91 // pred_check_branch
          %636 = sbr.rel (%p634) target = $region116
        $region115: #{tpu_custom_call.1} parent=91 // pred_region
          %637 = dma.done [#allocation14], 256
        $region116: #{tpu_custom_call.1} parent=91 // pred_fallthru
          _
        // Predicated region
        $region117: #{tpu_custom_call.1} parent=91 // pred_check
          %p638 = pneg %p265
        $region118: #{tpu_custom_call.1} parent=91 // pred_check_branch
          %640 = sbr.rel (%p638) target = $region120
        $region119: #{tpu_custom_call.1} parent=91 // pred_region
          %641 = dma.done [#allocation14], 16
        $region120: #{tpu_custom_call.1} parent=91 // pred_fallthru
          _
        %p642 = scmp.lt.s32.totalorder %s40, 1
        %s643 = scalar_select %p642, %s40, 1
        %s644 = smul.addr %s643, 8
        %s645 = scalar_lea.vmem %s0, %s644
        %p646 = pneg %p69
        %p647 = pneg %p66
        %p648 = scmp.lt.s32.totalorder %s40, 1
        %s649 = scalar_select %p648, %s40, 1
        %p650 = scmp.lt.s32.totalorder %s41, 0
        %s651 = scalar_select %p650, %s41, 0
        %s652 = sadd.s32 %s651, %s649
        %s653 = smul.addr %s652, 8
        %s654 = scalar_lea.vmem %s1, %s653
        %p655 = pneg %p97
        %p656 = pneg %p94
        %p657 = pneg %p118
        %p658 = pneg %p115
        %p659 = pneg %p139
        %p660 = pneg %p136
        %p661 = pneg %p160
        %p662 = pneg %p157
        %p663 = pneg %p181
        %p664 = pneg %p178
        %p665 = pneg %p202
        %p666 = pneg %p199
        %p667 = pneg %p223
        %p668 = pneg %p220
        %p669 = pneg %p244
        %p670 = pneg %p241
        %p671 = pneg %p265
        %p672 = pneg %p262
        %p673 = pneg %p286
        %p674 = pneg %p283
        %p675 = pneg %p307
        %p676 = pneg %p304
        %p677 = pneg %p328
        %p678 = pneg %p325
        %p679 = pneg %p349
        %p680 = pneg %p346
        %p681 = pneg %p370
        %p682 = pneg %p367
        %p683 = pneg %p391
        %p684 = pneg %p388
        %p685 = pneg %p412
        %p686 = pneg %p409
        %p687 = pneg %p433
        %p688 = pneg %p430
        %p689 = pneg %p461
        %p690 = pneg %p458
        %s691 = sand.u32 %s448, 1
        %s692 = scalar_lea.sflag [#allocation6], %s691
        %s693 = sand.u32 %s448, 1
        %s694 = smul.addr %s693, 8
        %s695 = scalar_lea.vmem [#allocation16], %s694
        %p696 = scmp.lt.s32.totalorder %s40, 1
        %s697 = scalar_select %p696, %s40, 1
        %s698 = smul.addr %s697, 8
        %s699 = scalar_lea.vmem %s0, %s698
        %p700 = scmp.lt.s32.totalorder %s40, 1
        %s701 = scalar_select %p700, %s40, 1
        %p702 = scmp.lt.s32.totalorder %s41, 0
        %s703 = scalar_select %p702, %s41, 0
        %s704 = sadd.s32 %s703, %s701
        %s705 = smul.addr %s704, 8
        %s706 = scalar_lea.vmem %s1, %s705
        %p708 = scmp.eq.s32.totalorder %s41, 0
        // Predicated region
        $region121: #{tpu_custom_call.1} parent=91 // pred_check
          %p709 = pneg %p708
        $region122: #{tpu_custom_call.1} parent=91 // pred_check_branch
          %711 = sbr.rel (%p709) target = $region124
        $region123: #{tpu_custom_call.1} parent=91 // pred_region
          %v712 = vld [vmem:[%s699] sm:$0xff]
          %v713 = vpack.c.bf16 %v712, %v712
          %v714 = vld [vmem:[#allocation7] sm:$0xf]
          %v715 = vld [vmem:[#allocation7 + $0x4] sm:$0xf]
          %v716 = vld [vmem:[#allocation7 + $0x8] sm:$0xf]
          %v717 = vld [vmem:[#allocation7 + $0xc] sm:$0xf]
          %v718 = vld [vmem:[#allocation9] sm:$0x1]
          %v720 = vlaneseq
          %v721 = vshrl.u32 %v720, 7
          %v722 = vsub.s32 0, %v721
          %v723 = vrot.slane %v718, %v722
          %v729 = vunpack.c.l.b16 %v714
          %v730 = vunpack.c.l.b16 %v715
          %v731 = vunpack.c.l.b16 %v716
          %v732 = vunpack.c.l.b16 %v717
          %v733 = vpack.c.b16 %v730, %v729
          %v734 = vpack.c.b16 %v732, %v731
          %vm737 = vcmask 261120
          %v739 = vsel %vm737, %v713, 0
          %741 = vmatprep.subr.bf16.mxu0 0
          %742 = vmatpush1.bf16.msra.mxu0 0
          %743 = vmatprep.subr.bf16.mxu0 0
          %744 = vmatpush1.bf16.msra.mxu0 0
          %745 = vmatprep.subr.bf16.mxu0 0
          %746 = vmatpush1.bf16.msra.mxu0 0
          %747 = vmatprep.subr.bf16.mxu0 0
          %748 = vmatpush1.bf16.msra.mxu0 0
          %749 = vmatprep.subr.bf16.mxu0 0
          %750 = vmatpush1.bf16.msra.mxu0 0
          %751 = vmatprep.subr.bf16.mxu0 0
          %752 = vmatpush1.bf16.msra.mxu0 0
          %753 = vmatprep.subr.bf16.mxu0 0
          %754 = vmatpush1.bf16.msra.mxu0 %v734
          %755 = vmatprep.subr.bf16.mxu0 0
          %756 = vmatpush1.bf16.msra.mxu0 %v733
          %757 = vmatprep.subr.bf16.mxu0 0
          %758 = vmatpush2.bf16.msra.mxu0 0
          %759 = vmatprep.subr.bf16.mxu0 0
          %760 = vmatpush2.bf16.msra.mxu0 0
          %761 = vmatprep.subr.bf16.mxu0 0
          %762 = vmatpush2.bf16.msra.mxu0 0
          %763 = vmatprep.subr.bf16.mxu0 0
          %764 = vmatpush2.bf16.msra.mxu0 0
          %765 = vmatprep.subr.bf16.mxu0 0
          %766 = vmatpush2.bf16.msra.mxu0 0
          %767 = vmatprep.subr.bf16.mxu0 0
          %768 = vmatpush2.bf16.msra.mxu0 0
          %769 = vmatprep.subr.bf16.mxu0 0
          %770 = vmatpush2.bf16.msra.mxu0 0
          %771 = vmatprep.subr.bf16.mxu0 0
          %772 = vmatpush2.bf16.msra.mxu0 0
          %773 = vmatprep.mubr.bf16.mxu0 0
          %774 = vmatmul.mubr.bf16.gmra.mxu0 %v739
          %v775 = vpop.f32.mrf.mxu0
          %v776 = vadd.f32 %v723, %v775
          %v777 = vpop.f32.mrf.mxu0
          %v778 = vpop.f32.mrf.mxu0
          %v779 = vpop.f32.mrf.mxu0
          %780 = vdwg.mxu0
          %v781 = vld [vmem:[#allocation10] sm:$0xf]
          %v782 = vld [vmem:[#allocation10 + $0x4] sm:$0xf]
          %v783 = vld [vmem:[#allocation10 + $0x8] sm:$0xf]
          %v784 = vld [vmem:[#allocation10 + $0xc] sm:$0xf]
          %v785 = vld [vmem:[#allocation12] sm:$0x1]
          %v787 = vlaneseq
          %v788 = vshrl.u32 %v787, 7
          %v789 = vsub.s32 0, %v788
          %v790 = vrot.slane %v785, %v789
          %v796 = vunpack.c.l.b16 %v781
          %v797 = vunpack.c.l.b16 %v782
          %v798 = vunpack.c.l.b16 %v783
          %v799 = vunpack.c.l.b16 %v784
          %v800 = vpack.c.b16 %v797, %v796
          %v801 = vpack.c.b16 %v799, %v798
          %804 = vmatprep.subr.bf16.mxu0 0
          %805 = vmatpush1.bf16.msra.mxu0 0
          %806 = vmatprep.subr.bf16.mxu0 0
          %807 = vmatpush1.bf16.msra.mxu0 0
          %808 = vmatprep.subr.bf16.mxu0 0
          %809 = vmatpush1.bf16.msra.mxu0 0
          %810 = vmatprep.subr.bf16.mxu0 0
          %811 = vmatpush1.bf16.msra.mxu0 0
          %812 = vmatprep.subr.bf16.mxu0 0
          %813 = vmatpush1.bf16.msra.mxu0 0
          %814 = vmatprep.subr.bf16.mxu0 0
          %815 = vmatpush1.bf16.msra.mxu0 0
          %816 = vmatprep.subr.bf16.mxu0 0
          %817 = vmatpush1.bf16.msra.mxu0 %v801
          %818 = vmatprep.subr.bf16.mxu0 0
          %819 = vmatpush1.bf16.msra.mxu0 %v800
          %820 = vmatprep.subr.bf16.mxu0 0
          %821 = vmatpush2.bf16.msra.mxu0 0
          %822 = vmatprep.subr.bf16.mxu0 0
          %823 = vmatpush2.bf16.msra.mxu0 0
          %824 = vmatprep.subr.bf16.mxu0 0
          %825 = vmatpush2.bf16.msra.mxu0 0
          %826 = vmatprep.subr.bf16.mxu0 0
          %827 = vmatpush2.bf16.msra.mxu0 0
          %828 = vmatprep.subr.bf16.mxu0 0
          %829 = vmatpush2.bf16.msra.mxu0 0
          %830 = vmatprep.subr.bf16.mxu0 0
          %831 = vmatpush2.bf16.msra.mxu0 0
          %832 = vmatprep.subr.bf16.mxu0 0
          %833 = vmatpush2.bf16.msra.mxu0 0
          %834 = vmatprep.subr.bf16.mxu0 0
          %835 = vmatpush2.bf16.msra.mxu0 0
          %836 = vmatprep.mubr.bf16.mxu0 0
          %837 = vmatmul.mubr.bf16.gmra.mxu0 %v739
          %v838 = vpop.f32.mrf.mxu0
          %v839 = vadd.f32 %v790, %v838
          %v840 = vpop.f32.mrf.mxu0
          %v841 = vpop.f32.mrf.mxu0
          %v842 = vpop.f32.mrf.mxu0
          %843 = vdwg.mxu0
          %v844 = vpack.c.bf16 %v776, %v776
          %vm845 = vcmask 257024
          %846 = vst.msk [vmem:[#allocation2] sm:$0xf] %vm845, %v844
          %v847 = vpack.c.bf16 %v839, %v839
          %848 = vst.msk [vmem:[#allocation3] sm:$0xf] %vm845, %v847
        $region124: #{tpu_custom_call.1} parent=91 // pred_fallthru
          _
        %v849 = vld [vmem:[%s706] sm:$0xff]
        %v850 = vpack.c.bf16 %v849, %v849
        %v851 = vld [vmem:[%s2] sm:$0xf]
        %v852 = vld [vmem:[%s2 + $0x4] sm:$0xf]
        %v853 = vld [vmem:[%s2 + $0x8] sm:$0xf]
        %v854 = vld [vmem:[%s2 + $0xc] sm:$0xf]
        %v855 = vld [vmem:[#allocation4] sm:$0x1]
        %v857 = vlaneseq
        %v858 = vshrl.u32 %v857, 7
        %v859 = vsub.s32 0, %v858
        %v860 = vrot.slane %v855, %v859
        %v866 = vunpack.c.l.b16 %v851
        %v867 = vunpack.c.l.b16 %v852
        %v868 = vunpack.c.l.b16 %v853
        %v869 = vunpack.c.l.b16 %v854
        %v870 = vpack.c.b16 %v867, %v866
        %v871 = vpack.c.b16 %v869, %v868
        %vm874 = vcmask 261120
        %v876 = vsel %vm874, %v850, 0
        %878 = vmatprep.subr.bf16.mxu0 0
        %879 = vmatpush1.bf16.msra.mxu0 0
        %880 = vmatprep.subr.bf16.mxu0 0
        %881 = vmatpush1.bf16.msra.mxu0 0
        %882 = vmatprep.subr.bf16.mxu0 0
        %883 = vmatpush1.bf16.msra.mxu0 0
        %884 = vmatprep.subr.bf16.mxu0 0
        %885 = vmatpush1.bf16.msra.mxu0 0
        %886 = vmatprep.subr.bf16.mxu0 0
        %887 = vmatpush1.bf16.msra.mxu0 0
        %888 = vmatprep.subr.bf16.mxu0 0
        %889 = vmatpush1.bf16.msra.mxu0 0
        %890 = vmatprep.subr.bf16.mxu0 0
        %891 = vmatpush1.bf16.msra.mxu0 %v871
        %892 = vmatprep.subr.bf16.mxu0 0
        %893 = vmatpush1.bf16.msra.mxu0 %v870
        %894 = vmatprep.subr.bf16.mxu0 0
        %895 = vmatpush2.bf16.msra.mxu0 0
        %896 = vmatprep.subr.bf16.mxu0 0
        %897 = vmatpush2.bf16.msra.mxu0 0
        %898 = vmatprep.subr.bf16.mxu0 0
        %899 = vmatpush2.bf16.msra.mxu0 0
        %900 = vmatprep.subr.bf16.mxu0 0
        %901 = vmatpush2.bf16.msra.mxu0 0
        %902 = vmatprep.subr.bf16.mxu0 0
        %903 = vmatpush2.bf16.msra.mxu0 0
        %904 = vmatprep.subr.bf16.mxu0 0
        %905 = vmatpush2.bf16.msra.mxu0 0
        %906 = vmatprep.subr.bf16.mxu0 0
        %907 = vmatpush2.bf16.msra.mxu0 0
        %908 = vmatprep.subr.bf16.mxu0 0
        %909 = vmatpush2.bf16.msra.mxu0 0
        %910 = vmatprep.mubr.bf16.mxu0 0
        %911 = vmatmul.mubr.bf16.gmra.mxu0 %v876
        %v912 = vpop.f32.mrf.mxu0
        %v913 = vadd.f32 %v860, %v912
        %v914 = vpop.f32.mrf.mxu0
        %v915 = vpop.f32.mrf.mxu0
        %v916 = vpop.f32.mrf.mxu0
        %917 = vdwg.mxu0
        %v918 = vmul.f32 %v913, 0.35355338
        %v919 = vpack.c.bf16 %v918, %v918
        %v920 = vld [vmem:[#allocation2] sm:$0xf]
        %v921 = vld [vmem:[#allocation3] sm:$0xf]
        %vm922 = vcmask 64512
        %v924 = vsel %vm922, %v919, 0
        %v927 = vsel %vm922, %v920, 0
        %929 = vmatprep.subr.bf16.mxu0 0
        %930 = vmatpush1.bf16.xpose.msra.mxu0 0
        %931 = vmatprep.subr.bf16.mxu0 0
        %932 = vmatpush1.bf16.xpose.msra.mxu0 0
        %933 = vmatprep.subr.bf16.mxu0 0
        %934 = vmatpush1.bf16.xpose.msra.mxu0 0
        %935 = vmatprep.subr.bf16.mxu0 0
        %936 = vmatpush1.bf16.xpose.msra.mxu0 0
        %937 = vmatprep.subr.bf16.mxu0 0
        %938 = vmatpush1.bf16.xpose.msra.mxu0 0
        %939 = vmatprep.subr.bf16.mxu0 0
        %940 = vmatpush1.bf16.xpose.msra.mxu0 0
        %941 = vmatprep.subr.bf16.mxu0 0
        %942 = vmatpush1.bf16.xpose.msra.mxu0 0
        %943 = vmatprep.subr.bf16.mxu0 0
        %944 = vmatpush1.bf16.xpose.msra.mxu0 %v927
        %945 = vmatprep.subr.bf16.mxu0 0
        %946 = vmatpush2.bf16.xpose.msra.mxu0 0
        %947 = vmatprep.subr.bf16.mxu0 0
        %948 = vmatpush2.bf16.xpose.msra.mxu0 0
        %949 = vmatprep.subr.bf16.mxu0 0
        %950 = vmatpush2.bf16.xpose.msra.mxu0 0
        %951 = vmatprep.subr.bf16.mxu0 0
        %952 = vmatpush2.bf16.xpose.msra.mxu0 0
        %953 = vmatprep.subr.bf16.mxu0 0
        %954 = vmatpush2.bf16.xpose.msra.mxu0 0
        %955 = vmatprep.subr.bf16.mxu0 0
        %956 = vmatpush2.bf16.xpose.msra.mxu0 0
        %957 = vmatprep.subr.bf16.mxu0 0
        %958 = vmatpush2.bf16.xpose.msra.mxu0 0
        %959 = vmatprep.subr.bf16.mxu0 0
        %960 = vmatpush2.bf16.xpose.msra.mxu0 0
        %961 = vmatprep.mubr.bf16.mxu0 0
        %962 = vmatmul.mubr.bf16.gmra.mxu0 %v924
        %v963 = vpop.f32.mrf.mxu0
        %v964 = vadd.f32 0.0, %v963
        %v965 = vpop.f32.mrf.mxu0
        %v966 = vpop.f32.mrf.mxu0
        %v967 = vpop.f32.mrf.mxu0
        %968 = vdwg.mxu0
        %v969 = vsel %vm922, %v964, -inf
        %970 = vmax.xlane.f32.xlu0 %v969
        %v971 = vpop.xlane.xlu0 %970
        %v972 = vsub.f32 %v964, %v971
        %v973 = vmul.f32 %v972, 1.442695
        %v974 = vpow.pop %v973
        %v975 = vsel %vm922, %v974, 0.0
        %976 = vadd.xlane.f32.xlu0 %v975
        %v977 = vpop.xlane.xlu0 %976
        %v978 = vrcp.pop %v977
        %v979 = vmul.f32 %v974, %v978
        %v980 = vpack.c.bf16 %v979, %v979
        %v982 = vsel %vm922, %v980, 0
        %vm984 = vcmask 1043456
        %v986 = vsel %vm984, %v921, 0
        %988 = vmatprep.subr.bf16.mxu0 0
        %989 = vmatpush1.bf16.msra.mxu0 0
        %990 = vmatprep.subr.bf16.mxu0 0
        %991 = vmatpush1.bf16.msra.mxu0 0
        %992 = vmatprep.subr.bf16.mxu0 0
        %993 = vmatpush1.bf16.msra.mxu0 0
        %994 = vmatprep.subr.bf16.mxu0 0
        %995 = vmatpush1.bf16.msra.mxu0 0
        %996 = vmatprep.subr.bf16.mxu0 0
        %997 = vmatpush1.bf16.msra.mxu0 0
        %998 = vmatprep.subr.bf16.mxu0 0
        %999 = vmatpush1.bf16.msra.mxu0 0
        %1000 = vmatprep.subr.bf16.mxu0 0
        %1001 = vmatpush1.bf16.msra.mxu0 0
        %1002 = vmatprep.subr.bf16.mxu0 0
        %1003 = vmatpush1.bf16.msra.mxu0 %v986
        %1004 = vmatprep.subr.bf16.mxu0 0
        %1005 = vmatpush2.bf16.msra.mxu0 0
        %1006 = vmatprep.subr.bf16.mxu0 0
        %1007 = vmatpush2.bf16.msra.mxu0 0
        %1008 = vmatprep.subr.bf16.mxu0 0
        %1009 = vmatpush2.bf16.msra.mxu0 0
        %1010 = vmatprep.subr.bf16.mxu0 0
        %1011 = vmatpush2.bf16.msra.mxu0 0
        %1012 = vmatprep.subr.bf16.mxu0 0
        %1013 = vmatpush2.bf16.msra.mxu0 0
        %1014 = vmatprep.subr.bf16.mxu0 0
        %1015 = vmatpush2.bf16.msra.mxu0 0
        %1016 = vmatprep.subr.bf16.mxu0 0
        %1017 = vmatpush2.bf16.msra.mxu0 0
        %1018 = vmatprep.subr.bf16.mxu0 0
        %1019 = vmatpush2.bf16.msra.mxu0 0
        %1020 = vmatprep.mubr.bf16.mxu0 0
        %1021 = vmatmul.mubr.bf16.gmra.mxu0 %v982
        %v1022 = vpop.f32.mrf.mxu0
        %v1023 = vadd.f32 0.0, %v1022
        %v1024 = vpop.f32.mrf.mxu0
        %v1025 = vpop.f32.mrf.mxu0
        %v1026 = vpop.f32.mrf.mxu0
        %1027 = vdwg.mxu0
        %v1028 = vpack.c.bf16 %v1023, %v1023
        %v1029 = vld [vmem:[#allocation13] sm:$0xf]
        %1031 = vrot.lane.b32.xlu0 %v919, 120
        %v1032 = vpop.permute.xlu0 %1031
        %v1034 = vunpack.c.l.b16 %v920
        %v1035 = vpack.c.b16 %v1034, %v1034
        %1036 = vrot.lane.b32.xlu0 %v1035, 120
        %v1037 = vpop.permute.xlu0 %1036
        %v1039 = vsel %vm922, %v1032, 0
        %v1042 = vsel %vm922, %v1037, 0
        %1044 = vmatprep.subr.bf16.mxu0 0
        %1045 = vmatpush1.bf16.xpose.msra.mxu0 0
        %1046 = vmatprep.subr.bf16.mxu0 0
        %1047 = vmatpush1.bf16.xpose.msra.mxu0 0
        %1048 = vmatprep.subr.bf16.mxu0 0
        %1049 = vmatpush1.bf16.xpose.msra.mxu0 0
        %1050 = vmatprep.subr.bf16.mxu0 0
        %1051 = vmatpush1.bf16.xpose.msra.mxu0 0
        %1052 = vmatprep.subr.bf16.mxu0 0
        %1053 = vmatpush1.bf16.xpose.msra.mxu0 0
        %1054 = vmatprep.subr.bf16.mxu0 0
        %1055 = vmatpush1.bf16.xpose.msra.mxu0 0
        %1056 = vmatprep.subr.bf16.mxu0 0
        %1057 = vmatpush1.bf16.xpose.msra.mxu0 0
        %1058 = vmatprep.subr.bf16.mxu0 0
        %1059 = vmatpush1.bf16.xpose.msra.mxu0 %v1042
        %1060 = vmatprep.subr.bf16.mxu0 0
        %1061 = vmatpush2.bf16.xpose.msra.mxu0 0
        %1062 = vmatprep.subr.bf16.mxu0 0
        %1063 = vmatpush2.bf16.xpose.msra.mxu0 0
        %1064 = vmatprep.subr.bf16.mxu0 0
        %1065 = vmatpush2.bf16.xpose.msra.mxu0 0
        %1066 = vmatprep.subr.bf16.mxu0 0
        %1067 = vmatpush2.bf16.xpose.msra.mxu0 0
        %1068 = vmatprep.subr.bf16.mxu0 0
        %1069 = vmatpush2.bf16.xpose.msra.mxu0 0
        %1070 = vmatprep.subr.bf16.mxu0 0
        %1071 = vmatpush2.bf16.xpose.msra.mxu0 0
        %1072 = vmatprep.subr.bf16.mxu0 0
        %1073 = vmatpush2.bf16.xpose.msra.mxu0 0
        %1074 = vmatprep.subr.bf16.mxu0 0
        %1075 = vmatpush2.bf16.xpose.msra.mxu0 0
        %1076 = vmatprep.mubr.bf16.mxu0 0
        %1077 = vmatmul.mubr.bf16.gmra.mxu0 %v1039
        %v1078 = vpop.f32.mrf.mxu0
        %v1079 = vadd.f32 0.0, %v1078
        %v1080 = vpop.f32.mrf.mxu0
        %v1081 = vpop.f32.mrf.mxu0
        %v1082 = vpop.f32.mrf.mxu0
        %1083 = vdwg.mxu0
        %v1084 = vsel %vm922, %v1079, -inf
        %1085 = vmax.xlane.f32.xlu0 %v1084
        %v1086 = vpop.xlane.xlu0 %1085
        %v1087 = vsub.f32 %v1079, %v1086
        %v1088 = vmul.f32 %v1087, 1.442695
        %v1089 = vpow.pop %v1088
        %v1090 = vsel %vm922, %v1089, 0.0
        %1091 = vadd.xlane.f32.xlu0 %v1090
        %v1092 = vpop.xlane.xlu0 %1091
        %v1093 = vrcp.pop %v1092
        %v1094 = vmul.f32 %v1089, %v1093
        %v1095 = vpack.c.bf16 %v1094, %v1094
        %v1097 = vunpack.c.l.b16 %v921
        %v1098 = vpack.c.b16 %v1097, %v1097
        %1099 = vrot.lane.b32.xlu0 %v1098, 120
        %v1100 = vpop.permute.xlu0 %1099
        %v1102 = vsel %vm922, %v1095, 0
        %v1105 = vsel %vm984, %v1100, 0
        %1107 = vmatprep.subr.bf16.mxu0 0
        %1108 = vmatpush1.bf16.msra.mxu0 0
        %1109 = vmatprep.subr.bf16.mxu0 0
        %1110 = vmatpush1.bf16.msra.mxu0 0
        %1111 = vmatprep.subr.bf16.mxu0 0
        %1112 = vmatpush1.bf16.msra.mxu0 0
        %1113 = vmatprep.subr.bf16.mxu0 0
        %1114 = vmatpush1.bf16.msra.mxu0 0
        %1115 = vmatprep.subr.bf16.mxu0 0
        %1116 = vmatpush1.bf16.msra.mxu0 0
        %1117 = vmatprep.subr.bf16.mxu0 0
        %1118 = vmatpush1.bf16.msra.mxu0 0
        %1119 = vmatprep.subr.bf16.mxu0 0
        %1120 = vmatpush1.bf16.msra.mxu0 0
        %1121 = vmatprep.subr.bf16.mxu0 0
        %1122 = vmatpush1.bf16.msra.mxu0 %v1105
        %1123 = vmatprep.subr.bf16.mxu0 0
        %1124 = vmatpush2.bf16.msra.mxu0 0
        %1125 = vmatprep.subr.bf16.mxu0 0
        %1126 = vmatpush2.bf16.msra.mxu0 0
        %1127 = vmatprep.subr.bf16.mxu0 0
        %1128 = vmatpush2.bf16.msra.mxu0 0
        %1129 = vmatprep.subr.bf16.mxu0 0
        %1130 = vmatpush2.bf16.msra.mxu0 0
        %1131 = vmatprep.subr.bf16.mxu0 0
        %1132 = vmatpush2.bf16.msra.mxu0 0
        %1133 = vmatprep.subr.bf16.mxu0 0
        %1134 = vmatpush2.bf16.msra.mxu0 0
        %1135 = vmatprep.subr.bf16.mxu0 0
        %1136 = vmatpush2.bf16.msra.mxu0 0
        %1137 = vmatprep.subr.bf16.mxu0 0
        %1138 = vmatpush2.bf16.msra.mxu0 0
        %1139 = vmatprep.mubr.bf16.mxu0 0
        %1140 = vmatmul.mubr.bf16.gmra.mxu0 %v1102
        %v1141 = vpop.f32.mrf.mxu0
        %v1142 = vadd.f32 0.0, %v1141
        %v1143 = vpop.f32.mrf.mxu0
        %v1144 = vpop.f32.mrf.mxu0
        %v1145 = vpop.f32.mrf.mxu0
        %1146 = vdwg.mxu0
        %v1147 = vpack.c.bf16 %v1142, %v1142
        %v1148 = vld [vmem:[#allocation13 + $0x4] sm:$0xf]
        %v1150 = vsel %vm922, %v1147, 0
        %v1153 = vsel %vm984, %v1148, 0
        %1155 = vmatprep.subr.bf16.mxu0 0
        %1156 = vmatpush1.bf16.msra.mxu0 0
        %1157 = vmatprep.subr.bf16.mxu0 0
        %1158 = vmatpush1.bf16.msra.mxu0 0
        %1159 = vmatprep.subr.bf16.mxu0 0
        %1160 = vmatpush1.bf16.msra.mxu0 0
        %1161 = vmatprep.subr.bf16.mxu0 0
        %1162 = vmatpush1.bf16.msra.mxu0 0
        %1163 = vmatprep.subr.bf16.mxu0 0
        %1164 = vmatpush1.bf16.msra.mxu0 0
        %1165 = vmatprep.subr.bf16.mxu0 0
        %1166 = vmatpush1.bf16.msra.mxu0 0
        %1167 = vmatprep.subr.bf16.mxu0 0
        %1168 = vmatpush1.bf16.msra.mxu0 0
        %1169 = vmatprep.subr.bf16.mxu0 0
        %1170 = vmatpush1.bf16.msra.mxu0 %v1153
        %1171 = vmatprep.subr.bf16.mxu0 0
        %1172 = vmatpush2.bf16.msra.mxu0 0
        %1173 = vmatprep.subr.bf16.mxu0 0
        %1174 = vmatpush2.bf16.msra.mxu0 0
        %1175 = vmatprep.subr.bf16.mxu0 0
        %1176 = vmatpush2.bf16.msra.mxu0 0
        %1177 = vmatprep.subr.bf16.mxu0 0
        %1178 = vmatpush2.bf16.msra.mxu0 0
        %1179 = vmatprep.subr.bf16.mxu0 0
        %1180 = vmatpush2.bf16.msra.mxu0 0
        %1181 = vmatprep.subr.bf16.mxu0 0
        %1182 = vmatpush2.bf16.msra.mxu0 0
        %1183 = vmatprep.subr.bf16.mxu0 0
        %1184 = vmatpush2.bf16.msra.mxu0 0
        %1185 = vmatprep.subr.bf16.mxu0 0
        %1186 = vmatpush2.bf16.msra.mxu0 0
        %1187 = vmatprep.mubr.bf16.mxu0 0
        %1188 = vmatmul.mubr.bf16.gmra.mxu0 %v1150
        %v1189 = vpop.f32.mrf.mxu0
        %v1190 = vadd.f32 0.0, %v1189
        %v1191 = vpop.f32.mrf.mxu0
        %v1192 = vpop.f32.mrf.mxu0
        %v1193 = vpop.f32.mrf.mxu0
        %1194 = vdwg.mxu0
        %v1196 = vsel %vm922, %v1028, 0
        %v1199 = vsel %vm984, %v1029, 0
        %1201 = vmatprep.subr.bf16.mxu0 0
        %1202 = vmatpush1.bf16.msra.mxu0 0
        %1203 = vmatprep.subr.bf16.mxu0 0
        %1204 = vmatpush1.bf16.msra.mxu0 0
        %1205 = vmatprep.subr.bf16.mxu0 0
        %1206 = vmatpush1.bf16.msra.mxu0 0
        %1207 = vmatprep.subr.bf16.mxu0 0
        %1208 = vmatpush1.bf16.msra.mxu0 0
        %1209 = vmatprep.subr.bf16.mxu0 0
        %1210 = vmatpush1.bf16.msra.mxu0 0
        %1211 = vmatprep.subr.bf16.mxu0 0
        %1212 = vmatpush1.bf16.msra.mxu0 0
        %1213 = vmatprep.subr.bf16.mxu0 0
        %1214 = vmatpush1.bf16.msra.mxu0 0
        %1215 = vmatprep.subr.bf16.mxu0 0
        %1216 = vmatpush1.bf16.msra.mxu0 %v1199
        %1217 = vmatprep.subr.bf16.mxu0 0
        %1218 = vmatpush2.bf16.msra.mxu0 0
        %1219 = vmatprep.subr.bf16.mxu0 0
        %1220 = vmatpush2.bf16.msra.mxu0 0
        %1221 = vmatprep.subr.bf16.mxu0 0
        %1222 = vmatpush2.bf16.msra.mxu0 0
        %1223 = vmatprep.subr.bf16.mxu0 0
        %1224 = vmatpush2.bf16.msra.mxu0 0
        %1225 = vmatprep.subr.bf16.mxu0 0
        %1226 = vmatpush2.bf16.msra.mxu0 0
        %1227 = vmatprep.subr.bf16.mxu0 0
        %1228 = vmatpush2.bf16.msra.mxu0 0
        %1229 = vmatprep.subr.bf16.mxu0 0
        %1230 = vmatpush2.bf16.msra.mxu0 0
        %1231 = vmatprep.subr.bf16.mxu0 0
        %1232 = vmatpush2.bf16.msra.mxu0 0
        %1233 = vmatprep.mubr.bf16.mxu0 0
        %1234 = vmatmul.mubr.bf16.gmra.mxu0 %v1196
        %v1235 = vpop.f32.mrf.mxu0
        %v1236 = vadd.f32 %v1190, %v1235
        %v1237 = vpop.f32.mrf.mxu0
        %v1238 = vpop.f32.mrf.mxu0
        %v1239 = vpop.f32.mrf.mxu0
        %1240 = vdwg.mxu0
        %1241 = vrot.lane.b32.xlu0 %v919, 112
        %v1242 = vpop.permute.xlu0 %1241
        %1243 = vrot.lane.b32.xlu0 %v1035, 112
        %v1244 = vpop.permute.xlu0 %1243
        %v1246 = vsel %vm922, %v1242, 0
        %v1249 = vsel %vm922, %v1244, 0
        %1251 = vmatprep.subr.bf16.mxu0 0
        %1252 = vmatpush1.bf16.xpose.msra.mxu0 0
        %1253 = vmatprep.subr.bf16.mxu0 0
        %1254 = vmatpush1.bf16.xpose.msra.mxu0 0
        %1255 = vmatprep.subr.bf16.mxu0 0
        %1256 = vmatpush1.bf16.xpose.msra.mxu0 0
        %1257 = vmatprep.subr.bf16.mxu0 0
        %1258 = vmatpush1.bf16.xpose.msra.mxu0 0
        %1259 = vmatprep.subr.bf16.mxu0 0
        %1260 = vmatpush1.bf16.xpose.msra.mxu0 0
        %1261 = vmatprep.subr.bf16.mxu0 0
        %1262 = vmatpush1.bf16.xpose.msra.mxu0 0
        %1263 = vmatprep.subr.bf16.mxu0 0
        %1264 = vmatpush1.bf16.xpose.msra.mxu0 0
        %1265 = vmatprep.subr.bf16.mxu0 0
        %1266 = vmatpush1.bf16.xpose.msra.mxu0 %v1249
        %1267 = vmatprep.subr.bf16.mxu0 0
        %1268 = vmatpush2.bf16.xpose.msra.mxu0 0
        %1269 = vmatprep.subr.bf16.mxu0 0
        %1270 = vmatpush2.bf16.xpose.msra.mxu0 0
        %1271 = vmatprep.subr.bf16.mxu0 0
        %1272 = vmatpush2.bf16.xpose.msra.mxu0 0
        %1273 = vmatprep.subr.bf16.mxu0 0
        %1274 = vmatpush2.bf16.xpose.msra.mxu0 0
        %1275 = vmatprep.subr.bf16.mxu0 0
        %1276 = vmatpush2.bf16.xpose.msra.mxu0 0
        %1277 = vmatprep.subr.bf16.mxu0 0
        %1278 = vmatpush2.bf16.xpose.msra.mxu0 0
        %1279 = vmatprep.subr.bf16.mxu0 0
        %1280 = vmatpush2.bf16.xpose.msra.mxu0 0
        %1281 = vmatprep.subr.bf16.mxu0 0
        %1282 = vmatpush2.bf16.xpose.msra.mxu0 0
        %1283 = vmatprep.mubr.bf16.mxu0 0
        %1284 = vmatmul.mubr.bf16.gmra.mxu0 %v1246
        %v1285 = vpop.f32.mrf.mxu0
        %v1286 = vadd.f32 0.0, %v1285
        %v1287 = vpop.f32.mrf.mxu0
        %v1288 = vpop.f32.mrf.mxu0
        %v1289 = vpop.f32.mrf.mxu0
        %1290 = vdwg.mxu0
        %v1291 = vsel %vm922, %v1286, -inf
        %1292 = vmax.xlane.f32.xlu0 %v1291
        %v1293 = vpop.xlane.xlu0 %1292
        %v1294 = vsub.f32 %v1286, %v1293
        %v1295 = vmul.f32 %v1294, 1.442695
        %v1296 = vpow.pop %v1295
        %v1297 = vsel %vm922, %v1296, 0.0
        %1298 = vadd.xlane.f32.xlu0 %v1297
        %v1299 = vpop.xlane.xlu0 %1298
        %v1300 = vrcp.pop %v1299
        %v1301 = vmul.f32 %v1296, %v1300
        %v1302 = vpack.c.bf16 %v1301, %v1301
        %1303 = vrot.lane.b32.xlu0 %v1098, 112
        %v1304 = vpop.permute.xlu0 %1303
        %v1306 = vsel %vm922, %v1302, 0
        %v1309 = vsel %vm984, %v1304, 0
        %1311 = vmatprep.subr.bf16.mxu0 0
        %1312 = vmatpush1.bf16.msra.mxu0 0
        %1313 = vmatprep.subr.bf16.mxu0 0
        %1314 = vmatpush1.bf16.msra.mxu0 0
        %1315 = vmatprep.subr.bf16.mxu0 0
        %1316 = vmatpush1.bf16.msra.mxu0 0
        %1317 = vmatprep.subr.bf16.mxu0 0
        %1318 = vmatpush1.bf16.msra.mxu0 0
        %1319 = vmatprep.subr.bf16.mxu0 0
        %1320 = vmatpush1.bf16.msra.mxu0 0
        %1321 = vmatprep.subr.bf16.mxu0 0
        %1322 = vmatpush1.bf16.msra.mxu0 0
        %1323 = vmatprep.subr.bf16.mxu0 0
        %1324 = vmatpush1.bf16.msra.mxu0 0
        %1325 = vmatprep.subr.bf16.mxu0 0
        %1326 = vmatpush1.bf16.msra.mxu0 %v1309
        %1327 = vmatprep.subr.bf16.mxu0 0
        %1328 = vmatpush2.bf16.msra.mxu0 0
        %1329 = vmatprep.subr.bf16.mxu0 0
        %1330 = vmatpush2.bf16.msra.mxu0 0
        %1331 = vmatprep.subr.bf16.mxu0 0
        %1332 = vmatpush2.bf16.msra.mxu0 0
        %1333 = vmatprep.subr.bf16.mxu0 0
        %1334 = vmatpush2.bf16.msra.mxu0 0
        %1335 = vmatprep.subr.bf16.mxu0 0
        %1336 = vmatpush2.bf16.msra.mxu0 0
        %1337 = vmatprep.subr.bf16.mxu0 0
        %1338 = vmatpush2.bf16.msra.mxu0 0
        %1339 = vmatprep.subr.bf16.mxu0 0
        %1340 = vmatpush2.bf16.msra.mxu0 0
        %1341 = vmatprep.subr.bf16.mxu0 0
        %1342 = vmatpush2.bf16.msra.mxu0 0
        %1343 = vmatprep.mubr.bf16.mxu0 0
        %1344 = vmatmul.mubr.bf16.gmra.mxu0 %v1306
        %v1345 = vpop.f32.mrf.mxu0
        %v1346 = vadd.f32 0.0, %v1345
        %v1347 = vpop.f32.mrf.mxu0
        %v1348 = vpop.f32.mrf.mxu0
        %v1349 = vpop.f32.mrf.mxu0
        %1350 = vdwg.mxu0
        %v1351 = vpack.c.bf16 %v1346, %v1346
        %v1352 = vld [vmem:[#allocation13 + $0x8] sm:$0xf]
        %v1354 = vsel %vm922, %v1351, 0
        %v1357 = vsel %vm984, %v1352, 0
        %1359 = vmatprep.subr.bf16.mxu0 0
        %1360 = vmatpush1.bf16.msra.mxu0 0
        %1361 = vmatprep.subr.bf16.mxu0 0
        %1362 = vmatpush1.bf16.msra.mxu0 0
        %1363 = vmatprep.subr.bf16.mxu0 0
        %1364 = vmatpush1.bf16.msra.mxu0 0
        %1365 = vmatprep.subr.bf16.mxu0 0
        %1366 = vmatpush1.bf16.msra.mxu0 0
        %1367 = vmatprep.subr.bf16.mxu0 0
        %1368 = vmatpush1.bf16.msra.mxu0 0
        %1369 = vmatprep.subr.bf16.mxu0 0
        %1370 = vmatpush1.bf16.msra.mxu0 0
        %1371 = vmatprep.subr.bf16.mxu0 0
        %1372 = vmatpush1.bf16.msra.mxu0 0
        %1373 = vmatprep.subr.bf16.mxu0 0
        %1374 = vmatpush1.bf16.msra.mxu0 %v1357
        %1375 = vmatprep.subr.bf16.mxu0 0
        %1376 = vmatpush2.bf16.msra.mxu0 0
        %1377 = vmatprep.subr.bf16.mxu0 0
        %1378 = vmatpush2.bf16.msra.mxu0 0
        %1379 = vmatprep.subr.bf16.mxu0 0
        %1380 = vmatpush2.bf16.msra.mxu0 0
        %1381 = vmatprep.subr.bf16.mxu0 0
        %1382 = vmatpush2.bf16.msra.mxu0 0
        %1383 = vmatprep.subr.bf16.mxu0 0
        %1384 = vmatpush2.bf16.msra.mxu0 0
        %1385 = vmatprep.subr.bf16.mxu0 0
        %1386 = vmatpush2.bf16.msra.mxu0 0
        %1387 = vmatprep.subr.bf16.mxu0 0
        %1388 = vmatpush2.bf16.msra.mxu0 0
        %1389 = vmatprep.subr.bf16.mxu0 0
        %1390 = vmatpush2.bf16.msra.mxu0 0
        %1391 = vmatprep.mubr.bf16.mxu0 0
        %1392 = vmatmul.mubr.bf16.gmra.mxu0 %v1354
        %v1393 = vpop.f32.mrf.mxu0
        %v1394 = vadd.f32 0.0, %v1393
        %v1395 = vpop.f32.mrf.mxu0
        %v1396 = vpop.f32.mrf.mxu0
        %v1397 = vpop.f32.mrf.mxu0
        %1398 = vdwg.mxu0
        %v1399 = vadd.f32 %v1236, %v1394
        %1400 = vrot.lane.b32.xlu0 %v919, 104
        %v1401 = vpop.permute.xlu0 %1400
        %1402 = vrot.lane.b32.xlu0 %v1035, 104
        %v1403 = vpop.permute.xlu0 %1402
        %v1405 = vsel %vm922, %v1401, 0
        %v1408 = vsel %vm922, %v1403, 0
        %1410 = vmatprep.subr.bf16.mxu0 0
        %1411 = vmatpush1.bf16.xpose.msra.mxu0 0
        %1412 = vmatprep.subr.bf16.mxu0 0
        %1413 = vmatpush1.bf16.xpose.msra.mxu0 0
        %1414 = vmatprep.subr.bf16.mxu0 0
        %1415 = vmatpush1.bf16.xpose.msra.mxu0 0
        %1416 = vmatprep.subr.bf16.mxu0 0
        %1417 = vmatpush1.bf16.xpose.msra.mxu0 0
        %1418 = vmatprep.subr.bf16.mxu0 0
        %1419 = vmatpush1.bf16.xpose.msra.mxu0 0
        %1420 = vmatprep.subr.bf16.mxu0 0
        %1421 = vmatpush1.bf16.xpose.msra.mxu0 0
        %1422 = vmatprep.subr.bf16.mxu0 0
        %1423 = vmatpush1.bf16.xpose.msra.mxu0 0
        %1424 = vmatprep.subr.bf16.mxu0 0
        %1425 = vmatpush1.bf16.xpose.msra.mxu0 %v1408
        %1426 = vmatprep.subr.bf16.mxu0 0
        %1427 = vmatpush2.bf16.xpose.msra.mxu0 0
        %1428 = vmatprep.subr.bf16.mxu0 0
        %1429 = vmatpush2.bf16.xpose.msra.mxu0 0
        %1430 = vmatprep.subr.bf16.mxu0 0
        %1431 = vmatpush2.bf16.xpose.msra.mxu0 0
        %1432 = vmatprep.subr.bf16.mxu0 0
        %1433 = vmatpush2.bf16.xpose.msra.mxu0 0
        %1434 = vmatprep.subr.bf16.mxu0 0
        %1435 = vmatpush2.bf16.xpose.msra.mxu0 0
        %1436 = vmatprep.subr.bf16.mxu0 0
        %1437 = vmatpush2.bf16.xpose.msra.mxu0 0
        %1438 = vmatprep.subr.bf16.mxu0 0
        %1439 = vmatpush2.bf16.xpose.msra.mxu0 0
        %1440 = vmatprep.subr.bf16.mxu0 0
        %1441 = vmatpush2.bf16.xpose.msra.mxu0 0
        %1442 = vmatprep.mubr.bf16.mxu0 0
        %1443 = vmatmul.mubr.bf16.gmra.mxu0 %v1405
        %v1444 = vpop.f32.mrf.mxu0
        %v1445 = vadd.f32 0.0, %v1444
        %v1446 = vpop.f32.mrf.mxu0
        %v1447 = vpop.f32.mrf.mxu0
        %v1448 = vpop.f32.mrf.mxu0
        %1449 = vdwg.mxu0
        %v1450 = vsel %vm922, %v1445, -inf
        %1451 = vmax.xlane.f32.xlu0 %v1450
        %v1452 = vpop.xlane.xlu0 %1451
        %v1453 = vsub.f32 %v1445, %v1452
        %v1454 = vmul.f32 %v1453, 1.442695
        %v1455 = vpow.pop %v1454
        %v1456 = vsel %vm922, %v1455, 0.0
        %1457 = vadd.xlane.f32.xlu0 %v1456
        %v1458 = vpop.xlane.xlu0 %1457
        %v1459 = vrcp.pop %v1458
        %v1460 = vmul.f32 %v1455, %v1459
        %v1461 = vpack.c.bf16 %v1460, %v1460
        %1462 = vrot.lane.b32.xlu0 %v1098, 104
        %v1463 = vpop.permute.xlu0 %1462
        %v1465 = vsel %vm922, %v1461, 0
        %v1468 = vsel %vm984, %v1463, 0
        %1470 = vmatprep.subr.bf16.mxu0 0
        %1471 = vmatpush1.bf16.msra.mxu0 0
        %1472 = vmatprep.subr.bf16.mxu0 0
        %1473 = vmatpush1.bf16.msra.mxu0 0
        %1474 = vmatprep.subr.bf16.mxu0 0
        %1475 = vmatpush1.bf16.msra.mxu0 0
        %1476 = vmatprep.subr.bf16.mxu0 0
        %1477 = vmatpush1.bf16.msra.mxu0 0
        %1478 = vmatprep.subr.bf16.mxu0 0
        %1479 = vmatpush1.bf16.msra.mxu0 0
        %1480 = vmatprep.subr.bf16.mxu0 0
        %1481 = vmatpush1.bf16.msra.mxu0 0
        %1482 = vmatprep.subr.bf16.mxu0 0
        %1483 = vmatpush1.bf16.msra.mxu0 0
        %1484 = vmatprep.subr.bf16.mxu0 0
        %1485 = vmatpush1.bf16.msra.mxu0 %v1468
        %1486 = vmatprep.subr.bf16.mxu0 0
        %1487 = vmatpush2.bf16.msra.mxu0 0
        %1488 = vmatprep.subr.bf16.mxu0 0
        %1489 = vmatpush2.bf16.msra.mxu0 0
        %1490 = vmatprep.subr.bf16.mxu0 0
        %1491 = vmatpush2.bf16.msra.mxu0 0
        %1492 = vmatprep.subr.bf16.mxu0 0
        %1493 = vmatpush2.bf16.msra.mxu0 0
        %1494 = vmatprep.subr.bf16.mxu0 0
        %1495 = vmatpush2.bf16.msra.mxu0 0
        %1496 = vmatprep.subr.bf16.mxu0 0
        %1497 = vmatpush2.bf16.msra.mxu0 0
        %1498 = vmatprep.subr.bf16.mxu0 0
        %1499 = vmatpush2.bf16.msra.mxu0 0
        %1500 = vmatprep.subr.bf16.mxu0 0
        %1501 = vmatpush2.bf16.msra.mxu0 0
        %1502 = vmatprep.mubr.bf16.mxu0 0
        %1503 = vmatmul.mubr.bf16.gmra.mxu0 %v1465
        %v1504 = vpop.f32.mrf.mxu0
        %v1505 = vadd.f32 0.0, %v1504
        %v1506 = vpop.f32.mrf.mxu0
        %v1507 = vpop.f32.mrf.mxu0
        %v1508 = vpop.f32.mrf.mxu0
        %1509 = vdwg.mxu0
        %v1510 = vpack.c.bf16 %v1505, %v1505
        %v1511 = vld [vmem:[#allocation13 + $0xc] sm:$0xf]
        %v1513 = vsel %vm922, %v1510, 0
        %v1516 = vsel %vm984, %v1511, 0
        %1518 = vmatprep.subr.bf16.mxu0 0
        %1519 = vmatpush1.bf16.msra.mxu0 0
        %1520 = vmatprep.subr.bf16.mxu0 0
        %1521 = vmatpush1.bf16.msra.mxu0 0
        %1522 = vmatprep.subr.bf16.mxu0 0
        %1523 = vmatpush1.bf16.msra.mxu0 0
        %1524 = vmatprep.subr.bf16.mxu0 0
        %1525 = vmatpush1.bf16.msra.mxu0 0
        %1526 = vmatprep.subr.bf16.mxu0 0
        %1527 = vmatpush1.bf16.msra.mxu0 0
        %1528 = vmatprep.subr.bf16.mxu0 0
        %1529 = vmatpush1.bf16.msra.mxu0 0
        %1530 = vmatprep.subr.bf16.mxu0 0
        %1531 = vmatpush1.bf16.msra.mxu0 0
        %1532 = vmatprep.subr.bf16.mxu0 0
        %1533 = vmatpush1.bf16.msra.mxu0 %v1516
        %1534 = vmatprep.subr.bf16.mxu0 0
        %1535 = vmatpush2.bf16.msra.mxu0 0
        %1536 = vmatprep.subr.bf16.mxu0 0
        %1537 = vmatpush2.bf16.msra.mxu0 0
        %1538 = vmatprep.subr.bf16.mxu0 0
        %1539 = vmatpush2.bf16.msra.mxu0 0
        %1540 = vmatprep.subr.bf16.mxu0 0
        %1541 = vmatpush2.bf16.msra.mxu0 0
        %1542 = vmatprep.subr.bf16.mxu0 0
        %1543 = vmatpush2.bf16.msra.mxu0 0
        %1544 = vmatprep.subr.bf16.mxu0 0
        %1545 = vmatpush2.bf16.msra.mxu0 0
        %1546 = vmatprep.subr.bf16.mxu0 0
        %1547 = vmatpush2.bf16.msra.mxu0 0
        %1548 = vmatprep.subr.bf16.mxu0 0
        %1549 = vmatpush2.bf16.msra.mxu0 0
        %1550 = vmatprep.mubr.bf16.mxu0 0
        %1551 = vmatmul.mubr.bf16.gmra.mxu0 %v1513
        %v1552 = vpop.f32.mrf.mxu0
        %v1553 = vadd.f32 0.0, %v1552
        %v1554 = vpop.f32.mrf.mxu0
        %v1555 = vpop.f32.mrf.mxu0
        %v1556 = vpop.f32.mrf.mxu0
        %1557 = vdwg.mxu0
        %v1558 = vadd.f32 %v1399, %v1553
        %v1559 = vld [vmem:[#allocation15] sm:$0x1]
        %v1561 = vlaneseq
        %v1562 = vshrl.u32 %v1561, 7
        %v1563 = vsub.s32 0, %v1562
        %v1564 = vrot.slane %v1559, %v1563
        %v1566 = vadd.f32 %v1558, %v1564
        %v1567 = vadd.f32 %v849, %v1566
        %v1568 = vld [vmem:[%s14] sm:$0x1]
        %v1569 = vld [vmem:[%s15] sm:$0x1]
        %v1570 = vsel %vm874, %v1567, 0.0
        %1571 = vadd.xlane.f32.xlu0 %v1570
        %v1572 = vpop.xlane.xlu0 %1571
        %v1573 = vrcp.pop 32.0
        %v1574 = vmul.f32 %v1572, %v1573
        %v1575 = vsub.f32 %v1567, %v1574
        %v1576 = vmul.f32 %v1575, %v1575
        %v1577 = vsel %vm874, %v1576, 0.0
        %1578 = vadd.xlane.f32.xlu0 %v1577
        %v1579 = vpop.xlane.xlu0 %1578
        %v1580 = vmul.f32 %v1579, %v1573
        %v1581 = vadd.f32 %v1580, 1e-05
        %v1582 = vrsqrt.pop %v1581
        %v1583 = vmul.f32 %v1575, %v1582
        %v1585 = vlaneseq
        %v1586 = vshrl.u32 %v1585, 7
        %v1587 = vsub.s32 0, %v1586
        %v1588 = vrot.slane %v1568, %v1587
        %v1590 = vmul.f32 %v1583, %v1588
        %v1592 = vlaneseq
        %v1593 = vshrl.u32 %v1592, 7
        %v1594 = vsub.s32 0, %v1593
        %v1595 = vrot.slane %v1569, %v1594
        %v1597 = vadd.f32 %v1590, %v1595
        %v1598 = vpack.c.bf16 %v1597, %v1597
        %v1599 = vld [vmem:[%s10] sm:$0xf]
        %v1600 = vld [vmem:[%s10 + $0x4] sm:$0xf]
        %v1601 = vld [vmem:[%s10 + $0x8] sm:$0xf]
        %v1602 = vld [vmem:[%s10 + $0xc] sm:$0xf]
        %v1603 = vld [vmem:[%s11] sm:$0x1]
        %v1605 = vlaneseq
        %v1606 = vshrl.u32 %v1605, 7
        %v1607 = vsub.s32 0, %v1606
        %v1608 = vrot.slane %v1603, %v1607
        %v1614 = vunpack.c.l.b16 %v1599
        %v1615 = vunpack.c.l.b16 %v1600
        %v1616 = vunpack.c.l.b16 %v1601
        %v1617 = vunpack.c.l.b16 %v1602
        %v1618 = vpack.c.b16 %v1615, %v1614
        %v1619 = vpack.c.b16 %v1617, %v1616
        %v1623 = vsel %vm874, %v1598, 0
        %1625 = vmatprep.subr.bf16.mxu0 0
        %1626 = vmatpush1.bf16.msra.mxu0 0
        %1627 = vmatprep.subr.bf16.mxu0 0
        %1628 = vmatpush1.bf16.msra.mxu0 0
        %1629 = vmatprep.subr.bf16.mxu0 0
        %1630 = vmatpush1.bf16.msra.mxu0 0
        %1631 = vmatprep.subr.bf16.mxu0 0
        %1632 = vmatpush1.bf16.msra.mxu0 0
        %1633 = vmatprep.subr.bf16.mxu0 0
        %1634 = vmatpush1.bf16.msra.mxu0 0
        %1635 = vmatprep.subr.bf16.mxu0 0
        %1636 = vmatpush1.bf16.msra.mxu0 0
        %1637 = vmatprep.subr.bf16.mxu0 0
        %1638 = vmatpush1.bf16.msra.mxu0 %v1619
        %1639 = vmatprep.subr.bf16.mxu0 0
        %1640 = vmatpush1.bf16.msra.mxu0 %v1618
        %1641 = vmatprep.subr.bf16.mxu0 0
        %1642 = vmatpush2.bf16.msra.mxu0 0
        %1643 = vmatprep.subr.bf16.mxu0 0
        %1644 = vmatpush2.bf16.msra.mxu0 0
        %1645 = vmatprep.subr.bf16.mxu0 0
        %1646 = vmatpush2.bf16.msra.mxu0 0
        %1647 = vmatprep.subr.bf16.mxu0 0
        %1648 = vmatpush2.bf16.msra.mxu0 0
        %1649 = vmatprep.subr.bf16.mxu0 0
        %1650 = vmatpush2.bf16.msra.mxu0 0
        %1651 = vmatprep.subr.bf16.mxu0 0
        %1652 = vmatpush2.bf16.msra.mxu0 0
        %1653 = vmatprep.subr.bf16.mxu0 0
        %1654 = vmatpush2.bf16.msra.mxu0 0
        %1655 = vmatprep.subr.bf16.mxu0 0
        %1656 = vmatpush2.bf16.msra.mxu0 0
        %1657 = vmatprep.mubr.bf16.mxu0 0
        %1658 = vmatmul.mubr.bf16.gmra.mxu0 %v1623
        %v1659 = vpop.f32.mrf.mxu0
        %v1660 = vadd.f32 %v1608, %v1659
        %v1661 = vpop.f32.mrf.mxu0
        %v1662 = vpop.f32.mrf.mxu0
        %v1663 = vpop.f32.mrf.mxu0
        %1664 = vdwg.mxu0
        %v1665 = vmax.f32 %v1660, 0.0
        %v1666 = vpack.c.bf16 %v1665, %v1665
        %v1667 = vld [vmem:[%s12] sm:$0xf]
        %v1668 = vld [vmem:[%s12 + $0x4] sm:$0xf]
        %v1669 = vld [vmem:[%s12 + $0x8] sm:$0xf]
        %v1670 = vld [vmem:[%s12 + $0xc] sm:$0xf]
        %v1671 = vld [vmem:[%s12 + $0x10] sm:$0xf]
        %v1672 = vld [vmem:[%s12 + $0x14] sm:$0xf]
        %v1673 = vld [vmem:[%s12 + $0x18] sm:$0xf]
        %v1674 = vld [vmem:[%s12 + $0x1c] sm:$0xf]
        %v1675 = vld [vmem:[%s13] sm:$0x1]
        %v1677 = vlaneseq
        %v1678 = vshrl.u32 %v1677, 7
        %v1679 = vsub.s32 0, %v1678
        %v1680 = vrot.slane %v1675, %v1679
        %v1690 = vunpack.c.l.b16 %v1667
        %v1691 = vunpack.c.l.b16 %v1668
        %v1692 = vunpack.c.l.b16 %v1669
        %v1693 = vunpack.c.l.b16 %v1670
        %v1694 = vunpack.c.l.b16 %v1671
        %v1695 = vunpack.c.l.b16 %v1672
        %v1696 = vunpack.c.l.b16 %v1673
        %v1697 = vunpack.c.l.b16 %v1674
        %v1698 = vpack.c.b16 %v1691, %v1690
        %v1699 = vpack.c.b16 %v1693, %v1692
        %v1700 = vpack.c.b16 %v1695, %v1694
        %v1701 = vpack.c.b16 %v1697, %v1696
        %vm1706 = vcmask 523264
        %v1708 = vsel %vm1706, %v1666, 0
        %1710 = vmatprep.subr.bf16.mxu0 0
        %1711 = vmatpush1.bf16.msra.mxu0 0
        %1712 = vmatprep.subr.bf16.mxu0 0
        %1713 = vmatpush1.bf16.msra.mxu0 0
        %1714 = vmatprep.subr.bf16.mxu0 0
        %1715 = vmatpush1.bf16.msra.mxu0 0
        %1716 = vmatprep.subr.bf16.mxu0 0
        %1717 = vmatpush1.bf16.msra.mxu0 0
        %1718 = vmatprep.subr.bf16.mxu0 0
        %1719 = vmatpush1.bf16.msra.mxu0 %v1701
        %1720 = vmatprep.subr.bf16.mxu0 0
        %1721 = vmatpush1.bf16.msra.mxu0 %v1700
        %1722 = vmatprep.subr.bf16.mxu0 0
        %1723 = vmatpush1.bf16.msra.mxu0 %v1699
        %1724 = vmatprep.subr.bf16.mxu0 0
        %1725 = vmatpush1.bf16.msra.mxu0 %v1698
        %1726 = vmatprep.subr.bf16.mxu0 0
        %1727 = vmatpush2.bf16.msra.mxu0 0
        %1728 = vmatprep.subr.bf16.mxu0 0
        %1729 = vmatpush2.bf16.msra.mxu0 0
        %1730 = vmatprep.subr.bf16.mxu0 0
        %1731 = vmatpush2.bf16.msra.mxu0 0
        %1732 = vmatprep.subr.bf16.mxu0 0
        %1733 = vmatpush2.bf16.msra.mxu0 0
        %1734 = vmatprep.subr.bf16.mxu0 0
        %1735 = vmatpush2.bf16.msra.mxu0 0
        %1736 = vmatprep.subr.bf16.mxu0 0
        %1737 = vmatpush2.bf16.msra.mxu0 0
        %1738 = vmatprep.subr.bf16.mxu0 0
        %1739 = vmatpush2.bf16.msra.mxu0 0
        %1740 = vmatprep.subr.bf16.mxu0 0
        %1741 = vmatpush2.bf16.msra.mxu0 0
        %1742 = vmatprep.mubr.bf16.mxu0 0
        %1743 = vmatmul.mubr.bf16.gmra.mxu0 %v1708
        %v1744 = vpop.f32.mrf.mxu0
        %v1745 = vadd.f32 %v1680, %v1744
        %v1746 = vpop.f32.mrf.mxu0
        %v1747 = vpop.f32.mrf.mxu0
        %v1748 = vpop.f32.mrf.mxu0
        %1749 = vdwg.mxu0
        %v1750 = vadd.f32 %v1597, %v1745
        %v1751 = vld [vmem:[%s16] sm:$0x1]
        %v1752 = vld [vmem:[%s17] sm:$0x1]
        %v1753 = vsel %vm874, %v1750, 0.0
        %1754 = vadd.xlane.f32.xlu0 %v1753
        %v1755 = vpop.xlane.xlu0 %1754
        %v1756 = vmul.f32 %v1755, %v1573
        %v1757 = vsub.f32 %v1750, %v1756
        %v1758 = vmul.f32 %v1757, %v1757
        %v1759 = vsel %vm874, %v1758, 0.0
        %1760 = vadd.xlane.f32.xlu0 %v1759
        %v1761 = vpop.xlane.xlu0 %1760
        %v1762 = vmul.f32 %v1761, %v1573
        %v1763 = vadd.f32 %v1762, 1e-05
        %v1764 = vrsqrt.pop %v1763
        %v1765 = vmul.f32 %v1757, %v1764
        %v1767 = vlaneseq
        %v1768 = vshrl.u32 %v1767, 7
        %v1769 = vsub.s32 0, %v1768
        %v1770 = vrot.slane %v1751, %v1769
        %v1772 = vmul.f32 %v1765, %v1770
        %v1774 = vlaneseq
        %v1775 = vshrl.u32 %v1774, 7
        %v1776 = vsub.s32 0, %v1775
        %v1777 = vrot.slane %v1752, %v1776
        %v1779 = vadd.f32 %v1772, %v1777
        %1780 = vst.msk [vmem:[%s695] sm:$0xff] %vm874, %v1779
        %s1781 = sand.u32 %s448, 1
        %s1782 = scalar_lea.sflag [#allocation6], %s1781
        %s1783 = sand.u32 %s448, 1
        %s1784 = smul.addr %s1783, 8
        %s1785 = scalar_lea.vmem [#allocation16], %s1784
        // Predicated region
        $region125: #{tpu_custom_call.1} parent=91 // pred_check
          %p1786 = pneg %p458
        $region126: #{tpu_custom_call.1} parent=91 // pred_check_branch
          %1788 = sbr.rel (%p1786) target = $region128
        $region127: #{tpu_custom_call.1} parent=91 // pred_region
          %s1790 = ssub.s32 128, 128
          %1791 = vsyncadd %s1782, %s1790
          %s1792 = sadd.s32 %s41, %s40
          %s1793 = smul.addr %s1792, 128
          %s1794 = scalar_lea.hbm %s18, %s1793
          %s1796 = sshll.u32 %s1785, 4
          %s1797 = int_to_ptr.vmem [resolvable:$true] %s1796
          %1799 = dma.vmem_to_hbm [thread:$0]  %s1797, 128, %s1794, %s1782
        $region128: #{tpu_custom_call.1} parent=91 // pred_fallthru
          _
      $region92: #{tpu_custom_call.1} parent=5 // pred_fallthru
        _
      %p1800 = scmp.le.s32.totalorder 2, %s31
      // Predicated region
      $region129: #{tpu_custom_call.1} parent=5 // pred_check
        %p1801 = pneg %p1800
      $region130: #{tpu_custom_call.1} parent=5 // pred_check_branch
        %1803 = sbr.rel (%p1801) target = $region132
      $region131: #{tpu_custom_call.1} parent=5 // pred_region
        %s1804 = ssub.s32 %s31, 2
        // Predicated region
        $region133: #{tpu_custom_call.1} parent=131 // pred_check
          %p1805 = pneg %p464
        $region134: #{tpu_custom_call.1} parent=131 // pred_check_branch
          %1807 = sbr.rel (%p1805) target = $region136
        $region135: #{tpu_custom_call.1} parent=131 // pred_region
          %s1808 = sand.u32 %s449, 1
          %s1809 = scalar_lea.sflag [#allocation6], %s1808
          %s1810 = sand.u32 %s449, 1
          %s1811 = smul.addr %s1810, 8
          %s1812 = scalar_lea.vmem [#allocation16], %s1811
          %1813 = dma.done %s1809, 128
        $region136: #{tpu_custom_call.1} parent=131 // pred_fallthru
          _
      $region132: #{tpu_custom_call.1} parent=5 // pred_fallthru
        _
    $region6: #{tpu_custom_call.1} parent=1 // loop_footer
      %s35 = sadd.s32 1, %s31
    $region7: #{tpu_custom_call.1} parent=1 // loop_footer_branch
      %30 = sbr.rel target = $region3
    $region8: #{tpu_custom_call.1} parent=1 // loop_exit
      _
    %1814 = vsyncpa [#allocation5], 1
    %s1815 = scalar_lea.sflag [#allocation5], 1
    %1816 = vsyncpa %s1815, 1
    %1817 = vsyncpa [#allocation8], 1
    %1818 = vsyncpa [#allocation11], 1
    %1819 = vsyncpa [#allocation14], 1
    %1820 = vsyncpa [#allocation6], 1
    %s1821 = scalar_lea.sflag [#allocation6], 1
    %1822 = vsyncpa %s1821, 1

</llo_original>
